<compile_context>
chip_gen: v5e
topology: v5e:2x2
jax: 0.10.0
libtpu: 0.0.40
codegen_flags: <defaults>
</compile_context>

<pallas_src>
import functools

import jax
import jax.numpy as jnp
import numpy as np
from jax import lax
from jax.experimental import pallas as pl
from jax.experimental.pallas import tpu as pltpu

_LPAD = 8  # left-halo width of the padded conv scratch (sublane-aligned interior)


# --------------------------------------------------------------------------
# in-kernel helpers
# --------------------------------------------------------------------------
def _zero_halo(pad_ref, b, hp, wp, c):
    """Zero only the halo of image b in the (nb, hp+2, wp+_LPAD+1, c) scratch."""
    wpad = wp + _LPAD + 1
    pad_ref[b, 0:1, :, :] = jnp.zeros((1, wpad, c), jnp.float32)
    pad_ref[b, hp + 1:hp + 2, :, :] = jnp.zeros((1, wpad, c), jnp.float32)
    pad_ref[b, :, 0:_LPAD, :] = jnp.zeros((hp + 2, _LPAD, c), jnp.float32)
    pad_ref[b, :, _LPAD + wp:_LPAD + wp + 1, :] = jnp.zeros((hp + 2, 1, c),
                                                            jnp.float32)


def _conv3x3_write(pad_ref, im_ref, w_ref, b_ref, y_ref, sum_ref, ssq_ref,
                   *, mats, rh, wp, cin, cout):
    """3x3 conv as statically planned bf16 im2col MXU matmuls.

    `mats` is a static tuple; each entry is one matmul, given as a tuple of
    (block_batch_idx, row0) segments of `rh` output rows packed consecutively
    into the bf16 patch buffer `im_ref` of shape (num_segs*rh*wp, 9*cin).
    Writes the activation (cast to y_ref.dtype) and f32 sum / sum-of-squares
    partials for BatchNorm.
    """
    seg = rh * wp
    tsum = jnp.zeros((1, cout), jnp.float32)
    tssq = jnp.zeros((1, cout), jnp.float32)
    for segs in mats:
        # pack: 9 shifted slices of the padded scratch, written directly in bf16
        for s, (b, r0) in enumerate(segs):
            for dy in range(3):
                for dx in range(3):
                    k = dy * 3 + dx
                    im_ref[s * seg:(s + 1) * seg, k * cin:(k + 1) * cin] = (
                        pad_ref[b, r0 + dy:r0 + dy + rh,
                                _LPAD - 1 + dx:_LPAD - 1 + dx + wp, :]
                        .reshape(seg, cin).astype(jnp.bfloat16))
        # one bf16 MXU matmul with f32 accumulation (+ conv bias)
        y = jnp.dot(im_ref[...], w_ref[...],
                    preferred_element_type=jnp.float32) + b_ref[...]
        for s, (b, r0) in enumerate(segs):
            y_ref[b, r0:r0 + rh, :, :] = (
                y[s * seg:(s + 1) * seg].reshape(rh, wp, cout)
                .astype(y_ref.dtype))
        tsum = tsum + jnp.sum(y, axis=0, keepdims=True)
        tssq = tssq + jnp.sum(y * y, axis=0, keepdims=True)
    sum_ref[...] = tsum
    ssq_ref[...] = tssq


# --------------------------------------------------------------------------
# pass A: maxpool(2) + conv1 + bias, per-step BN partial sums
# --------------------------------------------------------------------------
def pool_conv1_kernel(x_ref, w_ref, b_ref, y_ref, sum_ref, ssq_ref,
                      pad_ref, im_ref, *, nb, hp, wp, cin, cout, rh, mats):
    # x_ref is (nb, hp, 2, wp, 2*cin): the two h-taps are leading-dim indices,
    # the two w-taps are the lane halves -> MaxPool2d(2) is three elementwise
    # maxima, no HBM tap arrays.
    for b in range(nb):
        x0 = x_ref[b, :, 0, :, :]                       # (hp, wp, 2*cin)
        x1 = x_ref[b, :, 1, :, :]
        m = jnp.maximum(x0, x1)
        pooled = jnp.maximum(m[:, :, :cin], m[:, :, cin:])   # (hp, wp, cin)
        _zero_halo(pad_ref, b, hp, wp, cin)
        pad_ref[b, 1:hp + 1, _LPAD:_LPAD + wp, :] = pooled
    _conv3x3_write(pad_ref, im_ref, w_ref, b_ref, y_ref, sum_ref, ssq_ref,
                   mats=mats, rh=rh, wp=wp, cin=cin, cout=cout)


# --------------------------------------------------------------------------
# pass B: BN1(affine) + ReLU + conv2 + bias, per-step BN partial sums
# --------------------------------------------------------------------------
def bn_relu_conv2_kernel(y1_ref, sc_ref, sh_ref, w_ref, b_ref,
                         y_ref, sum_ref, ssq_ref, pad_ref, im_ref,
                         *, nb, hp, wp, cin, cout, rh, mats):
    scale = sc_ref[...].reshape(1, 1, cin)
    shift = sh_ref[...].reshape(1, 1, cin)
    for b in range(nb):
        a = jnp.maximum(
            y1_ref[b, :, :, :].astype(jnp.float32) * scale + shift, 0.0)
        _zero_halo(pad_ref, b, hp, wp, cin)
        pad_ref[b, 1:hp + 1, _LPAD:_LPAD + wp, :] = a
    _conv3x3_write(pad_ref, im_ref, w_ref, b_ref, y_ref, sum_ref, ssq_ref,
                   mats=mats, rh=rh, wp=wp, cin=cin, cout=cout)


# --------------------------------------------------------------------------
# wrapper-side planning / helpers
# --------------------------------------------------------------------------
def _plan_conv(n, hp, wp, cin, budget_bytes, target_m=512):
    """Choose (batch block nb, rows-per-segment rh, static matmul plan).

    Each matmul is a tuple of (block_batch_idx, row0) segments of rh rows.
    Whole images are packed together to grow MXU M when they fit the bf16
    im2col budget; otherwise the rows of one image are chunked (v7x VMEM)."""
    row_bytes = wp * 9 * cin * 2            # one output row of bf16 patches
    max_rows = max(1, budget_bytes // row_bytes)
    if hp <= max_rows:
        gb = min(n, max(1, max_rows // hp), max(1, -(-target_m // (hp * wp))))
        while n % gb:
            gb -= 1
        nb, rh = gb, hp
        mats = (tuple((s, 0) for s in range(gb)),)
    else:
        nb = 1
        rh = max(d for d in range(1, hp + 1) if hp % d == 0 and d <= max_rows)
        mats = tuple(((0, r0),) for r0 in range(0, hp, rh))
    return nb, rh, mats


def _vmem_limit(*byte_counts):
    need = int(sum(byte_counts)) + (4 << 20)
    return int(min(max(need, 16 << 20), 64 << 20))


def _bn_scale_shift(s, q, gamma, beta, count, eps):
    """Combine per-step one-pass partial sums into a per-channel affine."""
    # TODO(synk): one-pass sum/sumsq variance can lose precision for huge
    #             count when |mean| >> std; use a Chan/Welford combine there.
    mean = jnp.sum(s, axis=0) / count
    var = jnp.sum(q, axis=0) / count - mean * mean
    scale = gamma * lax.rsqrt(var + eps)
    shift = beta - mean * scale
    return scale, shift


def down_forward(x_nchw, params, eps=1e-5, im2col_budget_bytes=4 << 20):
    n, c_in, h, w = x_nchw.shape
    c_out = params["w1"].shape[0]
    hp, wp = h // 2, w // 2
    rows = hp * wp
    count = n * rows                        # BN population size (N * Hp * Wp)

    # MaxPool2d(2) floors odd spatial dims.
    x_nchw = x_nchw[:, :, :2 * hp, :2 * wp]

    # One NCHW->NHWC transpose + a free reshape; the four 2x2 pooling taps are
    # recovered in-kernel (no tap arrays materialized in HBM).
    x_p = jnp.transpose(x_nchw, (0, 2, 3, 1)).reshape(n, hp, 2, wp, 2 * c_in)

    # conv weights -> im2col layout ((dy*3+dx)*cin + ci, cout), bf16 for MXU
    w1 = jnp.transpose(params["w1"], (2, 3, 1, 0)).reshape(9 * c_in, c_out)
    w2 = jnp.transpose(params["w2"], (2, 3, 1, 0)).reshape(9 * c_out, c_out)
    w1 = w1.astype(jnp.bfloat16)
    w2 = w2.astype(jnp.bfloat16)
    b1 = params["b1"].reshape(1, c_out).astype(jnp.float32)
    b2 = params["b2"].reshape(1, c_out).astype(jnp.float32)
    g1 = params["gamma1"].astype(jnp.float32)
    be1 = params["beta1"].astype(jnp.float32)
    g2 = params["gamma2"].astype(jnp.float32)
    be2 = params["beta2"].astype(jnp.float32)

    def batch_tile(nb, tail):
        nd = len(tail)
        return pl.BlockSpec((nb,) + tuple(tail),
                            lambda i, nd=nd: (i,) + (0,) * nd)

    def full(shape):
        nd = len(shape)
        return pl.BlockSpec(tuple(shape), lambda i, nd=nd: (0,) * nd)

    stat_spec = pl.BlockSpec((1, c_out), lambda i: (i, 0))

    # ---- pass A: maxpool + conv1 + bias -----------------------------------
    nb_a, rh_a, mats_a = _plan_conv(n, hp, wp, c_in, im2col_budget_bytes)
    gsteps_a = n // nb_a
    im_rows_a = len(mats_a[0]) * rh_a * wp

    y1, s1, q1 = pl.pallas_call(
        functools.partial(pool_conv1_kernel, nb=nb_a, hp=hp, wp=wp,
                          cin=c_in, cout=c_out, rh=rh_a, mats=mats_a),
        grid=(gsteps_a,),
        in_specs=[batch_tile(nb_a, (hp, 2, wp, 2 * c_in)),
                  full(w1.shape), full(b1.shape)],
        out_specs=[batch_tile(nb_a, (hp, wp, c_out)), stat_spec, stat_spec],
        out_shape=[jax.ShapeDtypeStruct((n, hp, wp, c_out), jnp.bfloat16),
                   jax.ShapeDtypeStruct((gsteps_a, c_out), jnp.float32),
                   jax.ShapeDtypeStruct((gsteps_a, c_out), jnp.float32)],
        scratch_shapes=[
            pltpu.VMEM((nb_a, hp + 2, wp + _LPAD + 1, c_in), jnp.float32),
            pltpu.VMEM((im_rows_a, 9 * c_in), jnp.bfloat16)],
        compiler_params=pltpu.CompilerParams(
            dimension_semantics=("parallel",),
            vmem_limit_bytes=_vmem_limit(
                2 * nb_a * 4 * rows * c_in * 4,          # input block (x2 buf)
                2 * nb_a * rows * c_out * 2,             # y1 block (x2 buf)
                9 * c_in * c_out * 2 + c_out * 4,        # weights + bias
                nb_a * (hp + 2) * (wp + _LPAD + 1) * c_in * 4,   # pad scratch
                im_rows_a * 9 * c_in * 2)),              # bf16 im2col scratch
        cost_estimate=pl.CostEstimate(
            flops=2 * n * rows * 9 * c_in * c_out,
            transcendentals=0,
            bytes_accessed=(n * 4 * rows * c_in * 4 + n * rows * c_out * 2
                            + 9 * c_in * c_out * 2 + 2 * gsteps_a * c_out * 4)),
    )(x_p, w1, b1)

    # BN1 stat combine (tiny, per-channel) hoisted out of the kernel.
    scale1, shift1 = _bn_scale_shift(s1, q1, g1, be1, count, eps)
    scale1 = scale1.reshape(1, c_out)
    shift1 = shift1.reshape(1, c_out)

    # ---- pass B: BN1 + ReLU + conv2 + bias --------------------------------
    nb_b, rh_b, mats_b = _plan_conv(n, hp, wp, c_out, im2col_budget_bytes)
    gsteps_b = n // nb_b
    im_rows_b = len(mats_b[0]) * rh_b * wp

    y2, s2, q2 = pl.pallas_call(
        functools.partial(bn_relu_conv2_kernel, nb=nb_b, hp=hp, wp=wp,
                          cin=c_out, cout=c_out, rh=rh_b, mats=mats_b),
        grid=(gsteps_b,),
        in_specs=[batch_tile(nb_b, (hp, wp, c_out)),
                  full((1, c_out)), full((1, c_out)),
                  full(w2.shape), full(b2.shape)],
        out_specs=[batch_tile(nb_b, (hp, wp, c_out)), stat_spec, stat_spec],
        out_shape=[jax.ShapeDtypeStruct((n, hp, wp, c_out), jnp.bfloat16),
                   jax.ShapeDtypeStruct((gsteps_b, c_out), jnp.float32),
                   jax.ShapeDtypeStruct((gsteps_b, c_out), jnp.float32)],
        scratch_shapes=[
            pltpu.VMEM((nb_b, hp + 2, wp + _LPAD + 1, c_out), jnp.float32),
            pltpu.VMEM((im_rows_b, 9 * c_out), jnp.bfloat16)],
        compiler_params=pltpu.CompilerParams(
            dimension_semantics=("parallel",),
            vmem_limit_bytes=_vmem_limit(
                4 * nb_b * rows * c_out * 2,             # y1 in + y2 out (x2)
                9 * c_out * c_out * 2 + 3 * c_out * 4,   # weights + affine
                nb_b * (hp + 2) * (wp + _LPAD + 1) * c_out * 4,
                im_rows_b * 9 * c_out * 2)),
        cost_estimate=pl.CostEstimate(
            flops=2 * n * rows * 9 * c_out * c_out,
            transcendentals=0,
            bytes_accessed=(2 * n * rows * c_out * 2 + 9 * c_out * c_out * 2
                            + 2 * gsteps_b * c_out * 4)),
    )(y1, scale1, shift1, w2, b2)

    # ---- BN2 + ReLU: plain affine, fused by XLA with the final transpose ---
    scale2, shift2 = _bn_scale_shift(s2, q2, g2, be2, count, eps)
    out_nhwc = jnp.maximum(y2.astype(jnp.float32) * scale2 + shift2, 0.0)
    return jnp.transpose(out_nhwc, (0, 3, 1, 2))


# --------------------------------------------------------------------------
# pure-JAX reference (same semantics) for a sanity check
# --------------------------------------------------------------------------
def down_reference(x_nchw, params, eps=1e-5):
    x = lax.reduce_window(x_nchw, -jnp.inf, lax.max,
                          (1, 1, 2, 2), (1, 1, 2, 2), "VALID")

    def block(x, wk, bk, g, bt):
        y = lax.conv_general_dilated(
            x, wk, window_strides=(1, 1), padding=((1, 1), (1, 1)),
            dimension_numbers=("NCHW", "OIHW", "NCHW"),
            precision=lax.Precision.HIGHEST)
        y = y + bk.reshape(1, -1, 1, 1)
        mean = jnp.mean(y, axis=(0, 2, 3), keepdims=True)
        var = jnp.mean((y - mean) ** 2, axis=(0, 2, 3), keepdims=True)
        y = (y - mean) / jnp.sqrt(var + eps) * g.reshape(1, -1, 1, 1) \
            + bt.reshape(1, -1, 1, 1)
        return jnp.maximum(y, 0.0)

    x = block(x, params["w1"], params["b1"], params["gamma1"], params["beta1"])
    x = block(x, params["w2"], params["b2"], params["gamma2"], params["beta2"])
    return x


if __name__ == "__main__":
    n, c_in, c_out, hsz, wsz = 2, 4, 8, 16, 16
    key = jax.random.PRNGKey(0)
    ks = jax.random.split(key, 8)

    x = jax.random.normal(ks[0], (n, c_in, hsz, wsz), jnp.float32)
    params = {
        "w1": jax.random.normal(ks[1], (c_out, c_in, 3, 3), jnp.float32)
              / np.sqrt(c_in * 9),
        "b1": 0.1 * jax.random.normal(ks[2], (c_out,), jnp.float32),
        "gamma1": 1.0 + 0.1 * jax.random.normal(ks[3], (c_out,), jnp.float32),
        "beta1": 0.1 * jax.random.normal(ks[4], (c_out,), jnp.float32),
        "w2": jax.random.normal(ks[5], (c_out, c_out, 3, 3), jnp.float32)
              / np.sqrt(c_out * 9),
        "b2": 0.1 * jax.random.normal(ks[6], (c_out,), jnp.float32),
        "gamma2": 1.0 + 0.1 * jax.random.normal(ks[7], (c_out,), jnp.float32),
        "beta2": jnp.zeros((c_out,), jnp.float32),
    }

    ref = jax.block_until_ready(down_reference(x, params))

    # Default plan: both images packed into one im2col matmul per grid step.
    out = jax.block_until_ready(jax.jit(down_forward)(x, params))
    assert out.shape == (n, c_out, hsz // 2, wsz // 2), out.shape
    np.testing.assert_allclose(np.asarray(out, np.float32), np.asarray(ref),
                               atol=5e-2, rtol=5e-2)

    # Tiny im2col budget: exercises the row-chunked matmul plan (the v7x VMEM
    # path) on the same data.
    out_chunked = jax.block_until_ready(
        jax.jit(functools.partial(down_forward,
                                  im2col_budget_bytes=4096))(x, params))
    np.testing.assert_allclose(np.asarray(out_chunked, np.float32),
                               np.asarray(ref), atol=5e-2, rtol=5e-2)

    print("KERNEL_OK")
</pallas_src>

<mosaic_0001>
module attributes {stable_mosaic.version = 11 : i64} {
  func.func @bn_relu_conv2_kernel(%arg0: i32, %arg1: memref<2x8x8x8xbf16, #tpu.memory_space<vmem>>, %arg2: memref<1x8xf32, #tpu.memory_space<vmem>>, %arg3: memref<1x8xf32, #tpu.memory_space<vmem>>, %arg4: memref<72x8xbf16, #tpu.memory_space<vmem>>, %arg5: memref<1x8xf32, #tpu.memory_space<vmem>>, %arg6: memref<2x8x8x8xbf16, #tpu.memory_space<vmem>>, %arg7: memref<1x8xf32, #tpu.memory_space<vmem>>, %arg8: memref<1x8xf32, #tpu.memory_space<vmem>>, %arg9: memref<2x10x17x8xf32, #tpu.memory_space<vmem>>, %arg10: memref<128x72xbf16, #tpu.memory_space<vmem>>) attributes {dimension_semantics = [#tpu.dimension_semantics<parallel>], iteration_bounds = array<i64: 1>, scalar_prefetch = 0 : i64, scratch_operands = 2 : i64, tpu.core_type = #tpu.core_type<tc>, window_params = [{transform_indices = @transform_0, window_bounds = array<i64: 2, 8, 8, 8>}, {pipeline_mode = #tpu.pipeline_mode<synchronous>, transform_indices = @transform_1, window_bounds = array<i64: 1, 8>}, {pipeline_mode = #tpu.pipeline_mode<synchronous>, transform_indices = @transform_2, window_bounds = array<i64: 1, 8>}, {pipeline_mode = #tpu.pipeline_mode<synchronous>, transform_indices = @transform_3, window_bounds = array<i64: 72, 8>}, {pipeline_mode = #tpu.pipeline_mode<synchronous>, transform_indices = @transform_4, window_bounds = array<i64: 1, 8>}, {transform_indices = @transform_5, window_bounds = array<i64: 2, 8, 8, 8>}, {transform_indices = @transform_6, window_bounds = array<i64: 1, 8>}, {transform_indices = @transform_7, window_bounds = array<i64: 1, 8>}]} {
    %c0 = arith.constant 0 : index
    %c0_0 = arith.constant 0 : index
    %0 = vector.load %arg2[%c0, %c0_0] : memref<1x8xf32, #tpu.memory_space<vmem>>, vector<1x8xf32>
    %1 = vector.shape_cast %0 : vector<1x8xf32> to vector<1x1x8xf32>
    %c0_1 = arith.constant 0 : index
    %c0_2 = arith.constant 0 : index
    %2 = vector.load %arg3[%c0_1, %c0_2] : memref<1x8xf32, #tpu.memory_space<vmem>>, vector<1x8xf32>
    %3 = vector.shape_cast %2 : vector<1x8xf32> to vector<1x1x8xf32>
    %c0_3 = arith.constant 0 : index
    %c0_4 = arith.constant 0 : index
    %c0_5 = arith.constant 0 : index
    %c0_6 = arith.constant 0 : index
    %4 = vector.load %arg1[%c0_3, %c0_4, %c0_5, %c0_6] : memref<2x8x8x8xbf16, #tpu.memory_space<vmem>>, vector<1x8x8x8xbf16>
    %5 = vector.shape_cast %4 : vector<1x8x8x8xbf16> to vector<8x8x8xbf16>
    %6 = arith.extf %5 : vector<8x8x8xbf16> to vector<8x8x8xf32>
    %7 = vector.broadcast %1 : vector<1x1x8xf32> to vector<8x8x8xf32>
    %8 = arith.mulf %6, %7 : vector<8x8x8xf32>
    %9 = vector.broadcast %3 : vector<1x1x8xf32> to vector<8x8x8xf32>
    %10 = arith.addf %8, %9 : vector<8x8x8xf32>
    %cst = arith.constant 0.000000e+00 : f32
    %11 = vector.broadcast %cst : f32 to vector<8x8x8xf32>
    %12 = arith.maximumf %10, %11 : vector<8x8x8xf32>
    %cst_7 = arith.constant 0.000000e+00 : f32
    %13 = vector.broadcast %cst_7 : f32 to vector<1x17x8xf32>
    %c0_8 = arith.constant 0 : index
    %c0_9 = arith.constant 0 : index
    %c0_10 = arith.constant 0 : index
    %c0_11 = arith.constant 0 : index
    %14 = vector.load %arg9[%c0_8, %c0_9, %c0_10, %c0_11] : memref<2x10x17x8xf32, #tpu.memory_space<vmem>>, vector<1x1x17x8xf32>
    %15 = vector.shape_cast %14 : vector<1x1x17x8xf32> to vector<1x17x8xf32>
    %16 = vector.shape_cast %13 : vector<1x17x8xf32> to vector<1x1x17x8xf32>
    tpu.vector_store %arg9[%c0_8, %c0_9, %c0_10, %c0_11], %16 {strides = array<i32>} : memref<2x10x17x8xf32, #tpu.memory_space<vmem>>, vector<1x1x17x8xf32>,
    %cst_12 = arith.constant 0.000000e+00 : f32
    %17 = vector.broadcast %cst_12 : f32 to vector<1x17x8xf32>
    %c0_13 = arith.constant 0 : index
    %c9 = arith.constant 9 : index
    %c0_14 = arith.constant 0 : index
    %c0_15 = arith.constant 0 : index
    %18 = vector.load %arg9[%c0_13, %c9, %c0_14, %c0_15] : memref<2x10x17x8xf32, #tpu.memory_space<vmem>>, vector<1x1x17x8xf32>
    %19 = vector.shape_cast %18 : vector<1x1x17x8xf32> to vector<1x17x8xf32>
    %20 = vector.shape_cast %17 : vector<1x17x8xf32> to vector<1x1x17x8xf32>
    tpu.vector_store %arg9[%c0_13, %c9, %c0_14, %c0_15], %20 {strides = array<i32>} : memref<2x10x17x8xf32, #tpu.memory_space<vmem>>, vector<1x1x17x8xf32>,
    %cst_16 = arith.constant 0.000000e+00 : f32
    %21 = vector.broadcast %cst_16 : f32 to vector<10x8x8xf32>
    %c0_17 = arith.constant 0 : index
    %c0_18 = arith.constant 0 : index
    %c0_19 = arith.constant 0 : index
    %c0_20 = arith.constant 0 : index
    %22 = vector.load %arg9[%c0_17, %c0_18, %c0_19, %c0_20] : memref<2x10x17x8xf32, #tpu.memory_space<vmem>>, vector<1x10x8x8xf32>
    %23 = vector.shape_cast %22 : vector<1x10x8x8xf32> to vector<10x8x8xf32>
    %24 = vector.shape_cast %21 : vector<10x8x8xf32> to vector<1x10x8x8xf32>
    tpu.vector_store %arg9[%c0_17, %c0_18, %c0_19, %c0_20], %24 {strides = array<i32>} : memref<2x10x17x8xf32, #tpu.memory_space<vmem>>, vector<1x10x8x8xf32>,
    %cst_21 = arith.constant 0.000000e+00 : f32
    %25 = vector.broadcast %cst_21 : f32 to vector<10x1x8xf32>
    %c0_22 = arith.constant 0 : index
    %c0_23 = arith.constant 0 : index
    %c16 = arith.constant 16 : index
    %c0_24 = arith.constant 0 : index
    %26 = vector.load %arg9[%c0_22, %c0_23, %c16, %c0_24] : memref<2x10x17x8xf32, #tpu.memory_space<vmem>>, vector<1x10x1x8xf32>
    %27 = vector.shape_cast %26 : vector<1x10x1x8xf32> to vector<10x1x8xf32>
    %28 = vector.shape_cast %25 : vector<10x1x8xf32> to vector<1x10x1x8xf32>
    tpu.vector_store %arg9[%c0_22, %c0_23, %c16, %c0_24], %28 {strides = array<i32>} : memref<2x10x17x8xf32, #tpu.memory_space<vmem>>, vector<1x10x1x8xf32>,
    %c0_25 = arith.constant 0 : index
    %c1 = arith.constant 1 : index
    %c8 = arith.constant 8 : index
    %c0_26 = arith.constant 0 : index
    %29 = vector.load %arg9[%c0_25, %c1, %c8, %c0_26] : memref<2x10x17x8xf32, #tpu.memory_space<vmem>>, vector<1x8x8x8xf32>
    %30 = vector.shape_cast %29 : vector<1x8x8x8xf32> to vector<8x8x8xf32>
    %31 = vector.shape_cast %12 : vector<8x8x8xf32> to vector<1x8x8x8xf32>
    tpu.vector_store %arg9[%c0_25, %c1, %c8, %c0_26], %31 {strides = array<i32>} : memref<2x10x17x8xf32, #tpu.memory_space<vmem>>, vector<1x8x8x8xf32>,
    %c1_27 = arith.constant 1 : index
    %c0_28 = arith.constant 0 : index
    %c0_29 = arith.constant 0 : index
    %c0_30 = arith.constant 0 : index
    %32 = vector.load %arg1[%c1_27, %c0_28, %c0_29, %c0_30] : memref<2x8x8x8xbf16, #tpu.memory_space<vmem>>, vector<1x8x8x8xbf16>
    %33 = vector.shape_cast %32 : vector<1x8x8x8xbf16> to vector<8x8x8xbf16>
    %34 = arith.extf %33 : vector<8x8x8xbf16> to vector<8x8x8xf32>
    %35 = vector.broadcast %1 : vector<1x1x8xf32> to vector<8x8x8xf32>
    %36 = arith.mulf %34, %35 : vector<8x8x8xf32>
    %37 = vector.broadcast %3 : vector<1x1x8xf32> to vector<8x8x8xf32>
    %38 = arith.addf %36, %37 : vector<8x8x8xf32>
    %cst_31 = arith.constant 0.000000e+00 : f32
    %39 = vector.broadcast %cst_31 : f32 to vector<8x8x8xf32>
    %40 = arith.maximumf %38, %39 : vector<8x8x8xf32>
    %cst_32 = arith.constant 0.000000e+00 : f32
    %41 = vector.broadcast %cst_32 : f32 to vector<1x17x8xf32>
    %c1_33 = arith.constant 1 : index
    %c0_34 = arith.constant 0 : index
    %c0_35 = arith.constant 0 : index
    %c0_36 = arith.constant 0 : index
    %42 = vector.load %arg9[%c1_33, %c0_34, %c0_35, %c0_36] : memref<2x10x17x8xf32, #tpu.memory_space<vmem>>, vector<1x1x17x8xf32>
    %43 = vector.shape_cast %42 : vector<1x1x17x8xf32> to vector<1x17x8xf32>
    %44 = vector.shape_cast %41 : vector<1x17x8xf32> to vector<1x1x17x8xf32>
    tpu.vector_store %arg9[%c1_33, %c0_34, %c0_35, %c0_36], %44 {strides = array<i32>} : memref<2x10x17x8xf32, #tpu.memory_space<vmem>>, vector<1x1x17x8xf32>,
    %cst_37 = arith.constant 0.000000e+00 : f32
    %45 = vector.broadcast %cst_37 : f32 to vector<1x17x8xf32>
    %c1_38 = arith.constant 1 : index
    %c9_39 = arith.constant 9 : index
    %c0_40 = arith.constant 0 : index
    %c0_41 = arith.constant 0 : index
    %46 = vector.load %arg9[%c1_38, %c9_39, %c0_40, %c0_41] : memref<2x10x17x8xf32, #tpu.memory_space<vmem>>, vector<1x1x17x8xf32>
    %47 = vector.shape_cast %46 : vector<1x1x17x8xf32> to vector<1x17x8xf32>
    %48 = vector.shape_cast %45 : vector<1x17x8xf32> to vector<1x1x17x8xf32>
    tpu.vector_store %arg9[%c1_38, %c9_39, %c0_40, %c0_41], %48 {strides = array<i32>} : memref<2x10x17x8xf32, #tpu.memory_space<vmem>>, vector<1x1x17x8xf32>,
    %cst_42 = arith.constant 0.000000e+00 : f32
    %49 = vector.broadcast %cst_42 : f32 to vector<10x8x8xf32>
    %c1_43 = arith.constant 1 : index
    %c0_44 = arith.constant 0 : index
    %c0_45 = arith.constant 0 : index
    %c0_46 = arith.constant 0 : index
    %50 = vector.load %arg9[%c1_43, %c0_44, %c0_45, %c0_46] : memref<2x10x17x8xf32, #tpu.memory_space<vmem>>, vector<1x10x8x8xf32>
    %51 = vector.shape_cast %50 : vector<1x10x8x8xf32> to vector<10x8x8xf32>
    %52 = vector.shape_cast %49 : vector<10x8x8xf32> to vector<1x10x8x8xf32>
    tpu.vector_store %arg9[%c1_43, %c0_44, %c0_45, %c0_46], %52 {strides = array<i32>} : memref<2x10x17x8xf32, #tpu.memory_space<vmem>>, vector<1x10x8x8xf32>,
    %cst_47 = arith.constant 0.000000e+00 : f32
    %53 = vector.broadcast %cst_47 : f32 to vector<10x1x8xf32>
    %c1_48 = arith.constant 1 : index
    %c0_49 = arith.constant 0 : index
    %c16_50 = arith.constant 16 : index
    %c0_51 = arith.constant 0 : index
    %54 = vector.load %arg9[%c1_48, %c0_49, %c16_50, %c0_51] : memref<2x10x17x8xf32, #tpu.memory_space<vmem>>, vector<1x10x1x8xf32>
    %55 = vector.shape_cast %54 : vector<1x10x1x8xf32> to vector<10x1x8xf32>
    %56 = vector.shape_cast %53 : vector<10x1x8xf32> to vector<1x10x1x8xf32>
    tpu.vector_store %arg9[%c1_48, %c0_49, %c16_50, %c0_51], %56 {strides = array<i32>} : memref<2x10x17x8xf32, #tpu.memory_space<vmem>>, vector<1x10x1x8xf32>,
    %c1_52 = arith.constant 1 : index
    %c1_53 = arith.constant 1 : index
    %c8_54 = arith.constant 8 : index
    %c0_55 = arith.constant 0 : index
    %57 = vector.load %arg9[%c1_52, %c1_53, %c8_54, %c0_55] : memref<2x10x17x8xf32, #tpu.memory_space<vmem>>, vector<1x8x8x8xf32>
    %58 = vector.shape_cast %57 : vector<1x8x8x8xf32> to vector<8x8x8xf32>
    %59 = vector.shape_cast %40 : vector<8x8x8xf32> to vector<1x8x8x8xf32>
    tpu.vector_store %arg9[%c1_52, %c1_53, %c8_54, %c0_55], %59 {strides = array<i32>} : memref<2x10x17x8xf32, #tpu.memory_space<vmem>>, vector<1x8x8x8xf32>,
    %cst_56 = arith.constant 0.000000e+00 : f32
    %60 = vector.broadcast %cst_56 : f32 to vector<1x8xf32>
    %cst_57 = arith.constant 0.000000e+00 : f32
    %61 = vector.broadcast %cst_57 : f32 to vector<1x8xf32>
    %c0_58 = arith.constant 0 : index
    %c0_59 = arith.constant 0 : index
    %c7 = arith.constant 7 : index
    %c0_60 = arith.constant 0 : index
    %62 = vector.load %arg9[%c0_58, %c0_59, %c7, %c0_60] : memref<2x10x17x8xf32, #tpu.memory_space<vmem>>, vector<1x8x8x8xf32>
    %63 = vector.shape_cast %62 : vector<1x8x8x8xf32> to vector<8x8x8xf32>
    %64 = vector.shape_cast %63 : vector<8x8x8xf32> to vector<64x8xf32>
    %65 = arith.truncf %64 : vector<64x8xf32> to vector<64x8xbf16>
    %c0_61 = arith.constant 0 : index
    %c0_62 = arith.constant 0 : index
    %66 = vector.load %arg10[%c0_61, %c0_62] : memref<128x72xbf16, #tpu.memory_space<vmem>>, vector<64x8xbf16>
    tpu.vector_store %arg10[%c0_61, %c0_62], %65 {strides = array<i32>} : memref<128x72xbf16, #tpu.memory_space<vmem>>, vector<64x8xbf16>,
    %c0_63 = arith.constant 0 : index
    %c0_64 = arith.constant 0 : index
    %c8_65 = arith.constant 8 : index
    %c0_66 = arith.constant 0 : index
    %67 = vector.load %arg9[%c0_63, %c0_64, %c8_65, %c0_66] : memref<2x10x17x8xf32, #tpu.memory_space<vmem>>, vector<1x8x8x8xf32>
    %68 = vector.shape_cast %67 : vector<1x8x8x8xf32> to vector<8x8x8xf32>
    %69 = vector.shape_cast %68 : vector<8x8x8xf32> to vector<64x8xf32>
    %70 = arith.truncf %69 : vector<64x8xf32> to vector<64x8xbf16>
    %c0_67 = arith.constant 0 : index
    %c8_68 = arith.constant 8 : index
    %71 = vector.load %arg10[%c0_67, %c8_68] : memref<128x72xbf16, #tpu.memory_space<vmem>>, vector<64x8xbf16>
    tpu.vector_store %arg10[%c0_67, %c8_68], %70 {strides = array<i32>} : memref<128x72xbf16, #tpu.memory_space<vmem>>, vector<64x8xbf16>,
    %c0_69 = arith.constant 0 : index
    %c0_70 = arith.constant 0 : index
    %c9_71 = arith.constant 9 : index
    %c0_72 = arith.constant 0 : index
    %72 = vector.load %arg9[%c0_69, %c0_70, %c9_71, %c0_72] : memref<2x10x17x8xf32, #tpu.memory_space<vmem>>, vector<1x8x8x8xf32>
    %73 = vector.shape_cast %72 : vector<1x8x8x8xf32> to vector<8x8x8xf32>
    %74 = vector.shape_cast %73 : vector<8x8x8xf32> to vector<64x8xf32>
    %75 = arith.truncf %74 : vector<64x8xf32> to vector<64x8xbf16>
    %c0_73 = arith.constant 0 : index
    %c16_74 = arith.constant 16 : index
    %76 = vector.load %arg10[%c0_73, %c16_74] : memref<128x72xbf16, #tpu.memory_space<vmem>>, vector<64x8xbf16>
    tpu.vector_store %arg10[%c0_73, %c16_74], %75 {strides = array<i32>} : memref<128x72xbf16, #tpu.memory_space<vmem>>, vector<64x8xbf16>,
    %c0_75 = arith.constant 0 : index
    %c1_76 = arith.constant 1 : index
    %c7_77 = arith.constant 7 : index
    %c0_78 = arith.constant 0 : index
    %77 = vector.load %arg9[%c0_75, %c1_76, %c7_77, %c0_78] : memref<2x10x17x8xf32, #tpu.memory_space<vmem>>, vector<1x8x8x8xf32>
    %78 = vector.shape_cast %77 : vector<1x8x8x8xf32> to vector<8x8x8xf32>
    %79 = vector.shape_cast %78 : vector<8x8x8xf32> to vector<64x8xf32>
    %80 = arith.truncf %79 : vector<64x8xf32> to vector<64x8xbf16>
    %c0_79 = arith.constant 0 : index
    %c24 = arith.constant 24 : index
    %81 = vector.load %arg10[%c0_79, %c24] : memref<128x72xbf16, #tpu.memory_space<vmem>>, vector<64x8xbf16>
    tpu.vector_store %arg10[%c0_79, %c24], %80 {strides = array<i32>} : memref<128x72xbf16, #tpu.memory_space<vmem>>, vector<64x8xbf16>,
    %c0_80 = arith.constant 0 : index
    %c1_81 = arith.constant 1 : index
    %c8_82 = arith.constant 8 : index
    %c0_83 = arith.constant 0 : index
    %82 = vector.load %arg9[%c0_80, %c1_81, %c8_82, %c0_83] : memref<2x10x17x8xf32, #tpu.memory_space<vmem>>, vector<1x8x8x8xf32>
    %83 = vector.shape_cast %82 : vector<1x8x8x8xf32> to vector<8x8x8xf32>
    %84 = vector.shape_cast %83 : vector<8x8x8xf32> to vector<64x8xf32>
    %85 = arith.truncf %84 : vector<64x8xf32> to vector<64x8xbf16>
    %c0_84 = arith.constant 0 : index
    %c32 = arith.constant 32 : index
    %86 = vector.load %arg10[%c0_84, %c32] : memref<128x72xbf16, #tpu.memory_space<vmem>>, vector<64x8xbf16>
    tpu.vector_store %arg10[%c0_84, %c32], %85 {strides = array<i32>} : memref<128x72xbf16, #tpu.memory_space<vmem>>, vector<64x8xbf16>,
    %c0_85 = arith.constant 0 : index
    %c1_86 = arith.constant 1 : index
    %c9_87 = arith.constant 9 : index
    %c0_88 = arith.constant 0 : index
    %87 = vector.load %arg9[%c0_85, %c1_86, %c9_87, %c0_88] : memref<2x10x17x8xf32, #tpu.memory_space<vmem>>, vector<1x8x8x8xf32>
    %88 = vector.shape_cast %87 : vector<1x8x8x8xf32> to vector<8x8x8xf32>
    %89 = vector.shape_cast %88 : vector<8x8x8xf32> to vector<64x8xf32>
    %90 = arith.truncf %89 : vector<64x8xf32> to vector<64x8xbf16>
    %c0_89 = arith.constant 0 : index
    %c40 = arith.constant 40 : index
    %91 = vector.load %arg10[%c0_89, %c40] : memref<128x72xbf16, #tpu.memory_space<vmem>>, vector<64x8xbf16>
    tpu.vector_store %arg10[%c0_89, %c40], %90 {strides = array<i32>} : memref<128x72xbf16, #tpu.memory_space<vmem>>, vector<64x8xbf16>,
    %c0_90 = arith.constant 0 : index
    %c2 = arith.constant 2 : index
    %c7_91 = arith.constant 7 : index
    %c0_92 = arith.constant 0 : index
    %92 = vector.load %arg9[%c0_90, %c2, %c7_91, %c0_92] : memref<2x10x17x8xf32, #tpu.memory_space<vmem>>, vector<1x8x8x8xf32>
    %93 = vector.shape_cast %92 : vector<1x8x8x8xf32> to vector<8x8x8xf32>
    %94 = vector.shape_cast %93 : vector<8x8x8xf32> to vector<64x8xf32>
    %95 = arith.truncf %94 : vector<64x8xf32> to vector<64x8xbf16>
    %c0_93 = arith.constant 0 : index
    %c48 = arith.constant 48 : index
    %96 = vector.load %arg10[%c0_93, %c48] : memref<128x72xbf16, #tpu.memory_space<vmem>>, vector<64x8xbf16>
    tpu.vector_store %arg10[%c0_93, %c48], %95 {strides = array<i32>} : memref<128x72xbf16, #tpu.memory_space<vmem>>, vector<64x8xbf16>,
    %c0_94 = arith.constant 0 : index
    %c2_95 = arith.constant 2 : index
    %c8_96 = arith.constant 8 : index
    %c0_97 = arith.constant 0 : index
    %97 = vector.load %arg9[%c0_94, %c2_95, %c8_96, %c0_97] : memref<2x10x17x8xf32, #tpu.memory_space<vmem>>, vector<1x8x8x8xf32>
    %98 = vector.shape_cast %97 : vector<1x8x8x8xf32> to vector<8x8x8xf32>
    %99 = vector.shape_cast %98 : vector<8x8x8xf32> to vector<64x8xf32>
    %100 = arith.truncf %99 : vector<64x8xf32> to vector<64x8xbf16>
    %c0_98 = arith.constant 0 : index
    %c56 = arith.constant 56 : index
    %101 = vector.load %arg10[%c0_98, %c56] : memref<128x72xbf16, #tpu.memory_space<vmem>>, vector<64x8xbf16>
    tpu.vector_store %arg10[%c0_98, %c56], %100 {strides = array<i32>} : memref<128x72xbf16, #tpu.memory_space<vmem>>, vector<64x8xbf16>,
    %c0_99 = arith.constant 0 : index
    %c2_100 = arith.constant 2 : index
    %c9_101 = arith.constant 9 : index
    %c0_102 = arith.constant 0 : index
    %102 = vector.load %arg9[%c0_99, %c2_100, %c9_101, %c0_102] : memref<2x10x17x8xf32, #tpu.memory_space<vmem>>, vector<1x8x8x8xf32>
    %103 = vector.shape_cast %102 : vector<1x8x8x8xf32> to vector<8x8x8xf32>
    %104 = vector.shape_cast %103 : vector<8x8x8xf32> to vector<64x8xf32>
    %105 = arith.truncf %104 : vector<64x8xf32> to vector<64x8xbf16>
    %c0_103 = arith.constant 0 : index
    %c64 = arith.constant 64 : index
    %106 = vector.load %arg10[%c0_103, %c64] : memref<128x72xbf16, #tpu.memory_space<vmem>>, vector<64x8xbf16>
    tpu.vector_store %arg10[%c0_103, %c64], %105 {strides = array<i32>} : memref<128x72xbf16, #tpu.memory_space<vmem>>, vector<64x8xbf16>,
    %c1_104 = arith.constant 1 : index
    %c0_105 = arith.constant 0 : index
    %c7_106 = arith.constant 7 : index
    %c0_107 = arith.constant 0 : index
    %107 = vector.load %arg9[%c1_104, %c0_105, %c7_106, %c0_107] : memref<2x10x17x8xf32, #tpu.memory_space<vmem>>, vector<1x8x8x8xf32>
    %108 = vector.shape_cast %107 : vector<1x8x8x8xf32> to vector<8x8x8xf32>
    %109 = vector.shape_cast %108 : vector<8x8x8xf32> to vector<64x8xf32>
    %110 = arith.truncf %109 : vector<64x8xf32> to vector<64x8xbf16>
    %c64_108 = arith.constant 64 : index
    %c0_109 = arith.constant 0 : index
    %111 = vector.load %arg10[%c64_108, %c0_109] : memref<128x72xbf16, #tpu.memory_space<vmem>>, vector<64x8xbf16>
    tpu.vector_store %arg10[%c64_108, %c0_109], %110 {strides = array<i32>} : memref<128x72xbf16, #tpu.memory_space<vmem>>, vector<64x8xbf16>,
    %c1_110 = arith.constant 1 : index
    %c0_111 = arith.constant 0 : index
    %c8_112 = arith.constant 8 : index
    %c0_113 = arith.constant 0 : index
    %112 = vector.load %arg9[%c1_110, %c0_111, %c8_112, %c0_113] : memref<2x10x17x8xf32, #tpu.memory_space<vmem>>, vector<1x8x8x8xf32>
    %113 = vector.shape_cast %112 : vector<1x8x8x8xf32> to vector<8x8x8xf32>
    %114 = vector.shape_cast %113 : vector<8x8x8xf32> to vector<64x8xf32>
    %115 = arith.truncf %114 : vector<64x8xf32> to vector<64x8xbf16>
    %c64_114 = arith.constant 64 : index
    %c8_115 = arith.constant 8 : index
    %116 = vector.load %arg10[%c64_114, %c8_115] : memref<128x72xbf16, #tpu.memory_space<vmem>>, vector<64x8xbf16>
    tpu.vector_store %arg10[%c64_114, %c8_115], %115 {strides = array<i32>} : memref<128x72xbf16, #tpu.memory_space<vmem>>, vector<64x8xbf16>,
    %c1_116 = arith.constant 1 : index
    %c0_117 = arith.constant 0 : index
    %c9_118 = arith.constant 9 : index
    %c0_119 = arith.constant 0 : index
    %117 = vector.load %arg9[%c1_116, %c0_117, %c9_118, %c0_119] : memref<2x10x17x8xf32, #tpu.memory_space<vmem>>, vector<1x8x8x8xf32>
    %118 = vector.shape_cast %117 : vector<1x8x8x8xf32> to vector<8x8x8xf32>
    %119 = vector.shape_cast %118 : vector<8x8x8xf32> to vector<64x8xf32>
    %120 = arith.truncf %119 : vector<64x8xf32> to vector<64x8xbf16>
    %c64_120 = arith.constant 64 : index
    %c16_121 = arith.constant 16 : index
    %121 = vector.load %arg10[%c64_120, %c16_121] : memref<128x72xbf16, #tpu.memory_space<vmem>>, vector<64x8xbf16>
    tpu.vector_store %arg10[%c64_120, %c16_121], %120 {strides = array<i32>} : memref<128x72xbf16, #tpu.memory_space<vmem>>, vector<64x8xbf16>,
    %c1_122 = arith.constant 1 : index
    %c1_123 = arith.constant 1 : index
    %c7_124 = arith.constant 7 : index
    %c0_125 = arith.constant 0 : index
    %122 = vector.load %arg9[%c1_122, %c1_123, %c7_124, %c0_125] : memref<2x10x17x8xf32, #tpu.memory_space<vmem>>, vector<1x8x8x8xf32>
    %123 = vector.shape_cast %122 : vector<1x8x8x8xf32> to vector<8x8x8xf32>
    %124 = vector.shape_cast %123 : vector<8x8x8xf32> to vector<64x8xf32>
    %125 = arith.truncf %124 : vector<64x8xf32> to vector<64x8xbf16>
    %c64_126 = arith.constant 64 : index
    %c24_127 = arith.constant 24 : index
    %126 = vector.load %arg10[%c64_126, %c24_127] : memref<128x72xbf16, #tpu.memory_space<vmem>>, vector<64x8xbf16>
    tpu.vector_store %arg10[%c64_126, %c24_127], %125 {strides = array<i32>} : memref<128x72xbf16, #tpu.memory_space<vmem>>, vector<64x8xbf16>,
    %c1_128 = arith.constant 1 : index
    %c1_129 = arith.constant 1 : index
    %c8_130 = arith.constant 8 : index
    %c0_131 = arith.constant 0 : index
    %127 = vector.load %arg9[%c1_128, %c1_129, %c8_130, %c0_131] : memref<2x10x17x8xf32, #tpu.memory_space<vmem>>, vector<1x8x8x8xf32>
    %128 = vector.shape_cast %127 : vector<1x8x8x8xf32> to vector<8x8x8xf32>
    %129 = vector.shape_cast %128 : vector<8x8x8xf32> to vector<64x8xf32>
    %130 = arith.truncf %129 : vector<64x8xf32> to vector<64x8xbf16>
    %c64_132 = arith.constant 64 : index
    %c32_133 = arith.constant 32 : index
    %131 = vector.load %arg10[%c64_132, %c32_133] : memref<128x72xbf16, #tpu.memory_space<vmem>>, vector<64x8xbf16>
    tpu.vector_store %arg10[%c64_132, %c32_133], %130 {strides = array<i32>} : memref<128x72xbf16, #tpu.memory_space<vmem>>, vector<64x8xbf16>,
    %c1_134 = arith.constant 1 : index
    %c1_135 = arith.constant 1 : index
    %c9_136 = arith.constant 9 : index
    %c0_137 = arith.constant 0 : index
    %132 = vector.load %arg9[%c1_134, %c1_135, %c9_136, %c0_137] : memref<2x10x17x8xf32, #tpu.memory_space<vmem>>, vector<1x8x8x8xf32>
    %133 = vector.shape_cast %132 : vector<1x8x8x8xf32> to vector<8x8x8xf32>
    %134 = vector.shape_cast %133 : vector<8x8x8xf32> to vector<64x8xf32>
    %135 = arith.truncf %134 : vector<64x8xf32> to vector<64x8xbf16>
    %c64_138 = arith.constant 64 : index
    %c40_139 = arith.constant 40 : index
    %136 = vector.load %arg10[%c64_138, %c40_139] : memref<128x72xbf16, #tpu.memory_space<vmem>>, vector<64x8xbf16>
    tpu.vector_store %arg10[%c64_138, %c40_139], %135 {strides = array<i32>} : memref<128x72xbf16, #tpu.memory_space<vmem>>, vector<64x8xbf16>,
    %c1_140 = arith.constant 1 : index
    %c2_141 = arith.constant 2 : index
    %c7_142 = arith.constant 7 : index
    %c0_143 = arith.constant 0 : index
    %137 = vector.load %arg9[%c1_140, %c2_141, %c7_142, %c0_143] : memref<2x10x17x8xf32, #tpu.memory_space<vmem>>, vector<1x8x8x8xf32>
    %138 = vector.shape_cast %137 : vector<1x8x8x8xf32> to vector<8x8x8xf32>
    %139 = vector.shape_cast %138 : vector<8x8x8xf32> to vector<64x8xf32>
    %140 = arith.truncf %139 : vector<64x8xf32> to vector<64x8xbf16>
    %c64_144 = arith.constant 64 : index
    %c48_145 = arith.constant 48 : index
    %141 = vector.load %arg10[%c64_144, %c48_145] : memref<128x72xbf16, #tpu.memory_space<vmem>>, vector<64x8xbf16>
    tpu.vector_store %arg10[%c64_144, %c48_145], %140 {strides = array<i32>} : memref<128x72xbf16, #tpu.memory_space<vmem>>, vector<64x8xbf16>,
    %c1_146 = arith.constant 1 : index
    %c2_147 = arith.constant 2 : index
    %c8_148 = arith.constant 8 : index
    %c0_149 = arith.constant 0 : index
    %142 = vector.load %arg9[%c1_146, %c2_147, %c8_148, %c0_149] : memref<2x10x17x8xf32, #tpu.memory_space<vmem>>, vector<1x8x8x8xf32>
    %143 = vector.shape_cast %142 : vector<1x8x8x8xf32> to vector<8x8x8xf32>
    %144 = vector.shape_cast %143 : vector<8x8x8xf32> to vector<64x8xf32>
    %145 = arith.truncf %144 : vector<64x8xf32> to vector<64x8xbf16>
    %c64_150 = arith.constant 64 : index
    %c56_151 = arith.constant 56 : index
    %146 = vector.load %arg10[%c64_150, %c56_151] : memref<128x72xbf16, #tpu.memory_space<vmem>>, vector<64x8xbf16>
    tpu.vector_store %arg10[%c64_150, %c56_151], %145 {strides = array<i32>} : memref<128x72xbf16, #tpu.memory_space<vmem>>, vector<64x8xbf16>,
    %c1_152 = arith.constant 1 : index
    %c2_153 = arith.constant 2 : index
    %c9_154 = arith.constant 9 : index
    %c0_155 = arith.constant 0 : index
    %147 = vector.load %arg9[%c1_152, %c2_153, %c9_154, %c0_155] : memref<2x10x17x8xf32, #tpu.memory_space<vmem>>, vector<1x8x8x8xf32>
    %148 = vector.shape_cast %147 : vector<1x8x8x8xf32> to vector<8x8x8xf32>
    %149 = vector.shape_cast %148 : vector<8x8x8xf32> to vector<64x8xf32>
    %150 = arith.truncf %149 : vector<64x8xf32> to vector<64x8xbf16>
    %c64_156 = arith.constant 64 : index
    %c64_157 = arith.constant 64 : index
    %151 = vector.load %arg10[%c64_156, %c64_157] : memref<128x72xbf16, #tpu.memory_space<vmem>>, vector<64x8xbf16>
    tpu.vector_store %arg10[%c64_156, %c64_157], %150 {strides = array<i32>} : memref<128x72xbf16, #tpu.memory_space<vmem>>, vector<64x8xbf16>,
    %c0_158 = arith.constant 0 : index
    %c0_159 = arith.constant 0 : index
    %152 = vector.load %arg10[%c0_158, %c0_159] : memref<128x72xbf16, #tpu.memory_space<vmem>>, vector<128x72xbf16>
    %c0_160 = arith.constant 0 : index
    %c0_161 = arith.constant 0 : index
    %153 = vector.load %arg4[%c0_160, %c0_161] : memref<72x8xbf16, #tpu.memory_space<vmem>>, vector<72x8xbf16>
    %cst_162 = arith.constant dense<0.000000e+00> : vector<128x8xf32>
    %154 = tpu.matmul %152, %153, %cst_162 {dimension_numbers = #tpu.dot_dimension_numbers<[1], [0], [0], [1], [0, 0, 1, 1], [], []>} : vector<128x72xbf16>, vector<72x8xbf16>, vector<128x8xf32> -> vector<128x8xf32>
    %c0_163 = arith.constant 0 : index
    %c0_164 = arith.constant 0 : index
    %155 = vector.load %arg5[%c0_163, %c0_164] : memref<1x8xf32, #tpu.memory_space<vmem>>, vector<1x8xf32>
    %156 = vector.broadcast %155 : vector<1x8xf32> to vector<128x8xf32>
    %157 = arith.addf %154, %156 : vector<128x8xf32>
    %158 = vector.extract_strided_slice %157 {offsets = [0, 0], sizes = [64, 8], strides = [1, 1]} : vector<128x8xf32> to vector<64x8xf32>
    %159 = vector.shape_cast %158 : vector<64x8xf32> to vector<8x8x8xf32>
    %160 = arith.truncf %159 : vector<8x8x8xf32> to vector<8x8x8xbf16>
    %c0_165 = arith.constant 0 : index
    %c0_166 = arith.constant 0 : index
    %c0_167 = arith.constant 0 : index
    %c0_168 = arith.constant 0 : index
    %161 = vector.load %arg6[%c0_165, %c0_166, %c0_167, %c0_168] : memref<2x8x8x8xbf16, #tpu.memory_space<vmem>>, vector<1x8x8x8xbf16>
    %162 = vector.shape_cast %161 : vector<1x8x8x8xbf16> to vector<8x8x8xbf16>
    %163 = vector.shape_cast %160 : vector<8x8x8xbf16> to vector<1x8x8x8xbf16>
    tpu.vector_store %arg6[%c0_165, %c0_166, %c0_167, %c0_168], %163 {strides = array<i32>} : memref<2x8x8x8xbf16, #tpu.memory_space<vmem>>, vector<1x8x8x8xbf16>,
    %164 = vector.extract_strided_slice %157 {offsets = [64, 0], sizes = [64, 8], strides = [1, 1]} : vector<128x8xf32> to vector<64x8xf32>
    %165 = vector.shape_cast %164 : vector<64x8xf32> to vector<8x8x8xf32>
    %166 = arith.truncf %165 : vector<8x8x8xf32> to vector<8x8x8xbf16>
    %c1_169 = arith.constant 1 : index
    %c0_170 = arith.constant 0 : index
    %c0_171 = arith.constant 0 : index
    %c0_172 = arith.constant 0 : index
    %167 = vector.load %arg6[%c1_169, %c0_170, %c0_171, %c0_172] : memref<2x8x8x8xbf16, #tpu.memory_space<vmem>>, vector<1x8x8x8xbf16>
    %168 = vector.shape_cast %167 : vector<1x8x8x8xbf16> to vector<8x8x8xbf16>
    %169 = vector.shape_cast %166 : vector<8x8x8xbf16> to vector<1x8x8x8xbf16>
    tpu.vector_store %arg6[%c1_169, %c0_170, %c0_171, %c0_172], %169 {strides = array<i32>} : memref<2x8x8x8xbf16, #tpu.memory_space<vmem>>, vector<1x8x8x8xbf16>,
    %cst_173 = arith.constant dense<0.000000e+00> : vector<8xf32>
    %170 = vector.multi_reduction <add>, %157, %cst_173 [0] : vector<128x8xf32> to vector<8xf32>
    %171 = vector.shape_cast %170 : vector<8xf32> to vector<1x8xf32>
    %172 = arith.addf %60, %171 : vector<1x8xf32>
    %173 = arith.mulf %157, %157 : vector<128x8xf32>
    %cst_174 = arith.constant dense<0.000000e+00> : vector<8xf32>
    %174 = vector.multi_reduction <add>, %173, %cst_174 [0] : vector<128x8xf32> to vector<8xf32>
    %175 = vector.shape_cast %174 : vector<8xf32> to vector<1x8xf32>
    %176 = arith.addf %61, %175 : vector<1x8xf32>
    %c0_175 = arith.constant 0 : index
    %c0_176 = arith.constant 0 : index
    %177 = vector.load %arg7[%c0_175, %c0_176] : memref<1x8xf32, #tpu.memory_space<vmem>>, vector<1x8xf32>
    tpu.vector_store %arg7[%c0_175, %c0_176], %172 {strides = array<i32>} : memref<1x8xf32, #tpu.memory_space<vmem>>, vector<1x8xf32>,
    %c0_177 = arith.constant 0 : index
    %c0_178 = arith.constant 0 : index
    %178 = vector.load %arg8[%c0_177, %c0_178] : memref<1x8xf32, #tpu.memory_space<vmem>>, vector<1x8xf32>
    tpu.vector_store %arg8[%c0_177, %c0_178], %176 {strides = array<i32>} : memref<1x8xf32, #tpu.memory_space<vmem>>, vector<1x8xf32>,
    return
  }
  func.func @transform_0(%arg0: i32) -> (i32, i32, i32, i32) {
    %c0_i32 = arith.constant 0 : i32
    %c0_i32_0 = arith.constant 0 : i32
    %c0_i32_1 = arith.constant 0 : i32
    %c0_i32_2 = arith.constant 0 : i32
    return %arg0, %c0_i32, %c0_i32_0, %c0_i32_1 : i32, i32, i32, i32
  }
  func.func @transform_1(%arg0: i32) -> (i32, i32) {
    %c0_i32 = arith.constant 0 : i32
    %c0_i32_0 = arith.constant 0 : i32
    %c0_i32_1 = arith.constant 0 : i32
    return %c0_i32, %c0_i32_0 : i32, i32
  }
  func.func @transform_2(%arg0: i32) -> (i32, i32) {
    %c0_i32 = arith.constant 0 : i32
    %c0_i32_0 = arith.constant 0 : i32
    %c0_i32_1 = arith.constant 0 : i32
    return %c0_i32, %c0_i32_0 : i32, i32
  }
  func.func @transform_3(%arg0: i32) -> (i32, i32) {
    %c0_i32 = arith.constant 0 : i32
    %c0_i32_0 = arith.constant 0 : i32
    %c0_i32_1 = arith.constant 0 : i32
    return %c0_i32, %c0_i32_0 : i32, i32
  }
  func.func @transform_4(%arg0: i32) -> (i32, i32) {
    %c0_i32 = arith.constant 0 : i32
    %c0_i32_0 = arith.constant 0 : i32
    %c0_i32_1 = arith.constant 0 : i32
    return %c0_i32, %c0_i32_0 : i32, i32
  }
  func.func @transform_5(%arg0: i32) -> (i32, i32, i32, i32) {
    %c0_i32 = arith.constant 0 : i32
    %c0_i32_0 = arith.constant 0 : i32
    %c0_i32_1 = arith.constant 0 : i32
    %c0_i32_2 = arith.constant 0 : i32
    return %arg0, %c0_i32, %c0_i32_0, %c0_i32_1 : i32, i32, i32, i32
  }
  func.func @transform_6(%arg0: i32) -> (i32, i32) {
    %c0_i32 = arith.constant 0 : i32
    %c0_i32_0 = arith.constant 0 : i32
    return %arg0, %c0_i32 : i32, i32
  }
  func.func @transform_7(%arg0: i32) -> (i32, i32) {
    %c0_i32 = arith.constant 0 : i32
    %c0_i32_0 = arith.constant 0 : i32
    return %arg0, %c0_i32 : i32, i32
  }
}

module attributes {stable_mosaic.version = 11 : i64} {
  func.func @pool_conv1_kernel(%arg0: i32, %arg1: memref<2x8x2x8x8xf32, #tpu.memory_space<vmem>>, %arg2: memref<36x8xbf16, #tpu.memory_space<vmem>>, %arg3: memref<1x8xf32, #tpu.memory_space<vmem>>, %arg4: memref<2x8x8x8xbf16, #tpu.memory_space<vmem>>, %arg5: memref<1x8xf32, #tpu.memory_space<vmem>>, %arg6: memref<1x8xf32, #tpu.memory_space<vmem>>, %arg7: memref<2x10x17x4xf32, #tpu.memory_space<vmem>>, %arg8: memref<128x36xbf16, #tpu.memory_space<vmem>>) attributes {dimension_semantics = [#tpu.dimension_semantics<parallel>], iteration_bounds = array<i64: 1>, scalar_prefetch = 0 : i64, scratch_operands = 2 : i64, tpu.core_type = #tpu.core_type<tc>, window_params = [{transform_indices = @transform_0, window_bounds = array<i64: 2, 8, 2, 8, 8>}, {pipeline_mode = #tpu.pipeline_mode<synchronous>, transform_indices = @transform_1, window_bounds = array<i64: 36, 8>}, {pipeline_mode = #tpu.pipeline_mode<synchronous>, transform_indices = @transform_2, window_bounds = array<i64: 1, 8>}, {transform_indices = @transform_3, window_bounds = array<i64: 2, 8, 8, 8>}, {transform_indices = @transform_4, window_bounds = array<i64: 1, 8>}, {transform_indices = @transform_5, window_bounds = array<i64: 1, 8>}]} {
    %c0 = arith.constant 0 : index
    %c0_0 = arith.constant 0 : index
    %c0_1 = arith.constant 0 : index
    %c0_2 = arith.constant 0 : index
    %c0_3 = arith.constant 0 : index
    %0 = vector.load %arg1[%c0, %c0_0, %c0_1, %c0_2, %c0_3] : memref<2x8x2x8x8xf32, #tpu.memory_space<vmem>>, vector<1x8x1x8x8xf32>
    %1 = vector.shape_cast %0 : vector<1x8x1x8x8xf32> to vector<8x8x8xf32>
    %c0_4 = arith.constant 0 : index
    %c0_5 = arith.constant 0 : index
    %c1 = arith.constant 1 : index
    %c0_6 = arith.constant 0 : index
    %c0_7 = arith.constant 0 : index
    %2 = vector.load %arg1[%c0_4, %c0_5, %c1, %c0_6, %c0_7] : memref<2x8x2x8x8xf32, #tpu.memory_space<vmem>>, vector<1x8x1x8x8xf32>
    %3 = vector.shape_cast %2 : vector<1x8x1x8x8xf32> to vector<8x8x8xf32>
    %4 = arith.maximumf %1, %3 : vector<8x8x8xf32>
    %5 = vector.extract_strided_slice %4 {offsets = [0, 0, 0], sizes = [8, 8, 4], strides = [1, 1, 1]} : vector<8x8x8xf32> to vector<8x8x4xf32>
    %6 = vector.extract_strided_slice %4 {offsets = [0, 0, 4], sizes = [8, 8, 4], strides = [1, 1, 1]} : vector<8x8x8xf32> to vector<8x8x4xf32>
    %7 = arith.maximumf %5, %6 : vector<8x8x4xf32>
    %cst = arith.constant 0.000000e+00 : f32
    %8 = vector.broadcast %cst : f32 to vector<1x17x4xf32>
    %c0_8 = arith.constant 0 : index
    %c0_9 = arith.constant 0 : index
    %c0_10 = arith.constant 0 : index
    %c0_11 = arith.constant 0 : index
    %9 = vector.load %arg7[%c0_8, %c0_9, %c0_10, %c0_11] : memref<2x10x17x4xf32, #tpu.memory_space<vmem>>, vector<1x1x17x4xf32>
    %10 = vector.shape_cast %9 : vector<1x1x17x4xf32> to vector<1x17x4xf32>
    %11 = vector.shape_cast %8 : vector<1x17x4xf32> to vector<1x1x17x4xf32>
    tpu.vector_store %arg7[%c0_8, %c0_9, %c0_10, %c0_11], %11 {strides = array<i32>} : memref<2x10x17x4xf32, #tpu.memory_space<vmem>>, vector<1x1x17x4xf32>,
    %cst_12 = arith.constant 0.000000e+00 : f32
    %12 = vector.broadcast %cst_12 : f32 to vector<1x17x4xf32>
    %c0_13 = arith.constant 0 : index
    %c9 = arith.constant 9 : index
    %c0_14 = arith.constant 0 : index
    %c0_15 = arith.constant 0 : index
    %13 = vector.load %arg7[%c0_13, %c9, %c0_14, %c0_15] : memref<2x10x17x4xf32, #tpu.memory_space<vmem>>, vector<1x1x17x4xf32>
    %14 = vector.shape_cast %13 : vector<1x1x17x4xf32> to vector<1x17x4xf32>
    %15 = vector.shape_cast %12 : vector<1x17x4xf32> to vector<1x1x17x4xf32>
    tpu.vector_store %arg7[%c0_13, %c9, %c0_14, %c0_15], %15 {strides = array<i32>} : memref<2x10x17x4xf32, #tpu.memory_space<vmem>>, vector<1x1x17x4xf32>,
    %cst_16 = arith.constant 0.000000e+00 : f32
    %16 = vector.broadcast %cst_16 : f32 to vector<10x8x4xf32>
    %c0_17 = arith.constant 0 : index
    %c0_18 = arith.constant 0 : index
    %c0_19 = arith.constant 0 : index
    %c0_20 = arith.constant 0 : index
    %17 = vector.load %arg7[%c0_17, %c0_18, %c0_19, %c0_20] : memref<2x10x17x4xf32, #tpu.memory_space<vmem>>, vector<1x10x8x4xf32>
    %18 = vector.shape_cast %17 : vector<1x10x8x4xf32> to vector<10x8x4xf32>
    %19 = vector.shape_cast %16 : vector<10x8x4xf32> to vector<1x10x8x4xf32>
    tpu.vector_store %arg7[%c0_17, %c0_18, %c0_19, %c0_20], %19 {strides = array<i32>} : memref<2x10x17x4xf32, #tpu.memory_space<vmem>>, vector<1x10x8x4xf32>,
    %cst_21 = arith.constant 0.000000e+00 : f32
    %20 = vector.broadcast %cst_21 : f32 to vector<10x1x4xf32>
    %c0_22 = arith.constant 0 : index
    %c0_23 = arith.constant 0 : index
    %c16 = arith.constant 16 : index
    %c0_24 = arith.constant 0 : index
    %21 = vector.load %arg7[%c0_22, %c0_23, %c16, %c0_24] : memref<2x10x17x4xf32, #tpu.memory_space<vmem>>, vector<1x10x1x4xf32>
    %22 = vector.shape_cast %21 : vector<1x10x1x4xf32> to vector<10x1x4xf32>
    %23 = vector.shape_cast %20 : vector<10x1x4xf32> to vector<1x10x1x4xf32>
    tpu.vector_store %arg7[%c0_22, %c0_23, %c16, %c0_24], %23 {strides = array<i32>} : memref<2x10x17x4xf32, #tpu.memory_space<vmem>>, vector<1x10x1x4xf32>,
    %c0_25 = arith.constant 0 : index
    %c1_26 = arith.constant 1 : index
    %c8 = arith.constant 8 : index
    %c0_27 = arith.constant 0 : index
    %24 = vector.load %arg7[%c0_25, %c1_26, %c8, %c0_27] : memref<2x10x17x4xf32, #tpu.memory_space<vmem>>, vector<1x8x8x4xf32>
    %25 = vector.shape_cast %24 : vector<1x8x8x4xf32> to vector<8x8x4xf32>
    %26 = vector.shape_cast %7 : vector<8x8x4xf32> to vector<1x8x8x4xf32>
    tpu.vector_store %arg7[%c0_25, %c1_26, %c8, %c0_27], %26 {strides = array<i32>} : memref<2x10x17x4xf32, #tpu.memory_space<vmem>>, vector<1x8x8x4xf32>,
    %c1_28 = arith.constant 1 : index
    %c0_29 = arith.constant 0 : index
    %c0_30 = arith.constant 0 : index
    %c0_31 = arith.constant 0 : index
    %c0_32 = arith.constant 0 : index
    %27 = vector.load %arg1[%c1_28, %c0_29, %c0_30, %c0_31, %c0_32] : memref<2x8x2x8x8xf32, #tpu.memory_space<vmem>>, vector<1x8x1x8x8xf32>
    %28 = vector.shape_cast %27 : vector<1x8x1x8x8xf32> to vector<8x8x8xf32>
    %c1_33 = arith.constant 1 : index
    %c0_34 = arith.constant 0 : index
    %c1_35 = arith.constant 1 : index
    %c0_36 = arith.constant 0 : index
    %c0_37 = arith.constant 0 : index
    %29 = vector.load %arg1[%c1_33, %c0_34, %c1_35, %c0_36, %c0_37] : memref<2x8x2x8x8xf32, #tpu.memory_space<vmem>>, vector<1x8x1x8x8xf32>
    %30 = vector.shape_cast %29 : vector<1x8x1x8x8xf32> to vector<8x8x8xf32>
    %31 = arith.maximumf %28, %30 : vector<8x8x8xf32>
    %32 = vector.extract_strided_slice %31 {offsets = [0, 0, 0], sizes = [8, 8, 4], strides = [1, 1, 1]} : vector<8x8x8xf32> to vector<8x8x4xf32>
    %33 = vector.extract_strided_slice %31 {offsets = [0, 0, 4], sizes = [8, 8, 4], strides = [1, 1, 1]} : vector<8x8x8xf32> to vector<8x8x4xf32>
    %34 = arith.maximumf %32, %33 : vector<8x8x4xf32>
    %cst_38 = arith.constant 0.000000e+00 : f32
    %35 = vector.broadcast %cst_38 : f32 to vector<1x17x4xf32>
    %c1_39 = arith.constant 1 : index
    %c0_40 = arith.constant 0 : index
    %c0_41 = arith.constant 0 : index
    %c0_42 = arith.constant 0 : index
    %36 = vector.load %arg7[%c1_39, %c0_40, %c0_41, %c0_42] : memref<2x10x17x4xf32, #tpu.memory_space<vmem>>, vector<1x1x17x4xf32>
    %37 = vector.shape_cast %36 : vector<1x1x17x4xf32> to vector<1x17x4xf32>
    %38 = vector.shape_cast %35 : vector<1x17x4xf32> to vector<1x1x17x4xf32>
    tpu.vector_store %arg7[%c1_39, %c0_40, %c0_41, %c0_42], %38 {strides = array<i32>} : memref<2x10x17x4xf32, #tpu.memory_space<vmem>>, vector<1x1x17x4xf32>,
    %cst_43 = arith.constant 0.000000e+00 : f32
    %39 = vector.broadcast %cst_43 : f32 to vector<1x17x4xf32>
    %c1_44 = arith.constant 1 : index
    %c9_45 = arith.constant 9 : index
    %c0_46 = arith.constant 0 : index
    %c0_47 = arith.constant 0 : index
    %40 = vector.load %arg7[%c1_44, %c9_45, %c0_46, %c0_47] : memref<2x10x17x4xf32, #tpu.memory_space<vmem>>, vector<1x1x17x4xf32>
    %41 = vector.shape_cast %40 : vector<1x1x17x4xf32> to vector<1x17x4xf32>
    %42 = vector.shape_cast %39 : vector<1x17x4xf32> to vector<1x1x17x4xf32>
    tpu.vector_store %arg7[%c1_44, %c9_45, %c0_46, %c0_47], %42 {strides = array<i32>} : memref<2x10x17x4xf32, #tpu.memory_space<vmem>>, vector<1x1x17x4xf32>,
    %cst_48 = arith.constant 0.000000e+00 : f32
    %43 = vector.broadcast %cst_48 : f32 to vector<10x8x4xf32>
    %c1_49 = arith.constant 1 : index
    %c0_50 = arith.constant 0 : index
    %c0_51 = arith.constant 0 : index
    %c0_52 = arith.constant 0 : index
    %44 = vector.load %arg7[%c1_49, %c0_50, %c0_51, %c0_52] : memref<2x10x17x4xf32, #tpu.memory_space<vmem>>, vector<1x10x8x4xf32>
    %45 = vector.shape_cast %44 : vector<1x10x8x4xf32> to vector<10x8x4xf32>
    %46 = vector.shape_cast %43 : vector<10x8x4xf32> to vector<1x10x8x4xf32>
    tpu.vector_store %arg7[%c1_49, %c0_50, %c0_51, %c0_52], %46 {strides = array<i32>} : memref<2x10x17x4xf32, #tpu.memory_space<vmem>>, vector<1x10x8x4xf32>,
    %cst_53 = arith.constant 0.000000e+00 : f32
    %47 = vector.broadcast %cst_53 : f32 to vector<10x1x4xf32>
    %c1_54 = arith.constant 1 : index
    %c0_55 = arith.constant 0 : index
    %c16_56 = arith.constant 16 : index
    %c0_57 = arith.constant 0 : index
    %48 = vector.load %arg7[%c1_54, %c0_55, %c16_56, %c0_57] : memref<2x10x17x4xf32, #tpu.memory_space<vmem>>, vector<1x10x1x4xf32>
    %49 = vector.shape_cast %48 : vector<1x10x1x4xf32> to vector<10x1x4xf32>
    %50 = vector.shape_cast %47 : vector<10x1x4xf32> to vector<1x10x1x4xf32>
    tpu.vector_store %arg7[%c1_54, %c0_55, %c16_56, %c0_57], %50 {strides = array<i32>} : memref<2x10x17x4xf32, #tpu.memory_space<vmem>>, vector<1x10x1x4xf32>,
    %c1_58 = arith.constant 1 : index
    %c1_59 = arith.constant 1 : index
    %c8_60 = arith.constant 8 : index
    %c0_61 = arith.constant 0 : index
    %51 = vector.load %arg7[%c1_58, %c1_59, %c8_60, %c0_61] : memref<2x10x17x4xf32, #tpu.memory_space<vmem>>, vector<1x8x8x4xf32>
    %52 = vector.shape_cast %51 : vector<1x8x8x4xf32> to vector<8x8x4xf32>
    %53 = vector.shape_cast %34 : vector<8x8x4xf32> to vector<1x8x8x4xf32>
    tpu.vector_store %arg7[%c1_58, %c1_59, %c8_60, %c0_61], %53 {strides = array<i32>} : memref<2x10x17x4xf32, #tpu.memory_space<vmem>>, vector<1x8x8x4xf32>,
    %cst_62 = arith.constant 0.000000e+00 : f32
    %54 = vector.broadcast %cst_62 : f32 to vector<1x8xf32>
    %cst_63 = arith.constant 0.000000e+00 : f32
    %55 = vector.broadcast %cst_63 : f32 to vector<1x8xf32>
    %c0_64 = arith.constant 0 : index
    %c0_65 = arith.constant 0 : index
    %c7 = arith.constant 7 : index
    %c0_66 = arith.constant 0 : index
    %56 = vector.load %arg7[%c0_64, %c0_65, %c7, %c0_66] : memref<2x10x17x4xf32, #tpu.memory_space<vmem>>, vector<1x8x8x4xf32>
    %57 = vector.shape_cast %56 : vector<1x8x8x4xf32> to vector<8x8x4xf32>
    %58 = vector.shape_cast %57 : vector<8x8x4xf32> to vector<64x4xf32>
    %59 = arith.truncf %58 : vector<64x4xf32> to vector<64x4xbf16>
    %c0_67 = arith.constant 0 : index
    %c0_68 = arith.constant 0 : index
    %60 = vector.load %arg8[%c0_67, %c0_68] : memref<128x36xbf16, #tpu.memory_space<vmem>>, vector<64x4xbf16>
    tpu.vector_store %arg8[%c0_67, %c0_68], %59 {strides = array<i32>} : memref<128x36xbf16, #tpu.memory_space<vmem>>, vector<64x4xbf16>,
    %c0_69 = arith.constant 0 : index
    %c0_70 = arith.constant 0 : index
    %c8_71 = arith.constant 8 : index
    %c0_72 = arith.constant 0 : index
    %61 = vector.load %arg7[%c0_69, %c0_70, %c8_71, %c0_72] : memref<2x10x17x4xf32, #tpu.memory_space<vmem>>, vector<1x8x8x4xf32>
    %62 = vector.shape_cast %61 : vector<1x8x8x4xf32> to vector<8x8x4xf32>
    %63 = vector.shape_cast %62 : vector<8x8x4xf32> to vector<64x4xf32>
    %64 = arith.truncf %63 : vector<64x4xf32> to vector<64x4xbf16>
    %c0_73 = arith.constant 0 : index
    %c4 = arith.constant 4 : index
    %65 = vector.load %arg8[%c0_73, %c4] : memref<128x36xbf16, #tpu.memory_space<vmem>>, vector<64x4xbf16>
    tpu.vector_store %arg8[%c0_73, %c4], %64 {strides = array<i32>} : memref<128x36xbf16, #tpu.memory_space<vmem>>, vector<64x4xbf16>,
    %c0_74 = arith.constant 0 : index
    %c0_75 = arith.constant 0 : index
    %c9_76 = arith.constant 9 : index
    %c0_77 = arith.constant 0 : index
    %66 = vector.load %arg7[%c0_74, %c0_75, %c9_76, %c0_77] : memref<2x10x17x4xf32, #tpu.memory_space<vmem>>, vector<1x8x8x4xf32>
    %67 = vector.shape_cast %66 : vector<1x8x8x4xf32> to vector<8x8x4xf32>
    %68 = vector.shape_cast %67 : vector<8x8x4xf32> to vector<64x4xf32>
    %69 = arith.truncf %68 : vector<64x4xf32> to vector<64x4xbf16>
    %c0_78 = arith.constant 0 : index
    %c8_79 = arith.constant 8 : index
    %70 = vector.load %arg8[%c0_78, %c8_79] : memref<128x36xbf16, #tpu.memory_space<vmem>>, vector<64x4xbf16>
    tpu.vector_store %arg8[%c0_78, %c8_79], %69 {strides = array<i32>} : memref<128x36xbf16, #tpu.memory_space<vmem>>, vector<64x4xbf16>,
    %c0_80 = arith.constant 0 : index
    %c1_81 = arith.constant 1 : index
    %c7_82 = arith.constant 7 : index
    %c0_83 = arith.constant 0 : index
    %71 = vector.load %arg7[%c0_80, %c1_81, %c7_82, %c0_83] : memref<2x10x17x4xf32, #tpu.memory_space<vmem>>, vector<1x8x8x4xf32>
    %72 = vector.shape_cast %71 : vector<1x8x8x4xf32> to vector<8x8x4xf32>
    %73 = vector.shape_cast %72 : vector<8x8x4xf32> to vector<64x4xf32>
    %74 = arith.truncf %73 : vector<64x4xf32> to vector<64x4xbf16>
    %c0_84 = arith.constant 0 : index
    %c12 = arith.constant 12 : index
    %75 = vector.load %arg8[%c0_84, %c12] : memref<128x36xbf16, #tpu.memory_space<vmem>>, vector<64x4xbf16>
    tpu.vector_store %arg8[%c0_84, %c12], %74 {strides = array<i32>} : memref<128x36xbf16, #tpu.memory_space<vmem>>, vector<64x4xbf16>,
    %c0_85 = arith.constant 0 : index
    %c1_86 = arith.constant 1 : index
    %c8_87 = arith.constant 8 : index
    %c0_88 = arith.constant 0 : index
    %76 = vector.load %arg7[%c0_85, %c1_86, %c8_87, %c0_88] : memref<2x10x17x4xf32, #tpu.memory_space<vmem>>, vector<1x8x8x4xf32>
    %77 = vector.shape_cast %76 : vector<1x8x8x4xf32> to vector<8x8x4xf32>
    %78 = vector.shape_cast %77 : vector<8x8x4xf32> to vector<64x4xf32>
    %79 = arith.truncf %78 : vector<64x4xf32> to vector<64x4xbf16>
    %c0_89 = arith.constant 0 : index
    %c16_90 = arith.constant 16 : index
    %80 = vector.load %arg8[%c0_89, %c16_90] : memref<128x36xbf16, #tpu.memory_space<vmem>>, vector<64x4xbf16>
    tpu.vector_store %arg8[%c0_89, %c16_90], %79 {strides = array<i32>} : memref<128x36xbf16, #tpu.memory_space<vmem>>, vector<64x4xbf16>,
    %c0_91 = arith.constant 0 : index
    %c1_92 = arith.constant 1 : index
    %c9_93 = arith.constant 9 : index
    %c0_94 = arith.constant 0 : index
    %81 = vector.load %arg7[%c0_91, %c1_92, %c9_93, %c0_94] : memref<2x10x17x4xf32, #tpu.memory_space<vmem>>, vector<1x8x8x4xf32>
    %82 = vector.shape_cast %81 : vector<1x8x8x4xf32> to vector<8x8x4xf32>
    %83 = vector.shape_cast %82 : vector<8x8x4xf32> to vector<64x4xf32>
    %84 = arith.truncf %83 : vector<64x4xf32> to vector<64x4xbf16>
    %c0_95 = arith.constant 0 : index
    %c20 = arith.constant 20 : index
    %85 = vector.load %arg8[%c0_95, %c20] : memref<128x36xbf16, #tpu.memory_space<vmem>>, vector<64x4xbf16>
    tpu.vector_store %arg8[%c0_95, %c20], %84 {strides = array<i32>} : memref<128x36xbf16, #tpu.memory_space<vmem>>, vector<64x4xbf16>,
    %c0_96 = arith.constant 0 : index
    %c2 = arith.constant 2 : index
    %c7_97 = arith.constant 7 : index
    %c0_98 = arith.constant 0 : index
    %86 = vector.load %arg7[%c0_96, %c2, %c7_97, %c0_98] : memref<2x10x17x4xf32, #tpu.memory_space<vmem>>, vector<1x8x8x4xf32>
    %87 = vector.shape_cast %86 : vector<1x8x8x4xf32> to vector<8x8x4xf32>
    %88 = vector.shape_cast %87 : vector<8x8x4xf32> to vector<64x4xf32>
    %89 = arith.truncf %88 : vector<64x4xf32> to vector<64x4xbf16>
    %c0_99 = arith.constant 0 : index
    %c24 = arith.constant 24 : index
    %90 = vector.load %arg8[%c0_99, %c24] : memref<128x36xbf16, #tpu.memory_space<vmem>>, vector<64x4xbf16>
    tpu.vector_store %arg8[%c0_99, %c24], %89 {strides = array<i32>} : memref<128x36xbf16, #tpu.memory_space<vmem>>, vector<64x4xbf16>,
    %c0_100 = arith.constant 0 : index
    %c2_101 = arith.constant 2 : index
    %c8_102 = arith.constant 8 : index
    %c0_103 = arith.constant 0 : index
    %91 = vector.load %arg7[%c0_100, %c2_101, %c8_102, %c0_103] : memref<2x10x17x4xf32, #tpu.memory_space<vmem>>, vector<1x8x8x4xf32>
    %92 = vector.shape_cast %91 : vector<1x8x8x4xf32> to vector<8x8x4xf32>
    %93 = vector.shape_cast %92 : vector<8x8x4xf32> to vector<64x4xf32>
    %94 = arith.truncf %93 : vector<64x4xf32> to vector<64x4xbf16>
    %c0_104 = arith.constant 0 : index
    %c28 = arith.constant 28 : index
    %95 = vector.load %arg8[%c0_104, %c28] : memref<128x36xbf16, #tpu.memory_space<vmem>>, vector<64x4xbf16>
    tpu.vector_store %arg8[%c0_104, %c28], %94 {strides = array<i32>} : memref<128x36xbf16, #tpu.memory_space<vmem>>, vector<64x4xbf16>,
    %c0_105 = arith.constant 0 : index
    %c2_106 = arith.constant 2 : index
    %c9_107 = arith.constant 9 : index
    %c0_108 = arith.constant 0 : index
    %96 = vector.load %arg7[%c0_105, %c2_106, %c9_107, %c0_108] : memref<2x10x17x4xf32, #tpu.memory_space<vmem>>, vector<1x8x8x4xf32>
    %97 = vector.shape_cast %96 : vector<1x8x8x4xf32> to vector<8x8x4xf32>
    %98 = vector.shape_cast %97 : vector<8x8x4xf32> to vector<64x4xf32>
    %99 = arith.truncf %98 : vector<64x4xf32> to vector<64x4xbf16>
    %c0_109 = arith.constant 0 : index
    %c32 = arith.constant 32 : index
    %100 = vector.load %arg8[%c0_109, %c32] : memref<128x36xbf16, #tpu.memory_space<vmem>>, vector<64x4xbf16>
    tpu.vector_store %arg8[%c0_109, %c32], %99 {strides = array<i32>} : memref<128x36xbf16, #tpu.memory_space<vmem>>, vector<64x4xbf16>,
    %c1_110 = arith.constant 1 : index
    %c0_111 = arith.constant 0 : index
    %c7_112 = arith.constant 7 : index
    %c0_113 = arith.constant 0 : index
    %101 = vector.load %arg7[%c1_110, %c0_111, %c7_112, %c0_113] : memref<2x10x17x4xf32, #tpu.memory_space<vmem>>, vector<1x8x8x4xf32>
    %102 = vector.shape_cast %101 : vector<1x8x8x4xf32> to vector<8x8x4xf32>
    %103 = vector.shape_cast %102 : vector<8x8x4xf32> to vector<64x4xf32>
    %104 = arith.truncf %103 : vector<64x4xf32> to vector<64x4xbf16>
    %c64 = arith.constant 64 : index
    %c0_114 = arith.constant 0 : index
    %105 = vector.load %arg8[%c64, %c0_114] : memref<128x36xbf16, #tpu.memory_space<vmem>>, vector<64x4xbf16>
    tpu.vector_store %arg8[%c64, %c0_114], %104 {strides = array<i32>} : memref<128x36xbf16, #tpu.memory_space<vmem>>, vector<64x4xbf16>,
    %c1_115 = arith.constant 1 : index
    %c0_116 = arith.constant 0 : index
    %c8_117 = arith.constant 8 : index
    %c0_118 = arith.constant 0 : index
    %106 = vector.load %arg7[%c1_115, %c0_116, %c8_117, %c0_118] : memref<2x10x17x4xf32, #tpu.memory_space<vmem>>, vector<1x8x8x4xf32>
    %107 = vector.shape_cast %106 : vector<1x8x8x4xf32> to vector<8x8x4xf32>
    %108 = vector.shape_cast %107 : vector<8x8x4xf32> to vector<64x4xf32>
    %109 = arith.truncf %108 : vector<64x4xf32> to vector<64x4xbf16>
    %c64_119 = arith.constant 64 : index
    %c4_120 = arith.constant 4 : index
    %110 = vector.load %arg8[%c64_119, %c4_120] : memref<128x36xbf16, #tpu.memory_space<vmem>>, vector<64x4xbf16>
    tpu.vector_store %arg8[%c64_119, %c4_120], %109 {strides = array<i32>} : memref<128x36xbf16, #tpu.memory_space<vmem>>, vector<64x4xbf16>,
    %c1_121 = arith.constant 1 : index
    %c0_122 = arith.constant 0 : index
    %c9_123 = arith.constant 9 : index
    %c0_124 = arith.constant 0 : index
    %111 = vector.load %arg7[%c1_121, %c0_122, %c9_123, %c0_124] : memref<2x10x17x4xf32, #tpu.memory_space<vmem>>, vector<1x8x8x4xf32>
    %112 = vector.shape_cast %111 : vector<1x8x8x4xf32> to vector<8x8x4xf32>
    %113 = vector.shape_cast %112 : vector<8x8x4xf32> to vector<64x4xf32>
    %114 = arith.truncf %113 : vector<64x4xf32> to vector<64x4xbf16>
    %c64_125 = arith.constant 64 : index
    %c8_126 = arith.constant 8 : index
    %115 = vector.load %arg8[%c64_125, %c8_126] : memref<128x36xbf16, #tpu.memory_space<vmem>>, vector<64x4xbf16>
    tpu.vector_store %arg8[%c64_125, %c8_126], %114 {strides = array<i32>} : memref<128x36xbf16, #tpu.memory_space<vmem>>, vector<64x4xbf16>,
    %c1_127 = arith.constant 1 : index
    %c1_128 = arith.constant 1 : index
    %c7_129 = arith.constant 7 : index
    %c0_130 = arith.constant 0 : index
    %116 = vector.load %arg7[%c1_127, %c1_128, %c7_129, %c0_130] : memref<2x10x17x4xf32, #tpu.memory_space<vmem>>, vector<1x8x8x4xf32>
    %117 = vector.shape_cast %116 : vector<1x8x8x4xf32> to vector<8x8x4xf32>
    %118 = vector.shape_cast %117 : vector<8x8x4xf32> to vector<64x4xf32>
    %119 = arith.truncf %118 : vector<64x4xf32> to vector<64x4xbf16>
    %c64_131 = arith.constant 64 : index
    %c12_132 = arith.constant 12 : index
    %120 = vector.load %arg8[%c64_131, %c12_132] : memref<128x36xbf16, #tpu.memory_space<vmem>>, vector<64x4xbf16>
    tpu.vector_store %arg8[%c64_131, %c12_132], %119 {strides = array<i32>} : memref<128x36xbf16, #tpu.memory_space<vmem>>, vector<64x4xbf16>,
    %c1_133 = arith.constant 1 : index
    %c1_134 = arith.constant 1 : index
    %c8_135 = arith.constant 8 : index
    %c0_136 = arith.constant 0 : index
    %121 = vector.load %arg7[%c1_133, %c1_134, %c8_135, %c0_136] : memref<2x10x17x4xf32, #tpu.memory_space<vmem>>, vector<1x8x8x4xf32>
    %122 = vector.shape_cast %121 : vector<1x8x8x4xf32> to vector<8x8x4xf32>
    %123 = vector.shape_cast %122 : vector<8x8x4xf32> to vector<64x4xf32>
    %124 = arith.truncf %123 : vector<64x4xf32> to vector<64x4xbf16>
    %c64_137 = arith.constant 64 : index
    %c16_138 = arith.constant 16 : index
    %125 = vector.load %arg8[%c64_137, %c16_138] : memref<128x36xbf16, #tpu.memory_space<vmem>>, vector<64x4xbf16>
    tpu.vector_store %arg8[%c64_137, %c16_138], %124 {strides = array<i32>} : memref<128x36xbf16, #tpu.memory_space<vmem>>, vector<64x4xbf16>,
    %c1_139 = arith.constant 1 : index
    %c1_140 = arith.constant 1 : index
    %c9_141 = arith.constant 9 : index
    %c0_142 = arith.constant 0 : index
    %126 = vector.load %arg7[%c1_139, %c1_140, %c9_141, %c0_142] : memref<2x10x17x4xf32, #tpu.memory_space<vmem>>, vector<1x8x8x4xf32>
    %127 = vector.shape_cast %126 : vector<1x8x8x4xf32> to vector<8x8x4xf32>
    %128 = vector.shape_cast %127 : vector<8x8x4xf32> to vector<64x4xf32>
    %129 = arith.truncf %128 : vector<64x4xf32> to vector<64x4xbf16>
    %c64_143 = arith.constant 64 : index
    %c20_144 = arith.constant 20 : index
    %130 = vector.load %arg8[%c64_143, %c20_144] : memref<128x36xbf16, #tpu.memory_space<vmem>>, vector<64x4xbf16>
    tpu.vector_store %arg8[%c64_143, %c20_144], %129 {strides = array<i32>} : memref<128x36xbf16, #tpu.memory_space<vmem>>, vector<64x4xbf16>,
    %c1_145 = arith.constant 1 : index
    %c2_146 = arith.constant 2 : index
    %c7_147 = arith.constant 7 : index
    %c0_148 = arith.constant 0 : index
    %131 = vector.load %arg7[%c1_145, %c2_146, %c7_147, %c0_148] : memref<2x10x17x4xf32, #tpu.memory_space<vmem>>, vector<1x8x8x4xf32>
    %132 = vector.shape_cast %131 : vector<1x8x8x4xf32> to vector<8x8x4xf32>
    %133 = vector.shape_cast %132 : vector<8x8x4xf32> to vector<64x4xf32>
    %134 = arith.truncf %133 : vector<64x4xf32> to vector<64x4xbf16>
    %c64_149 = arith.constant 64 : index
    %c24_150 = arith.constant 24 : index
    %135 = vector.load %arg8[%c64_149, %c24_150] : memref<128x36xbf16, #tpu.memory_space<vmem>>, vector<64x4xbf16>
    tpu.vector_store %arg8[%c64_149, %c24_150], %134 {strides = array<i32>} : memref<128x36xbf16, #tpu.memory_space<vmem>>, vector<64x4xbf16>,
    %c1_151 = arith.constant 1 : index
    %c2_152 = arith.constant 2 : index
    %c8_153 = arith.constant 8 : index
    %c0_154 = arith.constant 0 : index
    %136 = vector.load %arg7[%c1_151, %c2_152, %c8_153, %c0_154] : memref<2x10x17x4xf32, #tpu.memory_space<vmem>>, vector<1x8x8x4xf32>
    %137 = vector.shape_cast %136 : vector<1x8x8x4xf32> to vector<8x8x4xf32>
    %138 = vector.shape_cast %137 : vector<8x8x4xf32> to vector<64x4xf32>
    %139 = arith.truncf %138 : vector<64x4xf32> to vector<64x4xbf16>
    %c64_155 = arith.constant 64 : index
    %c28_156 = arith.constant 28 : index
    %140 = vector.load %arg8[%c64_155, %c28_156] : memref<128x36xbf16, #tpu.memory_space<vmem>>, vector<64x4xbf16>
    tpu.vector_store %arg8[%c64_155, %c28_156], %139 {strides = array<i32>} : memref<128x36xbf16, #tpu.memory_space<vmem>>, vector<64x4xbf16>,
    %c1_157 = arith.constant 1 : index
    %c2_158 = arith.constant 2 : index
    %c9_159 = arith.constant 9 : index
    %c0_160 = arith.constant 0 : index
    %141 = vector.load %arg7[%c1_157, %c2_158, %c9_159, %c0_160] : memref<2x10x17x4xf32, #tpu.memory_space<vmem>>, vector<1x8x8x4xf32>
    %142 = vector.shape_cast %141 : vector<1x8x8x4xf32> to vector<8x8x4xf32>
    %143 = vector.shape_cast %142 : vector<8x8x4xf32> to vector<64x4xf32>
    %144 = arith.truncf %143 : vector<64x4xf32> to vector<64x4xbf16>
    %c64_161 = arith.constant 64 : index
    %c32_162 = arith.constant 32 : index
    %145 = vector.load %arg8[%c64_161, %c32_162] : memref<128x36xbf16, #tpu.memory_space<vmem>>, vector<64x4xbf16>
    tpu.vector_store %arg8[%c64_161, %c32_162], %144 {strides = array<i32>} : memref<128x36xbf16, #tpu.memory_space<vmem>>, vector<64x4xbf16>,
    %c0_163 = arith.constant 0 : index
    %c0_164 = arith.constant 0 : index
    %146 = vector.load %arg8[%c0_163, %c0_164] : memref<128x36xbf16, #tpu.memory_space<vmem>>, vector<128x36xbf16>
    %c0_165 = arith.constant 0 : index
    %c0_166 = arith.constant 0 : index
    %147 = vector.load %arg2[%c0_165, %c0_166] : memref<36x8xbf16, #tpu.memory_space<vmem>>, vector<36x8xbf16>
    %cst_167 = arith.constant dense<0.000000e+00> : vector<128x8xf32>
    %148 = tpu.matmul %146, %147, %cst_167 {dimension_numbers = #tpu.dot_dimension_numbers<[1], [0], [0], [1], [0, 0, 1, 1], [], []>} : vector<128x36xbf16>, vector<36x8xbf16>, vector<128x8xf32> -> vector<128x8xf32>
    %c0_168 = arith.constant 0 : index
    %c0_169 = arith.constant 0 : index
    %149 = vector.load %arg3[%c0_168, %c0_169] : memref<1x8xf32, #tpu.memory_space<vmem>>, vector<1x8xf32>
    %150 = vector.broadcast %149 : vector<1x8xf32> to vector<128x8xf32>
    %151 = arith.addf %148, %150 : vector<128x8xf32>
    %152 = vector.extract_strided_slice %151 {offsets = [0, 0], sizes = [64, 8], strides = [1, 1]} : vector<128x8xf32> to vector<64x8xf32>
    %153 = vector.shape_cast %152 : vector<64x8xf32> to vector<8x8x8xf32>
    %154 = arith.truncf %153 : vector<8x8x8xf32> to vector<8x8x8xbf16>
    %c0_170 = arith.constant 0 : index
    %c0_171 = arith.constant 0 : index
    %c0_172 = arith.constant 0 : index
    %c0_173 = arith.constant 0 : index
    %155 = vector.load %arg4[%c0_170, %c0_171, %c0_172, %c0_173] : memref<2x8x8x8xbf16, #tpu.memory_space<vmem>>, vector<1x8x8x8xbf16>
    %156 = vector.shape_cast %155 : vector<1x8x8x8xbf16> to vector<8x8x8xbf16>
    %157 = vector.shape_cast %154 : vector<8x8x8xbf16> to vector<1x8x8x8xbf16>
    tpu.vector_store %arg4[%c0_170, %c0_171, %c0_172, %c0_173], %157 {strides = array<i32>} : memref<2x8x8x8xbf16, #tpu.memory_space<vmem>>, vector<1x8x8x8xbf16>,
    %158 = vector.extract_strided_slice %151 {offsets = [64, 0], sizes = [64, 8], strides = [1, 1]} : vector<128x8xf32> to vector<64x8xf32>
    %159 = vector.shape_cast %158 : vector<64x8xf32> to vector<8x8x8xf32>
    %160 = arith.truncf %159 : vector<8x8x8xf32> to vector<8x8x8xbf16>
    %c1_174 = arith.constant 1 : index
    %c0_175 = arith.constant 0 : index
    %c0_176 = arith.constant 0 : index
    %c0_177 = arith.constant 0 : index
    %161 = vector.load %arg4[%c1_174, %c0_175, %c0_176, %c0_177] : memref<2x8x8x8xbf16, #tpu.memory_space<vmem>>, vector<1x8x8x8xbf16>
    %162 = vector.shape_cast %161 : vector<1x8x8x8xbf16> to vector<8x8x8xbf16>
    %163 = vector.shape_cast %160 : vector<8x8x8xbf16> to vector<1x8x8x8xbf16>
    tpu.vector_store %arg4[%c1_174, %c0_175, %c0_176, %c0_177], %163 {strides = array<i32>} : memref<2x8x8x8xbf16, #tpu.memory_space<vmem>>, vector<1x8x8x8xbf16>,
    %cst_178 = arith.constant dense<0.000000e+00> : vector<8xf32>
    %164 = vector.multi_reduction <add>, %151, %cst_178 [0] : vector<128x8xf32> to vector<8xf32>
    %165 = vector.shape_cast %164 : vector<8xf32> to vector<1x8xf32>
    %166 = arith.addf %54, %165 : vector<1x8xf32>
    %167 = arith.mulf %151, %151 : vector<128x8xf32>
    %cst_179 = arith.constant dense<0.000000e+00> : vector<8xf32>
    %168 = vector.multi_reduction <add>, %167, %cst_179 [0] : vector<128x8xf32> to vector<8xf32>
    %169 = vector.shape_cast %168 : vector<8xf32> to vector<1x8xf32>
    %170 = arith.addf %55, %169 : vector<1x8xf32>
    %c0_180 = arith.constant 0 : index
    %c0_181 = arith.constant 0 : index
    %171 = vector.load %arg5[%c0_180, %c0_181] : memref<1x8xf32, #tpu.memory_space<vmem>>, vector<1x8xf32>
    tpu.vector_store %arg5[%c0_180, %c0_181], %166 {strides = array<i32>} : memref<1x8xf32, #tpu.memory_space<vmem>>, vector<1x8xf32>,
    %c0_182 = arith.constant 0 : index
    %c0_183 = arith.constant 0 : index
    %172 = vector.load %arg6[%c0_182, %c0_183] : memref<1x8xf32, #tpu.memory_space<vmem>>, vector<1x8xf32>
    tpu.vector_store %arg6[%c0_182, %c0_183], %170 {strides = array<i32>} : memref<1x8xf32, #tpu.memory_space<vmem>>, vector<1x8xf32>,
    return
  }
  func.func @transform_0(%arg0: i32) -> (i32, i32, i32, i32, i32) {
    %c0_i32 = arith.constant 0 : i32
    %c0_i32_0 = arith.constant 0 : i32
    %c0_i32_1 = arith.constant 0 : i32
    %c0_i32_2 = arith.constant 0 : i32
    %c0_i32_3 = arith.constant 0 : i32
    return %arg0, %c0_i32, %c0_i32_0, %c0_i32_1, %c0_i32_2 : i32, i32, i32, i32, i32
  }
  func.func @transform_1(%arg0: i32) -> (i32, i32) {
    %c0_i32 = arith.constant 0 : i32
    %c0_i32_0 = arith.constant 0 : i32
    %c0_i32_1 = arith.constant 0 : i32
    return %c0_i32, %c0_i32_0 : i32, i32
  }
  func.func @transform_2(%arg0: i32) -> (i32, i32) {
    %c0_i32 = arith.constant 0 : i32
    %c0_i32_0 = arith.constant 0 : i32
    %c0_i32_1 = arith.constant 0 : i32
    return %c0_i32, %c0_i32_0 : i32, i32
  }
  func.func @transform_3(%arg0: i32) -> (i32, i32, i32, i32) {
    %c0_i32 = arith.constant 0 : i32
    %c0_i32_0 = arith.constant 0 : i32
    %c0_i32_1 = arith.constant 0 : i32
    %c0_i32_2 = arith.constant 0 : i32
    return %arg0, %c0_i32, %c0_i32_0, %c0_i32_1 : i32, i32, i32, i32
  }
  func.func @transform_4(%arg0: i32) -> (i32, i32) {
    %c0_i32 = arith.constant 0 : i32
    %c0_i32_0 = arith.constant 0 : i32
    return %arg0, %c0_i32 : i32, i32
  }
  func.func @transform_5(%arg0: i32) -> (i32, i32) {
    %c0_i32 = arith.constant 0 : i32
    %c0_i32_0 = arith.constant 0 : i32
    return %arg0, %c0_i32 : i32, i32
  }
}

</mosaic_0001>

<llo_original>
// kernel: down_forward.2
$region0: #{down_forward.2}
  #allocation0 [shape = 'u32[]', space=smem, size = 0x4, offset = 0x4, fixed_abs, tag = 'smem constant byte address 0x4 - core index']
  #allocation1 [shape = 'u32[72,128]{1,0:T(1,128)}', space=vmem, size = 0x9000, scoped, tag = 'internal scratch']
  #allocation2 [shape = 'f32[2,10,17,4]{3,2,1,0:T(8,128)}', space=vmem, size = 0x3c000, scoped, tag = 'scratch operand']
  #allocation3 [shape = 'bf16[128,36]{1,0:T(8,128)(2,1)}', space=vmem, size = 0x8000, scoped, tag = 'scratch operand']
  %s0 = inlined_call_operand.vmem [shape: f32[2,8,2,8,8], index: 0, kind: input, shape index: {}]
  %s1 = inlined_call_operand.vmem [shape: bf16[36,8], index: 1, kind: input, shape index: {}]
  %s2 = inlined_call_operand.vmem [shape: f32[1,8], index: 2, kind: input, shape index: {}]
  %s3 = inlined_call_operand.vmem [shape: bf16[2,8,8,8], index: 3, kind: output, shape index: {0}]
  %s4 = inlined_call_operand.vmem [shape: f32[1,8], index: 4, kind: output, shape index: {1}]
  %s5 = inlined_call_operand.vmem [shape: f32[1,8], index: 5, kind: output, shape index: {2}]
  %6 = xla_tuple %s3, %s4, %s5
  %s7 = sld [smem:[#allocation0]]
  $region38: #{down_forward.2} parent=0
    _
  %s9 = ssub.s32 1, %s7
  %s10 = scalar_select 0, %s9, %s7
  // Predicated region
  $region2: #{down_forward.2} parent=0 // pred_check
    _
  $region3: #{down_forward.2} parent=0 // pred_check_branch
    %12 = sbr.rel (0) target = $region5
  $region4: #{down_forward.2} parent=0 // pred_region
    _
  $region5: #{down_forward.2} parent=0 // pred_fallthru
    _
  // Predicated region
  $region6: #{down_forward.2} parent=0 // pred_check
    _
  $region7: #{down_forward.2} parent=0 // pred_check_branch
    %14 = sbr.rel (0) target = $region9
  $region8: #{down_forward.2} parent=0 // pred_region
    _
  $region9: #{down_forward.2} parent=0 // pred_fallthru
    _
  // Predicated region
  $region10: #{down_forward.2} parent=0 // pred_check
    _
  $region11: #{down_forward.2} parent=0 // pred_check_branch
    %16 = sbr.rel (0) target = $region13
  $region12: #{down_forward.2} parent=0 // pred_region
    _
  $region13: #{down_forward.2} parent=0 // pred_fallthru
    _
  %v18 = vld [vmem:[%s0] sm:$0xff]
  %v19 = vld [vmem:[%s0 + $0x10] sm:$0xff]
  %v20 = vld [vmem:[%s0 + $0x20] sm:$0xff]
  %v21 = vld [vmem:[%s0 + $0x30] sm:$0xff]
  %v22 = vld [vmem:[%s0 + $0x40] sm:$0xff]
  %v23 = vld [vmem:[%s0 + $0x50] sm:$0xff]
  %v24 = vld [vmem:[%s0 + $0x60] sm:$0xff]
  %v25 = vld [vmem:[%s0 + $0x70] sm:$0xff]
  %s26 = scalar_lea.vmem %s0, 8
  %v27 = vld [vmem:[%s26] sm:$0xff]
  %v28 = vld [vmem:[%s26 + $0x10] sm:$0xff]
  %v29 = vld [vmem:[%s26 + $0x20] sm:$0xff]
  %v30 = vld [vmem:[%s26 + $0x30] sm:$0xff]
  %v31 = vld [vmem:[%s26 + $0x40] sm:$0xff]
  %v32 = vld [vmem:[%s26 + $0x50] sm:$0xff]
  %v33 = vld [vmem:[%s26 + $0x60] sm:$0xff]
  %v34 = vld [vmem:[%s26 + $0x70] sm:$0xff]
  %v35 = vmax.f32 %v18, %v27
  %v36 = vmax.f32 %v19, %v28
  %v37 = vmax.f32 %v20, %v29
  %v38 = vmax.f32 %v21, %v30
  %v39 = vmax.f32 %v22, %v31
  %v40 = vmax.f32 %v23, %v32
  %v41 = vmax.f32 %v24, %v33
  %v42 = vmax.f32 %v25, %v34
  %51 = vrot.lane.b32.xlu0 %v35, 124
  %v52 = vpop.permute.xlu0 %51
  %53 = vrot.lane.b32.xlu0 %v36, 124
  %v54 = vpop.permute.xlu0 %53
  %55 = vrot.lane.b32.xlu0 %v37, 124
  %v56 = vpop.permute.xlu0 %55
  %57 = vrot.lane.b32.xlu0 %v38, 124
  %v58 = vpop.permute.xlu0 %57
  %59 = vrot.lane.b32.xlu0 %v39, 124
  %v60 = vpop.permute.xlu0 %59
  %61 = vrot.lane.b32.xlu0 %v40, 124
  %v62 = vpop.permute.xlu0 %61
  %63 = vrot.lane.b32.xlu0 %v41, 124
  %v64 = vpop.permute.xlu0 %63
  %65 = vrot.lane.b32.xlu0 %v42, 124
  %v66 = vpop.permute.xlu0 %65
  %v75 = vmax.f32 %v35, %v52
  %v76 = vmax.f32 %v36, %v54
  %v77 = vmax.f32 %v37, %v56
  %v78 = vmax.f32 %v38, %v58
  %v79 = vmax.f32 %v39, %v60
  %v80 = vmax.f32 %v40, %v62
  %v81 = vmax.f32 %v41, %v64
  %v82 = vmax.f32 %v42, %v66
  %vm83 = vcmask 31744
  %84 = vst.msk [vmem:[#allocation2] sm:$0xff] %vm83, 0.0
  %85 = vst.msk [vmem:[#allocation2 + $0x8] sm:$0xff] %vm83, 0.0
  %vm86 = vcmask 24576
  %87 = vst.msk [vmem:[#allocation2 + $0x10] sm:$0x1] %vm86, 0.0
  %s88 = scalar_lea.vmem [#allocation2], 216
  %89 = vst.msk [vmem:[%s88] sm:$0xff] %vm83, 0.0
  %90 = vst.msk [vmem:[%s88 + $0x8] sm:$0xff] %vm83, 0.0
  %91 = vst.msk [vmem:[%s88 + $0x10] sm:$0x1] %vm86, 0.0
  %92 = vst.msk [vmem:[#allocation2] sm:$0xff] %vm83, 0.0
  %93 = vst.msk [vmem:[#allocation2 + $0x18] sm:$0xff] %vm83, 0.0
  %94 = vst.msk [vmem:[#allocation2 + $0x30] sm:$0xff] %vm83, 0.0
  %95 = vst.msk [vmem:[#allocation2 + $0x48] sm:$0xff] %vm83, 0.0
  %96 = vst.msk [vmem:[#allocation2 + $0x60] sm:$0xff] %vm83, 0.0
  %97 = vst.msk [vmem:[#allocation2 + $0x78] sm:$0xff] %vm83, 0.0
  %98 = vst.msk [vmem:[#allocation2 + $0x90] sm:$0xff] %vm83, 0.0
  %99 = vst.msk [vmem:[#allocation2 + $0xa8] sm:$0xff] %vm83, 0.0
  %100 = vst.msk [vmem:[#allocation2 + $0xc0] sm:$0xff] %vm83, 0.0
  %101 = vst.msk [vmem:[#allocation2 + $0xd8] sm:$0xff] %vm83, 0.0
  %102 = vst.msk [vmem:[#allocation2 + $0x10] sm:$0x1] %vm86, 0.0
  %103 = vst.msk [vmem:[#allocation2 + $0x28] sm:$0x1] %vm86, 0.0
  %104 = vst.msk [vmem:[#allocation2 + $0x40] sm:$0x1] %vm86, 0.0
  %105 = vst.msk [vmem:[#allocation2 + $0x58] sm:$0x1] %vm86, 0.0
  %106 = vst.msk [vmem:[#allocation2 + $0x70] sm:$0x1] %vm86, 0.0
  %107 = vst.msk [vmem:[#allocation2 + $0x88] sm:$0x1] %vm86, 0.0
  %108 = vst.msk [vmem:[#allocation2 + $0xa0] sm:$0x1] %vm86, 0.0
  %109 = vst.msk [vmem:[#allocation2 + $0xb8] sm:$0x1] %vm86, 0.0
  %110 = vst.msk [vmem:[#allocation2 + $0xd0] sm:$0x1] %vm86, 0.0
  %111 = vst.msk [vmem:[#allocation2 + $0xe8] sm:$0x1] %vm86, 0.0
  %s112 = scalar_lea.vmem [#allocation2], 24
  %113 = vst.msk [vmem:[%s112 + $0x8] sm:$0xff] %vm83, %v75
  %114 = vst.msk [vmem:[%s112 + $0x20] sm:$0xff] %vm83, %v76
  %115 = vst.msk [vmem:[%s112 + $0x38] sm:$0xff] %vm83, %v77
  %116 = vst.msk [vmem:[%s112 + $0x50] sm:$0xff] %vm83, %v78
  %117 = vst.msk [vmem:[%s112 + $0x68] sm:$0xff] %vm83, %v79
  %118 = vst.msk [vmem:[%s112 + $0x80] sm:$0xff] %vm83, %v80
  %119 = vst.msk [vmem:[%s112 + $0x98] sm:$0xff] %vm83, %v81
  %120 = vst.msk [vmem:[%s112 + $0xb0] sm:$0xff] %vm83, %v82
  %s121 = scalar_lea.vmem %s0, 128
  %v122 = vld [vmem:[%s121] sm:$0xff]
  %v123 = vld [vmem:[%s121 + $0x10] sm:$0xff]
  %v124 = vld [vmem:[%s121 + $0x20] sm:$0xff]
  %v125 = vld [vmem:[%s121 + $0x30] sm:$0xff]
  %v126 = vld [vmem:[%s121 + $0x40] sm:$0xff]
  %v127 = vld [vmem:[%s121 + $0x50] sm:$0xff]
  %v128 = vld [vmem:[%s121 + $0x60] sm:$0xff]
  %v129 = vld [vmem:[%s121 + $0x70] sm:$0xff]
  %s130 = scalar_lea.vmem %s0, 136
  %v131 = vld [vmem:[%s130] sm:$0xff]
  %v132 = vld [vmem:[%s130 + $0x10] sm:$0xff]
  %v133 = vld [vmem:[%s130 + $0x20] sm:$0xff]
  %v134 = vld [vmem:[%s130 + $0x30] sm:$0xff]
  %v135 = vld [vmem:[%s130 + $0x40] sm:$0xff]
  %v136 = vld [vmem:[%s130 + $0x50] sm:$0xff]
  %v137 = vld [vmem:[%s130 + $0x60] sm:$0xff]
  %v138 = vld [vmem:[%s130 + $0x70] sm:$0xff]
  %v139 = vmax.f32 %v122, %v131
  %v140 = vmax.f32 %v123, %v132
  %v141 = vmax.f32 %v124, %v133
  %v142 = vmax.f32 %v125, %v134
  %v143 = vmax.f32 %v126, %v135
  %v144 = vmax.f32 %v127, %v136
  %v145 = vmax.f32 %v128, %v137
  %v146 = vmax.f32 %v129, %v138
  %155 = vrot.lane.b32.xlu0 %v139, 124
  %v156 = vpop.permute.xlu0 %155
  %157 = vrot.lane.b32.xlu0 %v140, 124
  %v158 = vpop.permute.xlu0 %157
  %159 = vrot.lane.b32.xlu0 %v141, 124
  %v160 = vpop.permute.xlu0 %159
  %161 = vrot.lane.b32.xlu0 %v142, 124
  %v162 = vpop.permute.xlu0 %161
  %163 = vrot.lane.b32.xlu0 %v143, 124
  %v164 = vpop.permute.xlu0 %163
  %165 = vrot.lane.b32.xlu0 %v144, 124
  %v166 = vpop.permute.xlu0 %165
  %167 = vrot.lane.b32.xlu0 %v145, 124
  %v168 = vpop.permute.xlu0 %167
  %169 = vrot.lane.b32.xlu0 %v146, 124
  %v170 = vpop.permute.xlu0 %169
  %v179 = vmax.f32 %v139, %v156
  %v180 = vmax.f32 %v140, %v158
  %v181 = vmax.f32 %v141, %v160
  %v182 = vmax.f32 %v142, %v162
  %v183 = vmax.f32 %v143, %v164
  %v184 = vmax.f32 %v144, %v166
  %v185 = vmax.f32 %v145, %v168
  %v186 = vmax.f32 %v146, %v170
  %s187 = scalar_lea.vmem [#allocation2], 240
  %188 = vst.msk [vmem:[%s187] sm:$0xff] %vm83, 0.0
  %189 = vst.msk [vmem:[%s187 + $0x8] sm:$0xff] %vm83, 0.0
  %190 = vst.msk [vmem:[%s187 + $0x10] sm:$0x1] %vm86, 0.0
  %s191 = scalar_lea.vmem [#allocation2], 456
  %192 = vst.msk [vmem:[%s191] sm:$0xff] %vm83, 0.0
  %193 = vst.msk [vmem:[%s191 + $0x8] sm:$0xff] %vm83, 0.0
  %194 = vst.msk [vmem:[%s191 + $0x10] sm:$0x1] %vm86, 0.0
  %195 = vst.msk [vmem:[%s187] sm:$0xff] %vm83, 0.0
  %196 = vst.msk [vmem:[%s187 + $0x18] sm:$0xff] %vm83, 0.0
  %197 = vst.msk [vmem:[%s187 + $0x30] sm:$0xff] %vm83, 0.0
  %198 = vst.msk [vmem:[%s187 + $0x48] sm:$0xff] %vm83, 0.0
  %199 = vst.msk [vmem:[%s187 + $0x60] sm:$0xff] %vm83, 0.0
  %200 = vst.msk [vmem:[%s187 + $0x78] sm:$0xff] %vm83, 0.0
  %201 = vst.msk [vmem:[%s187 + $0x90] sm:$0xff] %vm83, 0.0
  %202 = vst.msk [vmem:[%s187 + $0xa8] sm:$0xff] %vm83, 0.0
  %203 = vst.msk [vmem:[%s187 + $0xc0] sm:$0xff] %vm83, 0.0
  %204 = vst.msk [vmem:[%s187 + $0xd8] sm:$0xff] %vm83, 0.0
  %205 = vst.msk [vmem:[%s187 + $0x10] sm:$0x1] %vm86, 0.0
  %206 = vst.msk [vmem:[%s187 + $0x28] sm:$0x1] %vm86, 0.0
  %207 = vst.msk [vmem:[%s187 + $0x40] sm:$0x1] %vm86, 0.0
  %208 = vst.msk [vmem:[%s187 + $0x58] sm:$0x1] %vm86, 0.0
  %209 = vst.msk [vmem:[%s187 + $0x70] sm:$0x1] %vm86, 0.0
  %210 = vst.msk [vmem:[%s187 + $0x88] sm:$0x1] %vm86, 0.0
  %211 = vst.msk [vmem:[%s187 + $0xa0] sm:$0x1] %vm86, 0.0
  %212 = vst.msk [vmem:[%s187 + $0xb8] sm:$0x1] %vm86, 0.0
  %213 = vst.msk [vmem:[%s187 + $0xd0] sm:$0x1] %vm86, 0.0
  %214 = vst.msk [vmem:[%s187 + $0xe8] sm:$0x1] %vm86, 0.0
  %s215 = scalar_lea.vmem [#allocation2], 264
  %216 = vst.msk [vmem:[%s215 + $0x8] sm:$0xff] %vm83, %v179
  %217 = vst.msk [vmem:[%s215 + $0x20] sm:$0xff] %vm83, %v180
  %218 = vst.msk [vmem:[%s215 + $0x38] sm:$0xff] %vm83, %v181
  %219 = vst.msk [vmem:[%s215 + $0x50] sm:$0xff] %vm83, %v182
  %220 = vst.msk [vmem:[%s215 + $0x68] sm:$0xff] %vm83, %v183
  %221 = vst.msk [vmem:[%s215 + $0x80] sm:$0xff] %vm83, %v184
  %222 = vst.msk [vmem:[%s215 + $0x98] sm:$0xff] %vm83, %v185
  %223 = vst.msk [vmem:[%s215 + $0xb0] sm:$0xff] %vm83, %v186
  %v224 = vld [vmem:[#allocation2 + $0x7] sm:$0xff]
  %v225 = vld [vmem:[#allocation2 + $0x1f] sm:$0xff]
  %v226 = vld [vmem:[#allocation2 + $0x37] sm:$0xff]
  %v227 = vld [vmem:[#allocation2 + $0x4f] sm:$0xff]
  %v228 = vld [vmem:[#allocation2 + $0x67] sm:$0xff]
  %v229 = vld [vmem:[#allocation2 + $0x7f] sm:$0xff]
  %v230 = vld [vmem:[#allocation2 + $0x97] sm:$0xff]
  %v231 = vld [vmem:[#allocation2 + $0xaf] sm:$0xff]
  %v232 = vpack.c.bf16 %v224, %v224
  %v233 = vpack.c.bf16 %v225, %v225
  %v234 = vpack.c.bf16 %v226, %v226
  %v235 = vpack.c.bf16 %v227, %v227
  %v236 = vpack.c.bf16 %v228, %v228
  %v237 = vpack.c.bf16 %v229, %v229
  %v238 = vpack.c.bf16 %v230, %v230
  %v239 = vpack.c.bf16 %v231, %v231
  %vm240 = vcmask 27648
  %241 = vst.msk [vmem:[#allocation3] sm:$0xf] %vm240, %v232
  %242 = vst.msk [vmem:[#allocation3 + $0x4] sm:$0xf] %vm240, %v233
  %243 = vst.msk [vmem:[#allocation3 + $0x8] sm:$0xf] %vm240, %v234
  %244 = vst.msk [vmem:[#allocation3 + $0xc] sm:$0xf] %vm240, %v235
  %245 = vst.msk [vmem:[#allocation3 + $0x10] sm:$0xf] %vm240, %v236
  %246 = vst.msk [vmem:[#allocation3 + $0x14] sm:$0xf] %vm240, %v237
  %247 = vst.msk [vmem:[#allocation3 + $0x18] sm:$0xf] %vm240, %v238
  %248 = vst.msk [vmem:[#allocation3 + $0x1c] sm:$0xf] %vm240, %v239
  %v249 = vld [vmem:[#allocation2 + $0x8] sm:$0xff]
  %v250 = vld [vmem:[#allocation2 + $0x20] sm:$0xff]
  %v251 = vld [vmem:[#allocation2 + $0x38] sm:$0xff]
  %v252 = vld [vmem:[#allocation2 + $0x50] sm:$0xff]
  %v253 = vld [vmem:[#allocation2 + $0x68] sm:$0xff]
  %v254 = vld [vmem:[#allocation2 + $0x80] sm:$0xff]
  %v255 = vld [vmem:[#allocation2 + $0x98] sm:$0xff]
  %v256 = vld [vmem:[#allocation2 + $0xb0] sm:$0xff]
  %v257 = vpack.c.bf16 %v249, %v249
  %v258 = vpack.c.bf16 %v250, %v250
  %v259 = vpack.c.bf16 %v251, %v251
  %v260 = vpack.c.bf16 %v252, %v252
  %v261 = vpack.c.bf16 %v253, %v253
  %v262 = vpack.c.bf16 %v254, %v254
  %v263 = vpack.c.bf16 %v255, %v255
  %v264 = vpack.c.bf16 %v256, %v256
  %273 = vrot.lane.b32.xlu0 %v257, 4
  %v274 = vpop.permute.xlu0 %273
  %275 = vrot.lane.b32.xlu0 %v258, 4
  %v276 = vpop.permute.xlu0 %275
  %277 = vrot.lane.b32.xlu0 %v259, 4
  %v278 = vpop.permute.xlu0 %277
  %279 = vrot.lane.b32.xlu0 %v260, 4
  %v280 = vpop.permute.xlu0 %279
  %281 = vrot.lane.b32.xlu0 %v261, 4
  %v282 = vpop.permute.xlu0 %281
  %283 = vrot.lane.b32.xlu0 %v262, 4
  %v284 = vpop.permute.xlu0 %283
  %285 = vrot.lane.b32.xlu0 %v263, 4
  %v286 = vpop.permute.xlu0 %285
  %287 = vrot.lane.b32.xlu0 %v264, 4
  %v288 = vpop.permute.xlu0 %287
  %vm297 = vcmask 60448
  %298 = vst.msk [vmem:[#allocation3] sm:$0xf] %vm297, %v274
  %299 = vst.msk [vmem:[#allocation3 + $0x4] sm:$0xf] %vm297, %v276
  %300 = vst.msk [vmem:[#allocation3 + $0x8] sm:$0xf] %vm297, %v278
  %301 = vst.msk [vmem:[#allocation3 + $0xc] sm:$0xf] %vm297, %v280
  %302 = vst.msk [vmem:[#allocation3 + $0x10] sm:$0xf] %vm297, %v282
  %303 = vst.msk [vmem:[#allocation3 + $0x14] sm:$0xf] %vm297, %v284
  %304 = vst.msk [vmem:[#allocation3 + $0x18] sm:$0xf] %vm297, %v286
  %305 = vst.msk [vmem:[#allocation3 + $0x1c] sm:$0xf] %vm297, %v288
  %v306 = vld [vmem:[#allocation2 + $0x9] sm:$0xff]
  %v307 = vld [vmem:[#allocation2 + $0x21] sm:$0xff]
  %v308 = vld [vmem:[#allocation2 + $0x39] sm:$0xff]
  %v309 = vld [vmem:[#allocation2 + $0x51] sm:$0xff]
  %v310 = vld [vmem:[#allocation2 + $0x69] sm:$0xff]
  %v311 = vld [vmem:[#allocation2 + $0x81] sm:$0xff]
  %v312 = vld [vmem:[#allocation2 + $0x99] sm:$0xff]
  %v313 = vld [vmem:[#allocation2 + $0xb1] sm:$0xff]
  %v314 = vpack.c.bf16 %v306, %v306
  %v315 = vpack.c.bf16 %v307, %v307
  %v316 = vpack.c.bf16 %v308, %v308
  %v317 = vpack.c.bf16 %v309, %v309
  %v318 = vpack.c.bf16 %v310, %v310
  %v319 = vpack.c.bf16 %v311, %v311
  %v320 = vpack.c.bf16 %v312, %v312
  %v321 = vpack.c.bf16 %v313, %v313
  %330 = vrot.lane.b32.xlu0 %v314, 8
  %v331 = vpop.permute.xlu0 %330
  %332 = vrot.lane.b32.xlu0 %v315, 8
  %v333 = vpop.permute.xlu0 %332
  %334 = vrot.lane.b32.xlu0 %v316, 8
  %v335 = vpop.permute.xlu0 %334
  %336 = vrot.lane.b32.xlu0 %v317, 8
  %v337 = vpop.permute.xlu0 %336
  %338 = vrot.lane.b32.xlu0 %v318, 8
  %v339 = vpop.permute.xlu0 %338
  %340 = vrot.lane.b32.xlu0 %v319, 8
  %v341 = vpop.permute.xlu0 %340
  %342 = vrot.lane.b32.xlu0 %v320, 8
  %v343 = vpop.permute.xlu0 %342
  %344 = vrot.lane.b32.xlu0 %v321, 8
  %v345 = vpop.permute.xlu0 %344
  %vm354 = vcmask 93248
  %355 = vst.msk [vmem:[#allocation3] sm:$0xf] %vm354, %v331
  %356 = vst.msk [vmem:[#allocation3 + $0x4] sm:$0xf] %vm354, %v333
  %357 = vst.msk [vmem:[#allocation3 + $0x8] sm:$0xf] %vm354, %v335
  %358 = vst.msk [vmem:[#allocation3 + $0xc] sm:$0xf] %vm354, %v337
  %359 = vst.msk [vmem:[#allocation3 + $0x10] sm:$0xf] %vm354, %v339
  %360 = vst.msk [vmem:[#allocation3 + $0x14] sm:$0xf] %vm354, %v341
  %361 = vst.msk [vmem:[#allocation3 + $0x18] sm:$0xf] %vm354, %v343
  %362 = vst.msk [vmem:[#allocation3 + $0x1c] sm:$0xf] %vm354, %v345
  %v363 = vld [vmem:[%s112 + $0x7] sm:$0xff]
  %v364 = vld [vmem:[%s112 + $0x1f] sm:$0xff]
  %v365 = vld [vmem:[%s112 + $0x37] sm:$0xff]
  %v366 = vld [vmem:[%s112 + $0x4f] sm:$0xff]
  %v367 = vld [vmem:[%s112 + $0x67] sm:$0xff]
  %v368 = vld [vmem:[%s112 + $0x7f] sm:$0xff]
  %v369 = vld [vmem:[%s112 + $0x97] sm:$0xff]
  %v370 = vld [vmem:[%s112 + $0xaf] sm:$0xff]
  %v371 = vpack.c.bf16 %v363, %v363
  %v372 = vpack.c.bf16 %v364, %v364
  %v373 = vpack.c.bf16 %v365, %v365
  %v374 = vpack.c.bf16 %v366, %v366
  %v375 = vpack.c.bf16 %v367, %v367
  %v376 = vpack.c.bf16 %v368, %v368
  %v377 = vpack.c.bf16 %v369, %v369
  %v378 = vpack.c.bf16 %v370, %v370
  %387 = vrot.lane.b32.xlu0 %v371, 12
  %v388 = vpop.permute.xlu0 %387
  %389 = vrot.lane.b32.xlu0 %v372, 12
  %v390 = vpop.permute.xlu0 %389
  %391 = vrot.lane.b32.xlu0 %v373, 12
  %v392 = vpop.permute.xlu0 %391
  %393 = vrot.lane.b32.xlu0 %v374, 12
  %v394 = vpop.permute.xlu0 %393
  %395 = vrot.lane.b32.xlu0 %v375, 12
  %v396 = vpop.permute.xlu0 %395
  %397 = vrot.lane.b32.xlu0 %v376, 12
  %v398 = vpop.permute.xlu0 %397
  %399 = vrot.lane.b32.xlu0 %v377, 12
  %v400 = vpop.permute.xlu0 %399
  %401 = vrot.lane.b32.xlu0 %v378, 12
  %v402 = vpop.permute.xlu0 %401
  %vm411 = vcmask 126048
  %412 = vst.msk [vmem:[#allocation3] sm:$0xf] %vm411, %v388
  %413 = vst.msk [vmem:[#allocation3 + $0x4] sm:$0xf] %vm411, %v390
  %414 = vst.msk [vmem:[#allocation3 + $0x8] sm:$0xf] %vm411, %v392
  %415 = vst.msk [vmem:[#allocation3 + $0xc] sm:$0xf] %vm411, %v394
  %416 = vst.msk [vmem:[#allocation3 + $0x10] sm:$0xf] %vm411, %v396
  %417 = vst.msk [vmem:[#allocation3 + $0x14] sm:$0xf] %vm411, %v398
  %418 = vst.msk [vmem:[#allocation3 + $0x18] sm:$0xf] %vm411, %v400
  %419 = vst.msk [vmem:[#allocation3 + $0x1c] sm:$0xf] %vm411, %v402
  %v420 = vld [vmem:[%s112 + $0x8] sm:$0xff]
  %v421 = vld [vmem:[%s112 + $0x20] sm:$0xff]
  %v422 = vld [vmem:[%s112 + $0x38] sm:$0xff]
  %v423 = vld [vmem:[%s112 + $0x50] sm:$0xff]
  %v424 = vld [vmem:[%s112 + $0x68] sm:$0xff]
  %v425 = vld [vmem:[%s112 + $0x80] sm:$0xff]
  %v426 = vld [vmem:[%s112 + $0x98] sm:$0xff]
  %v427 = vld [vmem:[%s112 + $0xb0] sm:$0xff]
  %v428 = vpack.c.bf16 %v420, %v420
  %v429 = vpack.c.bf16 %v421, %v421
  %v430 = vpack.c.bf16 %v422, %v422
  %v431 = vpack.c.bf16 %v423, %v423
  %v432 = vpack.c.bf16 %v424, %v424
  %v433 = vpack.c.bf16 %v425, %v425
  %v434 = vpack.c.bf16 %v426, %v426
  %v435 = vpack.c.bf16 %v427, %v427
  %444 = vrot.lane.b32.xlu0 %v428, 16
  %v445 = vpop.permute.xlu0 %444
  %446 = vrot.lane.b32.xlu0 %v429, 16
  %v447 = vpop.permute.xlu0 %446
  %448 = vrot.lane.b32.xlu0 %v430, 16
  %v449 = vpop.permute.xlu0 %448
  %450 = vrot.lane.b32.xlu0 %v431, 16
  %v451 = vpop.permute.xlu0 %450
  %452 = vrot.lane.b32.xlu0 %v432, 16
  %v453 = vpop.permute.xlu0 %452
  %454 = vrot.lane.b32.xlu0 %v433, 16
  %v455 = vpop.permute.xlu0 %454
  %456 = vrot.lane.b32.xlu0 %v434, 16
  %v457 = vpop.permute.xlu0 %456
  %458 = vrot.lane.b32.xlu0 %v435, 16
  %v459 = vpop.permute.xlu0 %458
  %vm468 = vcmask 158848
  %469 = vst.msk [vmem:[#allocation3] sm:$0xf] %vm468, %v445
  %470 = vst.msk [vmem:[#allocation3 + $0x4] sm:$0xf] %vm468, %v447
  %471 = vst.msk [vmem:[#allocation3 + $0x8] sm:$0xf] %vm468, %v449
  %472 = vst.msk [vmem:[#allocation3 + $0xc] sm:$0xf] %vm468, %v451
  %473 = vst.msk [vmem:[#allocation3 + $0x10] sm:$0xf] %vm468, %v453
  %474 = vst.msk [vmem:[#allocation3 + $0x14] sm:$0xf] %vm468, %v455
  %475 = vst.msk [vmem:[#allocation3 + $0x18] sm:$0xf] %vm468, %v457
  %476 = vst.msk [vmem:[#allocation3 + $0x1c] sm:$0xf] %vm468, %v459
  %v477 = vld [vmem:[%s112 + $0x9] sm:$0xff]
  %v478 = vld [vmem:[%s112 + $0x21] sm:$0xff]
  %v479 = vld [vmem:[%s112 + $0x39] sm:$0xff]
  %v480 = vld [vmem:[%s112 + $0x51] sm:$0xff]
  %v481 = vld [vmem:[%s112 + $0x69] sm:$0xff]
  %v482 = vld [vmem:[%s112 + $0x81] sm:$0xff]
  %v483 = vld [vmem:[%s112 + $0x99] sm:$0xff]
  %v484 = vld [vmem:[%s112 + $0xb1] sm:$0xff]
  %v485 = vpack.c.bf16 %v477, %v477
  %v486 = vpack.c.bf16 %v478, %v478
  %v487 = vpack.c.bf16 %v479, %v479
  %v488 = vpack.c.bf16 %v480, %v480
  %v489 = vpack.c.bf16 %v481, %v481
  %v490 = vpack.c.bf16 %v482, %v482
  %v491 = vpack.c.bf16 %v483, %v483
  %v492 = vpack.c.bf16 %v484, %v484
  %501 = vrot.lane.b32.xlu0 %v485, 20
  %v502 = vpop.permute.xlu0 %501
  %503 = vrot.lane.b32.xlu0 %v486, 20
  %v504 = vpop.permute.xlu0 %503
  %505 = vrot.lane.b32.xlu0 %v487, 20
  %v506 = vpop.permute.xlu0 %505
  %507 = vrot.lane.b32.xlu0 %v488, 20
  %v508 = vpop.permute.xlu0 %507
  %509 = vrot.lane.b32.xlu0 %v489, 20
  %v510 = vpop.permute.xlu0 %509
  %511 = vrot.lane.b32.xlu0 %v490, 20
  %v512 = vpop.permute.xlu0 %511
  %513 = vrot.lane.b32.xlu0 %v491, 20
  %v514 = vpop.permute.xlu0 %513
  %515 = vrot.lane.b32.xlu0 %v492, 20
  %v516 = vpop.permute.xlu0 %515
  %vm525 = vcmask 191648
  %526 = vst.msk [vmem:[#allocation3] sm:$0xf] %vm525, %v502
  %527 = vst.msk [vmem:[#allocation3 + $0x4] sm:$0xf] %vm525, %v504
  %528 = vst.msk [vmem:[#allocation3 + $0x8] sm:$0xf] %vm525, %v506
  %529 = vst.msk [vmem:[#allocation3 + $0xc] sm:$0xf] %vm525, %v508
  %530 = vst.msk [vmem:[#allocation3 + $0x10] sm:$0xf] %vm525, %v510
  %531 = vst.msk [vmem:[#allocation3 + $0x14] sm:$0xf] %vm525, %v512
  %532 = vst.msk [vmem:[#allocation3 + $0x18] sm:$0xf] %vm525, %v514
  %533 = vst.msk [vmem:[#allocation3 + $0x1c] sm:$0xf] %vm525, %v516
  %s534 = scalar_lea.vmem [#allocation2], 48
  %v535 = vld [vmem:[%s534 + $0x7] sm:$0xff]
  %v536 = vld [vmem:[%s534 + $0x1f] sm:$0xff]
  %v537 = vld [vmem:[%s534 + $0x37] sm:$0xff]
  %v538 = vld [vmem:[%s534 + $0x4f] sm:$0xff]
  %v539 = vld [vmem:[%s534 + $0x67] sm:$0xff]
  %v540 = vld [vmem:[%s534 + $0x7f] sm:$0xff]
  %v541 = vld [vmem:[%s534 + $0x97] sm:$0xff]
  %v542 = vld [vmem:[%s534 + $0xaf] sm:$0xff]
  %v543 = vpack.c.bf16 %v535, %v535
  %v544 = vpack.c.bf16 %v536, %v536
  %v545 = vpack.c.bf16 %v537, %v537
  %v546 = vpack.c.bf16 %v538, %v538
  %v547 = vpack.c.bf16 %v539, %v539
  %v548 = vpack.c.bf16 %v540, %v540
  %v549 = vpack.c.bf16 %v541, %v541
  %v550 = vpack.c.bf16 %v542, %v542
  %559 = vrot.lane.b32.xlu0 %v543, 24
  %v560 = vpop.permute.xlu0 %559
  %561 = vrot.lane.b32.xlu0 %v544, 24
  %v562 = vpop.permute.xlu0 %561
  %563 = vrot.lane.b32.xlu0 %v545, 24
  %v564 = vpop.permute.xlu0 %563
  %565 = vrot.lane.b32.xlu0 %v546, 24
  %v566 = vpop.permute.xlu0 %565
  %567 = vrot.lane.b32.xlu0 %v547, 24
  %v568 = vpop.permute.xlu0 %567
  %569 = vrot.lane.b32.xlu0 %v548, 24
  %v570 = vpop.permute.xlu0 %569
  %571 = vrot.lane.b32.xlu0 %v549, 24
  %v572 = vpop.permute.xlu0 %571
  %573 = vrot.lane.b32.xlu0 %v550, 24
  %v574 = vpop.permute.xlu0 %573
  %vm583 = vcmask 224448
  %584 = vst.msk [vmem:[#allocation3] sm:$0xf] %vm583, %v560
  %585 = vst.msk [vmem:[#allocation3 + $0x4] sm:$0xf] %vm583, %v562
  %586 = vst.msk [vmem:[#allocation3 + $0x8] sm:$0xf] %vm583, %v564
  %587 = vst.msk [vmem:[#allocation3 + $0xc] sm:$0xf] %vm583, %v566
  %588 = vst.msk [vmem:[#allocation3 + $0x10] sm:$0xf] %vm583, %v568
  %589 = vst.msk [vmem:[#allocation3 + $0x14] sm:$0xf] %vm583, %v570
  %590 = vst.msk [vmem:[#allocation3 + $0x18] sm:$0xf] %vm583, %v572
  %591 = vst.msk [vmem:[#allocation3 + $0x1c] sm:$0xf] %vm583, %v574
  %v592 = vld [vmem:[%s534 + $0x8] sm:$0xff]
  %v593 = vld [vmem:[%s534 + $0x20] sm:$0xff]
  %v594 = vld [vmem:[%s534 + $0x38] sm:$0xff]
  %v595 = vld [vmem:[%s534 + $0x50] sm:$0xff]
  %v596 = vld [vmem:[%s534 + $0x68] sm:$0xff]
  %v597 = vld [vmem:[%s534 + $0x80] sm:$0xff]
  %v598 = vld [vmem:[%s534 + $0x98] sm:$0xff]
  %v599 = vld [vmem:[%s534 + $0xb0] sm:$0xff]
  %v600 = vpack.c.bf16 %v592, %v592
  %v601 = vpack.c.bf16 %v593, %v593
  %v602 = vpack.c.bf16 %v594, %v594
  %v603 = vpack.c.bf16 %v595, %v595
  %v604 = vpack.c.bf16 %v596, %v596
  %v605 = vpack.c.bf16 %v597, %v597
  %v606 = vpack.c.bf16 %v598, %v598
  %v607 = vpack.c.bf16 %v599, %v599
  %616 = vrot.lane.b32.xlu0 %v600, 28
  %v617 = vpop.permute.xlu0 %616
  %618 = vrot.lane.b32.xlu0 %v601, 28
  %v619 = vpop.permute.xlu0 %618
  %620 = vrot.lane.b32.xlu0 %v602, 28
  %v621 = vpop.permute.xlu0 %620
  %622 = vrot.lane.b32.xlu0 %v603, 28
  %v623 = vpop.permute.xlu0 %622
  %624 = vrot.lane.b32.xlu0 %v604, 28
  %v625 = vpop.permute.xlu0 %624
  %626 = vrot.lane.b32.xlu0 %v605, 28
  %v627 = vpop.permute.xlu0 %626
  %628 = vrot.lane.b32.xlu0 %v606, 28
  %v629 = vpop.permute.xlu0 %628
  %630 = vrot.lane.b32.xlu0 %v607, 28
  %v631 = vpop.permute.xlu0 %630
  %vm640 = vcmask 257248
  %641 = vst.msk [vmem:[#allocation3] sm:$0xf] %vm640, %v617
  %642 = vst.msk [vmem:[#allocation3 + $0x4] sm:$0xf] %vm640, %v619
  %643 = vst.msk [vmem:[#allocation3 + $0x8] sm:$0xf] %vm640, %v621
  %644 = vst.msk [vmem:[#allocation3 + $0xc] sm:$0xf] %vm640, %v623
  %645 = vst.msk [vmem:[#allocation3 + $0x10] sm:$0xf] %vm640, %v625
  %646 = vst.msk [vmem:[#allocation3 + $0x14] sm:$0xf] %vm640, %v627
  %647 = vst.msk [vmem:[#allocation3 + $0x18] sm:$0xf] %vm640, %v629
  %648 = vst.msk [vmem:[#allocation3 + $0x1c] sm:$0xf] %vm640, %v631
  %v649 = vld [vmem:[%s534 + $0x9] sm:$0xff]
  %v650 = vld [vmem:[%s534 + $0x21] sm:$0xff]
  %v651 = vld [vmem:[%s534 + $0x39] sm:$0xff]
  %v652 = vld [vmem:[%s534 + $0x51] sm:$0xff]
  %v653 = vld [vmem:[%s534 + $0x69] sm:$0xff]
  %v654 = vld [vmem:[%s534 + $0x81] sm:$0xff]
  %v655 = vld [vmem:[%s534 + $0x99] sm:$0xff]
  %v656 = vld [vmem:[%s534 + $0xb1] sm:$0xff]
  %v657 = vpack.c.bf16 %v649, %v649
  %v658 = vpack.c.bf16 %v650, %v650
  %v659 = vpack.c.bf16 %v651, %v651
  %v660 = vpack.c.bf16 %v652, %v652
  %v661 = vpack.c.bf16 %v653, %v653
  %v662 = vpack.c.bf16 %v654, %v654
  %v663 = vpack.c.bf16 %v655, %v655
  %v664 = vpack.c.bf16 %v656, %v656
  %673 = vrot.lane.b32.xlu0 %v657, 32
  %v674 = vpop.permute.xlu0 %673
  %675 = vrot.lane.b32.xlu0 %v658, 32
  %v676 = vpop.permute.xlu0 %675
  %677 = vrot.lane.b32.xlu0 %v659, 32
  %v678 = vpop.permute.xlu0 %677
  %679 = vrot.lane.b32.xlu0 %v660, 32
  %v680 = vpop.permute.xlu0 %679
  %681 = vrot.lane.b32.xlu0 %v661, 32
  %v682 = vpop.permute.xlu0 %681
  %683 = vrot.lane.b32.xlu0 %v662, 32
  %v684 = vpop.permute.xlu0 %683
  %685 = vrot.lane.b32.xlu0 %v663, 32
  %v686 = vpop.permute.xlu0 %685
  %687 = vrot.lane.b32.xlu0 %v664, 32
  %v688 = vpop.permute.xlu0 %687
  %vm697 = vcmask 290048
  %698 = vst.msk [vmem:[#allocation3] sm:$0xf] %vm697, %v674
  %699 = vst.msk [vmem:[#allocation3 + $0x4] sm:$0xf] %vm697, %v676
  %700 = vst.msk [vmem:[#allocation3 + $0x8] sm:$0xf] %vm697, %v678
  %701 = vst.msk [vmem:[#allocation3 + $0xc] sm:$0xf] %vm697, %v680
  %702 = vst.msk [vmem:[#allocation3 + $0x10] sm:$0xf] %vm697, %v682
  %703 = vst.msk [vmem:[#allocation3 + $0x14] sm:$0xf] %vm697, %v684
  %704 = vst.msk [vmem:[#allocation3 + $0x18] sm:$0xf] %vm697, %v686
  %705 = vst.msk [vmem:[#allocation3 + $0x1c] sm:$0xf] %vm697, %v688
  %v706 = vld [vmem:[%s187 + $0x7] sm:$0xff]
  %v707 = vld [vmem:[%s187 + $0x1f] sm:$0xff]
  %v708 = vld [vmem:[%s187 + $0x37] sm:$0xff]
  %v709 = vld [vmem:[%s187 + $0x4f] sm:$0xff]
  %v710 = vld [vmem:[%s187 + $0x67] sm:$0xff]
  %v711 = vld [vmem:[%s187 + $0x7f] sm:$0xff]
  %v712 = vld [vmem:[%s187 + $0x97] sm:$0xff]
  %v713 = vld [vmem:[%s187 + $0xaf] sm:$0xff]
  %v714 = vpack.c.bf16 %v706, %v706
  %v715 = vpack.c.bf16 %v707, %v707
  %v716 = vpack.c.bf16 %v708, %v708
  %v717 = vpack.c.bf16 %v709, %v709
  %v718 = vpack.c.bf16 %v710, %v710
  %v719 = vpack.c.bf16 %v711, %v711
  %v720 = vpack.c.bf16 %v712, %v712
  %v721 = vpack.c.bf16 %v713, %v713
  %722 = vst.msk [vmem:[#allocation3 + $0x20] sm:$0xf] %vm240, %v714
  %723 = vst.msk [vmem:[#allocation3 + $0x24] sm:$0xf] %vm240, %v715
  %724 = vst.msk [vmem:[#allocation3 + $0x28] sm:$0xf] %vm240, %v716
  %725 = vst.msk [vmem:[#allocation3 + $0x2c] sm:$0xf] %vm240, %v717
  %726 = vst.msk [vmem:[#allocation3 + $0x30] sm:$0xf] %vm240, %v718
  %727 = vst.msk [vmem:[#allocation3 + $0x34] sm:$0xf] %vm240, %v719
  %728 = vst.msk [vmem:[#allocation3 + $0x38] sm:$0xf] %vm240, %v720
  %729 = vst.msk [vmem:[#allocation3 + $0x3c] sm:$0xf] %vm240, %v721
  %v730 = vld [vmem:[%s187 + $0x8] sm:$0xff]
  %v731 = vld [vmem:[%s187 + $0x20] sm:$0xff]
  %v732 = vld [vmem:[%s187 + $0x38] sm:$0xff]
  %v733 = vld [vmem:[%s187 + $0x50] sm:$0xff]
  %v734 = vld [vmem:[%s187 + $0x68] sm:$0xff]
  %v735 = vld [vmem:[%s187 + $0x80] sm:$0xff]
  %v736 = vld [vmem:[%s187 + $0x98] sm:$0xff]
  %v737 = vld [vmem:[%s187 + $0xb0] sm:$0xff]
  %v738 = vpack.c.bf16 %v730, %v730
  %v739 = vpack.c.bf16 %v731, %v731
  %v740 = vpack.c.bf16 %v732, %v732
  %v741 = vpack.c.bf16 %v733, %v733
  %v742 = vpack.c.bf16 %v734, %v734
  %v743 = vpack.c.bf16 %v735, %v735
  %v744 = vpack.c.bf16 %v736, %v736
  %v745 = vpack.c.bf16 %v737, %v737
  %754 = vrot.lane.b32.xlu0 %v738, 4
  %v755 = vpop.permute.xlu0 %754
  %756 = vrot.lane.b32.xlu0 %v739, 4
  %v757 = vpop.permute.xlu0 %756
  %758 = vrot.lane.b32.xlu0 %v740, 4
  %v759 = vpop.permute.xlu0 %758
  %760 = vrot.lane.b32.xlu0 %v741, 4
  %v761 = vpop.permute.xlu0 %760
  %762 = vrot.lane.b32.xlu0 %v742, 4
  %v763 = vpop.permute.xlu0 %762
  %764 = vrot.lane.b32.xlu0 %v743, 4
  %v765 = vpop.permute.xlu0 %764
  %766 = vrot.lane.b32.xlu0 %v744, 4
  %v767 = vpop.permute.xlu0 %766
  %768 = vrot.lane.b32.xlu0 %v745, 4
  %v769 = vpop.permute.xlu0 %768
  %778 = vst.msk [vmem:[#allocation3 + $0x20] sm:$0xf] %vm297, %v755
  %779 = vst.msk [vmem:[#allocation3 + $0x24] sm:$0xf] %vm297, %v757
  %780 = vst.msk [vmem:[#allocation3 + $0x28] sm:$0xf] %vm297, %v759
  %781 = vst.msk [vmem:[#allocation3 + $0x2c] sm:$0xf] %vm297, %v761
  %782 = vst.msk [vmem:[#allocation3 + $0x30] sm:$0xf] %vm297, %v763
  %783 = vst.msk [vmem:[#allocation3 + $0x34] sm:$0xf] %vm297, %v765
  %784 = vst.msk [vmem:[#allocation3 + $0x38] sm:$0xf] %vm297, %v767
  %785 = vst.msk [vmem:[#allocation3 + $0x3c] sm:$0xf] %vm297, %v769
  %v786 = vld [vmem:[%s187 + $0x9] sm:$0xff]
  %v787 = vld [vmem:[%s187 + $0x21] sm:$0xff]
  %v788 = vld [vmem:[%s187 + $0x39] sm:$0xff]
  %v789 = vld [vmem:[%s187 + $0x51] sm:$0xff]
  %v790 = vld [vmem:[%s187 + $0x69] sm:$0xff]
  %v791 = vld [vmem:[%s187 + $0x81] sm:$0xff]
  %v792 = vld [vmem:[%s187 + $0x99] sm:$0xff]
  %v793 = vld [vmem:[%s187 + $0xb1] sm:$0xff]
  %v794 = vpack.c.bf16 %v786, %v786
  %v795 = vpack.c.bf16 %v787, %v787
  %v796 = vpack.c.bf16 %v788, %v788
  %v797 = vpack.c.bf16 %v789, %v789
  %v798 = vpack.c.bf16 %v790, %v790
  %v799 = vpack.c.bf16 %v791, %v791
  %v800 = vpack.c.bf16 %v792, %v792
  %v801 = vpack.c.bf16 %v793, %v793
  %810 = vrot.lane.b32.xlu0 %v794, 8
  %v811 = vpop.permute.xlu0 %810
  %812 = vrot.lane.b32.xlu0 %v795, 8
  %v813 = vpop.permute.xlu0 %812
  %814 = vrot.lane.b32.xlu0 %v796, 8
  %v815 = vpop.permute.xlu0 %814
  %816 = vrot.lane.b32.xlu0 %v797, 8
  %v817 = vpop.permute.xlu0 %816
  %818 = vrot.lane.b32.xlu0 %v798, 8
  %v819 = vpop.permute.xlu0 %818
  %820 = vrot.lane.b32.xlu0 %v799, 8
  %v821 = vpop.permute.xlu0 %820
  %822 = vrot.lane.b32.xlu0 %v800, 8
  %v823 = vpop.permute.xlu0 %822
  %824 = vrot.lane.b32.xlu0 %v801, 8
  %v825 = vpop.permute.xlu0 %824
  %834 = vst.msk [vmem:[#allocation3 + $0x20] sm:$0xf] %vm354, %v811
  %835 = vst.msk [vmem:[#allocation3 + $0x24] sm:$0xf] %vm354, %v813
  %836 = vst.msk [vmem:[#allocation3 + $0x28] sm:$0xf] %vm354, %v815
  %837 = vst.msk [vmem:[#allocation3 + $0x2c] sm:$0xf] %vm354, %v817
  %838 = vst.msk [vmem:[#allocation3 + $0x30] sm:$0xf] %vm354, %v819
  %839 = vst.msk [vmem:[#allocation3 + $0x34] sm:$0xf] %vm354, %v821
  %840 = vst.msk [vmem:[#allocation3 + $0x38] sm:$0xf] %vm354, %v823
  %841 = vst.msk [vmem:[#allocation3 + $0x3c] sm:$0xf] %vm354, %v825
  %v842 = vld [vmem:[%s215 + $0x7] sm:$0xff]
  %v843 = vld [vmem:[%s215 + $0x1f] sm:$0xff]
  %v844 = vld [vmem:[%s215 + $0x37] sm:$0xff]
  %v845 = vld [vmem:[%s215 + $0x4f] sm:$0xff]
  %v846 = vld [vmem:[%s215 + $0x67] sm:$0xff]
  %v847 = vld [vmem:[%s215 + $0x7f] sm:$0xff]
  %v848 = vld [vmem:[%s215 + $0x97] sm:$0xff]
  %v849 = vld [vmem:[%s215 + $0xaf] sm:$0xff]
  %v850 = vpack.c.bf16 %v842, %v842
  %v851 = vpack.c.bf16 %v843, %v843
  %v852 = vpack.c.bf16 %v844, %v844
  %v853 = vpack.c.bf16 %v845, %v845
  %v854 = vpack.c.bf16 %v846, %v846
  %v855 = vpack.c.bf16 %v847, %v847
  %v856 = vpack.c.bf16 %v848, %v848
  %v857 = vpack.c.bf16 %v849, %v849
  %866 = vrot.lane.b32.xlu0 %v850, 12
  %v867 = vpop.permute.xlu0 %866
  %868 = vrot.lane.b32.xlu0 %v851, 12
  %v869 = vpop.permute.xlu0 %868
  %870 = vrot.lane.b32.xlu0 %v852, 12
  %v871 = vpop.permute.xlu0 %870
  %872 = vrot.lane.b32.xlu0 %v853, 12
  %v873 = vpop.permute.xlu0 %872
  %874 = vrot.lane.b32.xlu0 %v854, 12
  %v875 = vpop.permute.xlu0 %874
  %876 = vrot.lane.b32.xlu0 %v855, 12
  %v877 = vpop.permute.xlu0 %876
  %878 = vrot.lane.b32.xlu0 %v856, 12
  %v879 = vpop.permute.xlu0 %878
  %880 = vrot.lane.b32.xlu0 %v857, 12
  %v881 = vpop.permute.xlu0 %880
  %890 = vst.msk [vmem:[#allocation3 + $0x20] sm:$0xf] %vm411, %v867
  %891 = vst.msk [vmem:[#allocation3 + $0x24] sm:$0xf] %vm411, %v869
  %892 = vst.msk [vmem:[#allocation3 + $0x28] sm:$0xf] %vm411, %v871
  %893 = vst.msk [vmem:[#allocation3 + $0x2c] sm:$0xf] %vm411, %v873
  %894 = vst.msk [vmem:[#allocation3 + $0x30] sm:$0xf] %vm411, %v875
  %895 = vst.msk [vmem:[#allocation3 + $0x34] sm:$0xf] %vm411, %v877
  %896 = vst.msk [vmem:[#allocation3 + $0x38] sm:$0xf] %vm411, %v879
  %897 = vst.msk [vmem:[#allocation3 + $0x3c] sm:$0xf] %vm411, %v881
  %v898 = vld [vmem:[%s215 + $0x8] sm:$0xff]
  %v899 = vld [vmem:[%s215 + $0x20] sm:$0xff]
  %v900 = vld [vmem:[%s215 + $0x38] sm:$0xff]
  %v901 = vld [vmem:[%s215 + $0x50] sm:$0xff]
  %v902 = vld [vmem:[%s215 + $0x68] sm:$0xff]
  %v903 = vld [vmem:[%s215 + $0x80] sm:$0xff]
  %v904 = vld [vmem:[%s215 + $0x98] sm:$0xff]
  %v905 = vld [vmem:[%s215 + $0xb0] sm:$0xff]
  %v906 = vpack.c.bf16 %v898, %v898
  %v907 = vpack.c.bf16 %v899, %v899
  %v908 = vpack.c.bf16 %v900, %v900
  %v909 = vpack.c.bf16 %v901, %v901
  %v910 = vpack.c.bf16 %v902, %v902
  %v911 = vpack.c.bf16 %v903, %v903
  %v912 = vpack.c.bf16 %v904, %v904
  %v913 = vpack.c.bf16 %v905, %v905
  %922 = vrot.lane.b32.xlu0 %v906, 16
  %v923 = vpop.permute.xlu0 %922
  %924 = vrot.lane.b32.xlu0 %v907, 16
  %v925 = vpop.permute.xlu0 %924
  %926 = vrot.lane.b32.xlu0 %v908, 16
  %v927 = vpop.permute.xlu0 %926
  %928 = vrot.lane.b32.xlu0 %v909, 16
  %v929 = vpop.permute.xlu0 %928
  %930 = vrot.lane.b32.xlu0 %v910, 16
  %v931 = vpop.permute.xlu0 %930
  %932 = vrot.lane.b32.xlu0 %v911, 16
  %v933 = vpop.permute.xlu0 %932
  %934 = vrot.lane.b32.xlu0 %v912, 16
  %v935 = vpop.permute.xlu0 %934
  %936 = vrot.lane.b32.xlu0 %v913, 16
  %v937 = vpop.permute.xlu0 %936
  %946 = vst.msk [vmem:[#allocation3 + $0x20] sm:$0xf] %vm468, %v923
  %947 = vst.msk [vmem:[#allocation3 + $0x24] sm:$0xf] %vm468, %v925
  %948 = vst.msk [vmem:[#allocation3 + $0x28] sm:$0xf] %vm468, %v927
  %949 = vst.msk [vmem:[#allocation3 + $0x2c] sm:$0xf] %vm468, %v929
  %950 = vst.msk [vmem:[#allocation3 + $0x30] sm:$0xf] %vm468, %v931
  %951 = vst.msk [vmem:[#allocation3 + $0x34] sm:$0xf] %vm468, %v933
  %952 = vst.msk [vmem:[#allocation3 + $0x38] sm:$0xf] %vm468, %v935
  %953 = vst.msk [vmem:[#allocation3 + $0x3c] sm:$0xf] %vm468, %v937
  %v954 = vld [vmem:[%s215 + $0x9] sm:$0xff]
  %v955 = vld [vmem:[%s215 + $0x21] sm:$0xff]
  %v956 = vld [vmem:[%s215 + $0x39] sm:$0xff]
  %v957 = vld [vmem:[%s215 + $0x51] sm:$0xff]
  %v958 = vld [vmem:[%s215 + $0x69] sm:$0xff]
  %v959 = vld [vmem:[%s215 + $0x81] sm:$0xff]
  %v960 = vld [vmem:[%s215 + $0x99] sm:$0xff]
  %v961 = vld [vmem:[%s215 + $0xb1] sm:$0xff]
  %v962 = vpack.c.bf16 %v954, %v954
  %v963 = vpack.c.bf16 %v955, %v955
  %v964 = vpack.c.bf16 %v956, %v956
  %v965 = vpack.c.bf16 %v957, %v957
  %v966 = vpack.c.bf16 %v958, %v958
  %v967 = vpack.c.bf16 %v959, %v959
  %v968 = vpack.c.bf16 %v960, %v960
  %v969 = vpack.c.bf16 %v961, %v961
  %978 = vrot.lane.b32.xlu0 %v962, 20
  %v979 = vpop.permute.xlu0 %978
  %980 = vrot.lane.b32.xlu0 %v963, 20
  %v981 = vpop.permute.xlu0 %980
  %982 = vrot.lane.b32.xlu0 %v964, 20
  %v983 = vpop.permute.xlu0 %982
  %984 = vrot.lane.b32.xlu0 %v965, 20
  %v985 = vpop.permute.xlu0 %984
  %986 = vrot.lane.b32.xlu0 %v966, 20
  %v987 = vpop.permute.xlu0 %986
  %988 = vrot.lane.b32.xlu0 %v967, 20
  %v989 = vpop.permute.xlu0 %988
  %990 = vrot.lane.b32.xlu0 %v968, 20
  %v991 = vpop.permute.xlu0 %990
  %992 = vrot.lane.b32.xlu0 %v969, 20
  %v993 = vpop.permute.xlu0 %992
  %1002 = vst.msk [vmem:[#allocation3 + $0x20] sm:$0xf] %vm525, %v979
  %1003 = vst.msk [vmem:[#allocation3 + $0x24] sm:$0xf] %vm525, %v981
  %1004 = vst.msk [vmem:[#allocation3 + $0x28] sm:$0xf] %vm525, %v983
  %1005 = vst.msk [vmem:[#allocation3 + $0x2c] sm:$0xf] %vm525, %v985
  %1006 = vst.msk [vmem:[#allocation3 + $0x30] sm:$0xf] %vm525, %v987
  %1007 = vst.msk [vmem:[#allocation3 + $0x34] sm:$0xf] %vm525, %v989
  %1008 = vst.msk [vmem:[#allocation3 + $0x38] sm:$0xf] %vm525, %v991
  %1009 = vst.msk [vmem:[#allocation3 + $0x3c] sm:$0xf] %vm525, %v993
  %s1010 = scalar_lea.vmem [#allocation2], 288
  %v1011 = vld [vmem:[%s1010 + $0x7] sm:$0xff]
  %v1012 = vld [vmem:[%s1010 + $0x1f] sm:$0xff]
  %v1013 = vld [vmem:[%s1010 + $0x37] sm:$0xff]
  %v1014 = vld [vmem:[%s1010 + $0x4f] sm:$0xff]
  %v1015 = vld [vmem:[%s1010 + $0x67] sm:$0xff]
  %v1016 = vld [vmem:[%s1010 + $0x7f] sm:$0xff]
  %v1017 = vld [vmem:[%s1010 + $0x97] sm:$0xff]
  %v1018 = vld [vmem:[%s1010 + $0xaf] sm:$0xff]
  %v1019 = vpack.c.bf16 %v1011, %v1011
  %v1020 = vpack.c.bf16 %v1012, %v1012
  %v1021 = vpack.c.bf16 %v1013, %v1013
  %v1022 = vpack.c.bf16 %v1014, %v1014
  %v1023 = vpack.c.bf16 %v1015, %v1015
  %v1024 = vpack.c.bf16 %v1016, %v1016
  %v1025 = vpack.c.bf16 %v1017, %v1017
  %v1026 = vpack.c.bf16 %v1018, %v1018
  %1035 = vrot.lane.b32.xlu0 %v1019, 24
  %v1036 = vpop.permute.xlu0 %1035
  %1037 = vrot.lane.b32.xlu0 %v1020, 24
  %v1038 = vpop.permute.xlu0 %1037
  %1039 = vrot.lane.b32.xlu0 %v1021, 24
  %v1040 = vpop.permute.xlu0 %1039
  %1041 = vrot.lane.b32.xlu0 %v1022, 24
  %v1042 = vpop.permute.xlu0 %1041
  %1043 = vrot.lane.b32.xlu0 %v1023, 24
  %v1044 = vpop.permute.xlu0 %1043
  %1045 = vrot.lane.b32.xlu0 %v1024, 24
  %v1046 = vpop.permute.xlu0 %1045
  %1047 = vrot.lane.b32.xlu0 %v1025, 24
  %v1048 = vpop.permute.xlu0 %1047
  %1049 = vrot.lane.b32.xlu0 %v1026, 24
  %v1050 = vpop.permute.xlu0 %1049
  %1059 = vst.msk [vmem:[#allocation3 + $0x20] sm:$0xf] %vm583, %v1036
  %1060 = vst.msk [vmem:[#allocation3 + $0x24] sm:$0xf] %vm583, %v1038
  %1061 = vst.msk [vmem:[#allocation3 + $0x28] sm:$0xf] %vm583, %v1040
  %1062 = vst.msk [vmem:[#allocation3 + $0x2c] sm:$0xf] %vm583, %v1042
  %1063 = vst.msk [vmem:[#allocation3 + $0x30] sm:$0xf] %vm583, %v1044
  %1064 = vst.msk [vmem:[#allocation3 + $0x34] sm:$0xf] %vm583, %v1046
  %1065 = vst.msk [vmem:[#allocation3 + $0x38] sm:$0xf] %vm583, %v1048
  %1066 = vst.msk [vmem:[#allocation3 + $0x3c] sm:$0xf] %vm583, %v1050
  %v1067 = vld [vmem:[%s1010 + $0x8] sm:$0xff]
  %v1068 = vld [vmem:[%s1010 + $0x20] sm:$0xff]
  %v1069 = vld [vmem:[%s1010 + $0x38] sm:$0xff]
  %v1070 = vld [vmem:[%s1010 + $0x50] sm:$0xff]
  %v1071 = vld [vmem:[%s1010 + $0x68] sm:$0xff]
  %v1072 = vld [vmem:[%s1010 + $0x80] sm:$0xff]
  %v1073 = vld [vmem:[%s1010 + $0x98] sm:$0xff]
  %v1074 = vld [vmem:[%s1010 + $0xb0] sm:$0xff]
  %v1075 = vpack.c.bf16 %v1067, %v1067
  %v1076 = vpack.c.bf16 %v1068, %v1068
  %v1077 = vpack.c.bf16 %v1069, %v1069
  %v1078 = vpack.c.bf16 %v1070, %v1070
  %v1079 = vpack.c.bf16 %v1071, %v1071
  %v1080 = vpack.c.bf16 %v1072, %v1072
  %v1081 = vpack.c.bf16 %v1073, %v1073
  %v1082 = vpack.c.bf16 %v1074, %v1074
  %1091 = vrot.lane.b32.xlu0 %v1075, 28
  %v1092 = vpop.permute.xlu0 %1091
  %1093 = vrot.lane.b32.xlu0 %v1076, 28
  %v1094 = vpop.permute.xlu0 %1093
  %1095 = vrot.lane.b32.xlu0 %v1077, 28
  %v1096 = vpop.permute.xlu0 %1095
  %1097 = vrot.lane.b32.xlu0 %v1078, 28
  %v1098 = vpop.permute.xlu0 %1097
  %1099 = vrot.lane.b32.xlu0 %v1079, 28
  %v1100 = vpop.permute.xlu0 %1099
  %1101 = vrot.lane.b32.xlu0 %v1080, 28
  %v1102 = vpop.permute.xlu0 %1101
  %1103 = vrot.lane.b32.xlu0 %v1081, 28
  %v1104 = vpop.permute.xlu0 %1103
  %1105 = vrot.lane.b32.xlu0 %v1082, 28
  %v1106 = vpop.permute.xlu0 %1105
  %1115 = vst.msk [vmem:[#allocation3 + $0x20] sm:$0xf] %vm640, %v1092
  %1116 = vst.msk [vmem:[#allocation3 + $0x24] sm:$0xf] %vm640, %v1094
  %1117 = vst.msk [vmem:[#allocation3 + $0x28] sm:$0xf] %vm640, %v1096
  %1118 = vst.msk [vmem:[#allocation3 + $0x2c] sm:$0xf] %vm640, %v1098
  %1119 = vst.msk [vmem:[#allocation3 + $0x30] sm:$0xf] %vm640, %v1100
  %1120 = vst.msk [vmem:[#allocation3 + $0x34] sm:$0xf] %vm640, %v1102
  %1121 = vst.msk [vmem:[#allocation3 + $0x38] sm:$0xf] %vm640, %v1104
  %1122 = vst.msk [vmem:[#allocation3 + $0x3c] sm:$0xf] %vm640, %v1106
  %v1123 = vld [vmem:[%s1010 + $0x9] sm:$0xff]
  %v1124 = vld [vmem:[%s1010 + $0x21] sm:$0xff]
  %v1125 = vld [vmem:[%s1010 + $0x39] sm:$0xff]
  %v1126 = vld [vmem:[%s1010 + $0x51] sm:$0xff]
  %v1127 = vld [vmem:[%s1010 + $0x69] sm:$0xff]
  %v1128 = vld [vmem:[%s1010 + $0x81] sm:$0xff]
  %v1129 = vld [vmem:[%s1010 + $0x99] sm:$0xff]
  %v1130 = vld [vmem:[%s1010 + $0xb1] sm:$0xff]
  %v1131 = vpack.c.bf16 %v1123, %v1123
  %v1132 = vpack.c.bf16 %v1124, %v1124
  %v1133 = vpack.c.bf16 %v1125, %v1125
  %v1134 = vpack.c.bf16 %v1126, %v1126
  %v1135 = vpack.c.bf16 %v1127, %v1127
  %v1136 = vpack.c.bf16 %v1128, %v1128
  %v1137 = vpack.c.bf16 %v1129, %v1129
  %v1138 = vpack.c.bf16 %v1130, %v1130
  %1147 = vrot.lane.b32.xlu0 %v1131, 32
  %v1148 = vpop.permute.xlu0 %1147
  %1149 = vrot.lane.b32.xlu0 %v1132, 32
  %v1150 = vpop.permute.xlu0 %1149
  %1151 = vrot.lane.b32.xlu0 %v1133, 32
  %v1152 = vpop.permute.xlu0 %1151
  %1153 = vrot.lane.b32.xlu0 %v1134, 32
  %v1154 = vpop.permute.xlu0 %1153
  %1155 = vrot.lane.b32.xlu0 %v1135, 32
  %v1156 = vpop.permute.xlu0 %1155
  %1157 = vrot.lane.b32.xlu0 %v1136, 32
  %v1158 = vpop.permute.xlu0 %1157
  %1159 = vrot.lane.b32.xlu0 %v1137, 32
  %v1160 = vpop.permute.xlu0 %1159
  %1161 = vrot.lane.b32.xlu0 %v1138, 32
  %v1162 = vpop.permute.xlu0 %1161
  %1171 = vst.msk [vmem:[#allocation3 + $0x20] sm:$0xf] %vm697, %v1148
  %1172 = vst.msk [vmem:[#allocation3 + $0x24] sm:$0xf] %vm697, %v1150
  %1173 = vst.msk [vmem:[#allocation3 + $0x28] sm:$0xf] %vm697, %v1152
  %1174 = vst.msk [vmem:[#allocation3 + $0x2c] sm:$0xf] %vm697, %v1154
  %1175 = vst.msk [vmem:[#allocation3 + $0x30] sm:$0xf] %vm697, %v1156
  %1176 = vst.msk [vmem:[#allocation3 + $0x34] sm:$0xf] %vm697, %v1158
  %1177 = vst.msk [vmem:[#allocation3 + $0x38] sm:$0xf] %vm697, %v1160
  %1178 = vst.msk [vmem:[#allocation3 + $0x3c] sm:$0xf] %vm697, %v1162
  %v1179 = vld [vmem:[#allocation3] sm:$0xf]
  %v1180 = vld [vmem:[#allocation3 + $0x4] sm:$0xf]
  %v1181 = vld [vmem:[#allocation3 + $0x8] sm:$0xf]
  %v1182 = vld [vmem:[#allocation3 + $0xc] sm:$0xf]
  %v1183 = vld [vmem:[#allocation3 + $0x10] sm:$0xf]
  %v1184 = vld [vmem:[#allocation3 + $0x14] sm:$0xf]
  %v1185 = vld [vmem:[#allocation3 + $0x18] sm:$0xf]
  %v1186 = vld [vmem:[#allocation3 + $0x1c] sm:$0xf]
  %v1187 = vld [vmem:[#allocation3 + $0x20] sm:$0xf]
  %v1188 = vld [vmem:[#allocation3 + $0x24] sm:$0xf]
  %v1189 = vld [vmem:[#allocation3 + $0x28] sm:$0xf]
  %v1190 = vld [vmem:[#allocation3 + $0x2c] sm:$0xf]
  %v1191 = vld [vmem:[#allocation3 + $0x30] sm:$0xf]
  %v1192 = vld [vmem:[#allocation3 + $0x34] sm:$0xf]
  %v1193 = vld [vmem:[#allocation3 + $0x38] sm:$0xf]
  %v1194 = vld [vmem:[#allocation3 + $0x3c] sm:$0xf]
  %v1195 = vld [vmem:[%s1] sm:$0xf]
  %v1196 = vld [vmem:[%s1 + $0x4] sm:$0xf]
  %v1197 = vld [vmem:[%s1 + $0x8] sm:$0xf]
  %v1198 = vld [vmem:[%s1 + $0xc] sm:$0xf]
  %v1199 = vld [vmem:[%s1 + $0x10] sm:$0x3]
  %v1200 = vld [vmem:[%s2] sm:$0x1]
  %v1202 = vperm.slane %v1200, 0
  %v1220 = vunpack.c.l.b16 %v1179
  %v1221 = vunpack.c.l.b16 %v1180
  %v1222 = vunpack.c.l.b16 %v1181
  %v1223 = vunpack.c.l.b16 %v1182
  %v1224 = vunpack.c.l.b16 %v1183
  %v1225 = vunpack.c.l.b16 %v1184
  %v1226 = vunpack.c.l.b16 %v1185
  %v1227 = vunpack.c.l.b16 %v1186
  %v1228 = vunpack.c.l.b16 %v1187
  %v1229 = vunpack.c.l.b16 %v1188
  %v1230 = vunpack.c.l.b16 %v1189
  %v1231 = vunpack.c.l.b16 %v1190
  %v1232 = vunpack.c.l.b16 %v1191
  %v1233 = vunpack.c.l.b16 %v1192
  %v1234 = vunpack.c.l.b16 %v1193
  %v1235 = vunpack.c.l.b16 %v1194
  %v1236 = vpack.c.b16 %v1221, %v1220
  %v1237 = vpack.c.b16 %v1223, %v1222
  %v1238 = vpack.c.b16 %v1225, %v1224
  %v1239 = vpack.c.b16 %v1227, %v1226
  %v1240 = vpack.c.b16 %v1229, %v1228
  %v1241 = vpack.c.b16 %v1231, %v1230
  %v1242 = vpack.c.b16 %v1233, %v1232
  %v1243 = vpack.c.b16 %v1235, %v1234
  %v1249 = vunpack.c.l.b16 %v1195
  %v1250 = vunpack.c.l.b16 %v1196
  %v1251 = vunpack.c.l.b16 %v1197
  %v1252 = vunpack.c.l.b16 %v1198
  %v1253 = vunpack.c.l.b16 %v1199
  %v1254 = vpack.c.b16 %v1250, %v1249
  %v1255 = vpack.c.b16 %v1252, %v1251
  %v1256 = vpack.c.b16 %v1253, %v1253
  %vm1259 = vcmask 293888
  %v1261 = vsel %vm1259, %v1236, 0
  %v1264 = vsel %vm1259, %v1237, 0
  %v1267 = vsel %vm1259, %v1238, 0
  %v1270 = vsel %vm1259, %v1239, 0
  %v1273 = vsel %vm1259, %v1240, 0
  %v1276 = vsel %vm1259, %v1241, 0
  %v1279 = vsel %vm1259, %v1242, 0
  %v1282 = vsel %vm1259, %v1243, 0
  %vm1284 = vcmask 1041408
  %v1286 = vsel %vm1284, %v1256, 0
  %1288 = vmatpush.bf16.msra.mxu0 0
  %1289 = vmatpush.bf16.msra.mxu0 0
  %1290 = vmatpush.bf16.msra.mxu0 0
  %1291 = vmatpush.bf16.msra.mxu0 0
  %1292 = vmatpush.bf16.msra.mxu0 0
  %1293 = vmatpush.bf16.msra.mxu0 %v1286
  %1294 = vmatpush.bf16.msra.mxu0 %v1255
  %1295 = vmatpush.bf16.msra.mxu0 %v1254
  %1296 = vmatmul.bf16.gmra.mxu0 %v1261
  %v1297 = vpop.f32.mrf.mxu0
  %v1298 = vadd.f32 %v1202, %v1297
  %v1299 = vpop.f32.mrf.mxu0
  %v1300 = vadd.f32 %v1202, %v1299
  %1301 = vmatmul.bf16.gmra.mxu0 %v1264
  %v1302 = vpop.f32.mrf.mxu0
  %v1303 = vadd.f32 %v1202, %v1302
  %v1304 = vpop.f32.mrf.mxu0
  %v1305 = vadd.f32 %v1202, %v1304
  %1306 = vmatmul.bf16.gmra.mxu0 %v1267
  %v1307 = vpop.f32.mrf.mxu0
  %v1308 = vadd.f32 %v1202, %v1307
  %v1309 = vpop.f32.mrf.mxu0
  %v1310 = vadd.f32 %v1202, %v1309
  %1311 = vmatmul.bf16.gmra.mxu0 %v1270
  %v1312 = vpop.f32.mrf.mxu0
  %v1313 = vadd.f32 %v1202, %v1312
  %v1314 = vpop.f32.mrf.mxu0
  %v1315 = vadd.f32 %v1202, %v1314
  %1316 = vmatmul.bf16.gmra.mxu0 %v1273
  %v1317 = vpop.f32.mrf.mxu0
  %v1318 = vadd.f32 %v1202, %v1317
  %v1319 = vpop.f32.mrf.mxu0
  %v1320 = vadd.f32 %v1202, %v1319
  %1321 = vmatmul.bf16.gmra.mxu0 %v1276
  %v1322 = vpop.f32.mrf.mxu0
  %v1323 = vadd.f32 %v1202, %v1322
  %v1324 = vpop.f32.mrf.mxu0
  %v1325 = vadd.f32 %v1202, %v1324
  %1326 = vmatmul.bf16.gmra.mxu0 %v1279
  %v1327 = vpop.f32.mrf.mxu0
  %v1328 = vadd.f32 %v1202, %v1327
  %v1329 = vpop.f32.mrf.mxu0
  %v1330 = vadd.f32 %v1202, %v1329
  %1331 = vmatmul.bf16.gmra.mxu0 %v1282
  %v1332 = vpop.f32.mrf.mxu0
  %v1333 = vadd.f32 %v1202, %v1332
  %v1334 = vpop.f32.mrf.mxu0
  %v1335 = vadd.f32 %v1202, %v1334
  %1336 = vdwg.mxu0
  %v1337 = vpack.c.bf16 %v1298, %v1298
  %v1338 = vpack.c.bf16 %v1300, %v1300
  %v1339 = vpack.c.bf16 %v1303, %v1303
  %v1340 = vpack.c.bf16 %v1305, %v1305
  %v1341 = vpack.c.bf16 %v1308, %v1308
  %v1342 = vpack.c.bf16 %v1310, %v1310
  %v1343 = vpack.c.bf16 %v1313, %v1313
  %v1344 = vpack.c.bf16 %v1315, %v1315
  %vm1345 = vcmask 60416
  %1346 = vst.msk [vmem:[%s3] sm:$0xf] %vm1345, %v1337
  %1347 = vst.msk [vmem:[%s3 + $0x4] sm:$0xf] %vm1345, %v1338
  %1348 = vst.msk [vmem:[%s3 + $0x8] sm:$0xf] %vm1345, %v1339
  %1349 = vst.msk [vmem:[%s3 + $0xc] sm:$0xf] %vm1345, %v1340
  %1350 = vst.msk [vmem:[%s3 + $0x10] sm:$0xf] %vm1345, %v1341
  %1351 = vst.msk [vmem:[%s3 + $0x14] sm:$0xf] %vm1345, %v1342
  %1352 = vst.msk [vmem:[%s3 + $0x18] sm:$0xf] %vm1345, %v1343
  %1353 = vst.msk [vmem:[%s3 + $0x1c] sm:$0xf] %vm1345, %v1344
  %v1354 = vpack.c.bf16 %v1318, %v1318
  %v1355 = vpack.c.bf16 %v1320, %v1320
  %v1356 = vpack.c.bf16 %v1323, %v1323
  %v1357 = vpack.c.bf16 %v1325, %v1325
  %v1358 = vpack.c.bf16 %v1328, %v1328
  %v1359 = vpack.c.bf16 %v1330, %v1330
  %v1360 = vpack.c.bf16 %v1333, %v1333
  %v1361 = vpack.c.bf16 %v1335, %v1335
  %s1362 = scalar_lea.vmem %s3, 32
  %1363 = vst.msk [vmem:[%s1362] sm:$0xf] %vm1345, %v1354
  %1364 = vst.msk [vmem:[%s1362 + $0x4] sm:$0xf] %vm1345, %v1355
  %1365 = vst.msk [vmem:[%s1362 + $0x8] sm:$0xf] %vm1345, %v1356
  %1366 = vst.msk [vmem:[%s1362 + $0xc] sm:$0xf] %vm1345, %v1357
  %1367 = vst.msk [vmem:[%s1362 + $0x10] sm:$0xf] %vm1345, %v1358
  %1368 = vst.msk [vmem:[%s1362 + $0x14] sm:$0xf] %vm1345, %v1359
  %1369 = vst.msk [vmem:[%s1362 + $0x18] sm:$0xf] %vm1345, %v1360
  %1370 = vst.msk [vmem:[%s1362 + $0x1c] sm:$0xf] %vm1345, %v1361
  %vm1371 = vcmask 64512
  %v1372 = vsel %vm1371, %v1298, 0.0
  %v1373 = vsel %vm1371, %v1300, 0.0
  %v1374 = vadd.f32 %v1372, %v1373
  %v1375 = vsel %vm1371, %v1303, 0.0
  %v1376 = vadd.f32 %v1374, %v1375
  %v1377 = vsel %vm1371, %v1305, 0.0
  %v1378 = vadd.f32 %v1376, %v1377
  %v1379 = vsel %vm1371, %v1308, 0.0
  %v1380 = vadd.f32 %v1378, %v1379
  %v1381 = vsel %vm1371, %v1310, 0.0
  %v1382 = vadd.f32 %v1380, %v1381
  %v1383 = vsel %vm1371, %v1313, 0.0
  %v1384 = vadd.f32 %v1382, %v1383
  %v1385 = vsel %vm1371, %v1315, 0.0
  %v1386 = vadd.f32 %v1384, %v1385
  %v1387 = vsel %vm1371, %v1318, 0.0
  %v1388 = vadd.f32 %v1386, %v1387
  %v1389 = vsel %vm1371, %v1320, 0.0
  %v1390 = vadd.f32 %v1388, %v1389
  %v1391 = vsel %vm1371, %v1323, 0.0
  %v1392 = vadd.f32 %v1390, %v1391
  %v1393 = vsel %vm1371, %v1325, 0.0
  %v1394 = vadd.f32 %v1392, %v1393
  %v1395 = vsel %vm1371, %v1328, 0.0
  %v1396 = vadd.f32 %v1394, %v1395
  %v1397 = vsel %vm1371, %v1330, 0.0
  %v1398 = vadd.f32 %v1396, %v1397
  %v1399 = vsel %vm1371, %v1333, 0.0
  %v1400 = vadd.f32 %v1398, %v1399
  %v1401 = vsel %vm1371, %v1335, 0.0
  %v1402 = vadd.f32 %v1400, %v1401
  %v1403 = vrot.slane %v1402, 4
  %v1404 = vadd.f32 %v1402, %v1403
  %v1405 = vrot.slane %v1404, 2
  %v1406 = vadd.f32 %v1404, %v1405
  %v1407 = vrot.slane %v1406, 1
  %v1408 = vadd.f32 %v1406, %v1407
  %v1409 = vadd.f32 %v1408, 0.0
  %v1410 = vmul.f32 %v1298, %v1298
  %v1411 = vmul.f32 %v1300, %v1300
  %v1412 = vmul.f32 %v1303, %v1303
  %v1413 = vmul.f32 %v1305, %v1305
  %v1414 = vmul.f32 %v1308, %v1308
  %v1415 = vmul.f32 %v1310, %v1310
  %v1416 = vmul.f32 %v1313, %v1313
  %v1417 = vmul.f32 %v1315, %v1315
  %v1418 = vmul.f32 %v1318, %v1318
  %v1419 = vmul.f32 %v1320, %v1320
  %v1420 = vmul.f32 %v1323, %v1323
  %v1421 = vmul.f32 %v1325, %v1325
  %v1422 = vmul.f32 %v1328, %v1328
  %v1423 = vmul.f32 %v1330, %v1330
  %v1424 = vmul.f32 %v1333, %v1333
  %v1425 = vmul.f32 %v1335, %v1335
  %v1426 = vsel %vm1371, %v1410, 0.0
  %v1427 = vsel %vm1371, %v1411, 0.0
  %v1428 = vadd.f32 %v1426, %v1427
  %v1429 = vsel %vm1371, %v1412, 0.0
  %v1430 = vadd.f32 %v1428, %v1429
  %v1431 = vsel %vm1371, %v1413, 0.0
  %v1432 = vadd.f32 %v1430, %v1431
  %v1433 = vsel %vm1371, %v1414, 0.0
  %v1434 = vadd.f32 %v1432, %v1433
  %v1435 = vsel %vm1371, %v1415, 0.0
  %v1436 = vadd.f32 %v1434, %v1435
  %v1437 = vsel %vm1371, %v1416, 0.0
  %v1438 = vadd.f32 %v1436, %v1437
  %v1439 = vsel %vm1371, %v1417, 0.0
  %v1440 = vadd.f32 %v1438, %v1439
  %v1441 = vsel %vm1371, %v1418, 0.0
  %v1442 = vadd.f32 %v1440, %v1441
  %v1443 = vsel %vm1371, %v1419, 0.0
  %v1444 = vadd.f32 %v1442, %v1443
  %v1445 = vsel %vm1371, %v1420, 0.0
  %v1446 = vadd.f32 %v1444, %v1445
  %v1447 = vsel %vm1371, %v1421, 0.0
  %v1448 = vadd.f32 %v1446, %v1447
  %v1449 = vsel %vm1371, %v1422, 0.0
  %v1450 = vadd.f32 %v1448, %v1449
  %v1451 = vsel %vm1371, %v1423, 0.0
  %v1452 = vadd.f32 %v1450, %v1451
  %v1453 = vsel %vm1371, %v1424, 0.0
  %v1454 = vadd.f32 %v1452, %v1453
  %v1455 = vsel %vm1371, %v1425, 0.0
  %v1456 = vadd.f32 %v1454, %v1455
  %v1457 = vrot.slane %v1456, 4
  %v1458 = vadd.f32 %v1456, %v1457
  %v1459 = vrot.slane %v1458, 2
  %v1460 = vadd.f32 %v1458, %v1459
  %v1461 = vrot.slane %v1460, 1
  %v1462 = vadd.f32 %v1460, %v1461
  %v1463 = vadd.f32 %v1462, 0.0
  %vm1464 = vcmask 57344
  %1465 = vst.msk [vmem:[%s4] sm:$0x1] %vm1464, %v1409
  %1466 = vst.msk [vmem:[%s5] sm:$0x1] %vm1464, %v1463
  // Predicated region
  $region14: #{down_forward.2} parent=0 // pred_check
    _
  $region15: #{down_forward.2} parent=0 // pred_check_branch
    %1468 = sbr.rel (0) target = $region17
  $region16: #{down_forward.2} parent=0 // pred_region
    _
  $region17: #{down_forward.2} parent=0 // pred_fallthru
    _
  // Predicated region
  $region18: #{down_forward.2} parent=0 // pred_check
    _
  $region19: #{down_forward.2} parent=0 // pred_check_branch
    %1470 = sbr.rel (0) target = $region21
  $region20: #{down_forward.2} parent=0 // pred_region
    _
  $region21: #{down_forward.2} parent=0 // pred_fallthru
    _
  // Predicated region
  $region22: #{down_forward.2} parent=0 // pred_check
    _
  $region23: #{down_forward.2} parent=0 // pred_check_branch
    %1472 = sbr.rel (0) target = $region25
  $region24: #{down_forward.2} parent=0 // pred_region
    _
  $region25: #{down_forward.2} parent=0 // pred_fallthru
    _
  // Predicated region
  $region26: #{down_forward.2} parent=0 // pred_check
    _
  $region27: #{down_forward.2} parent=0 // pred_check_branch
    %1474 = sbr.rel (0) target = $region29
  $region28: #{down_forward.2} parent=0 // pred_region
    _
  $region29: #{down_forward.2} parent=0 // pred_fallthru
    _
  // Predicated region
  $region30: #{down_forward.2} parent=0 // pred_check
    _
  $region31: #{down_forward.2} parent=0 // pred_check_branch
    %1476 = sbr.rel (0) target = $region33
  $region32: #{down_forward.2} parent=0 // pred_region
    _
  $region33: #{down_forward.2} parent=0 // pred_fallthru
    _
  // Predicated region
  $region34: #{down_forward.2} parent=0 // pred_check
    _
  $region35: #{down_forward.2} parent=0 // pred_check_branch
    %1478 = sbr.rel (0) target = $region37
  $region36: #{down_forward.2} parent=0 // pred_region
    _
  $region37: #{down_forward.2} parent=0 // pred_fallthru
    _

// kernel: down_forward.3
$region0: #{down_forward.3}
  #allocation0 [shape = 'u32[]', space=smem, size = 0x4, offset = 0x4, fixed_abs, tag = 'smem constant byte address 0x4 - core index']
  #allocation1 [shape = 'u32[72,128]{1,0:T(1,128)}', space=vmem, size = 0x9000, scoped, tag = 'internal scratch']
  #allocation2 [shape = 'f32[2,10,17,8]{3,2,1,0:T(8,128)}', space=vmem, size = 0x3c000, scoped, tag = 'scratch operand']
  #allocation3 [shape = 'bf16[128,72]{1,0:T(8,128)(2,1)}', space=vmem, size = 0x8000, scoped, tag = 'scratch operand']
  %s0 = inlined_call_operand.vmem [shape: bf16[2,8,8,8], index: 0, kind: input, shape index: {}]
  %s1 = inlined_call_operand.vmem [shape: f32[1,8], index: 1, kind: input, shape index: {}]
  %s2 = inlined_call_operand.vmem [shape: f32[1,8], index: 2, kind: input, shape index: {}]
  %s3 = inlined_call_operand.vmem [shape: bf16[72,8], index: 3, kind: input, shape index: {}]
  %s4 = inlined_call_operand.vmem [shape: f32[1,8], index: 4, kind: input, shape index: {}]
  %s5 = inlined_call_operand.vmem [shape: bf16[2,8,8,8], index: 5, kind: output, shape index: {0}]
  %s6 = inlined_call_operand.vmem [shape: f32[1,8], index: 6, kind: output, shape index: {1}]
  %s7 = inlined_call_operand.vmem [shape: f32[1,8], index: 7, kind: output, shape index: {2}]
  %8 = xla_tuple %s5, %s6, %s7
  %s9 = sld [smem:[#allocation0]]
  $region46: #{down_forward.3} parent=0
    _
  %s11 = ssub.s32 1, %s9
  %s12 = scalar_select 0, %s11, %s9
  // Predicated region
  $region2: #{down_forward.3} parent=0 // pred_check
    _
  $region3: #{down_forward.3} parent=0 // pred_check_branch
    %14 = sbr.rel (0) target = $region5
  $region4: #{down_forward.3} parent=0 // pred_region
    _
  $region5: #{down_forward.3} parent=0 // pred_fallthru
    _
  // Predicated region
  $region6: #{down_forward.3} parent=0 // pred_check
    _
  $region7: #{down_forward.3} parent=0 // pred_check_branch
    %16 = sbr.rel (0) target = $region9
  $region8: #{down_forward.3} parent=0 // pred_region
    _
  $region9: #{down_forward.3} parent=0 // pred_fallthru
    _
  // Predicated region
  $region10: #{down_forward.3} parent=0 // pred_check
    _
  $region11: #{down_forward.3} parent=0 // pred_check_branch
    %18 = sbr.rel (0) target = $region13
  $region12: #{down_forward.3} parent=0 // pred_region
    _
  $region13: #{down_forward.3} parent=0 // pred_fallthru
    _
  // Predicated region
  $region14: #{down_forward.3} parent=0 // pred_check
    _
  $region15: #{down_forward.3} parent=0 // pred_check_branch
    %20 = sbr.rel (0) target = $region17
  $region16: #{down_forward.3} parent=0 // pred_region
    _
  $region17: #{down_forward.3} parent=0 // pred_fallthru
    _
  // Predicated region
  $region18: #{down_forward.3} parent=0 // pred_check
    _
  $region19: #{down_forward.3} parent=0 // pred_check_branch
    %22 = sbr.rel (0) target = $region21
  $region20: #{down_forward.3} parent=0 // pred_region
    _
  $region21: #{down_forward.3} parent=0 // pred_fallthru
    _
  %v24 = vld [vmem:[%s1] sm:$0x1]
  %v25 = vld [vmem:[%s2] sm:$0x1]
  %v26 = vld [vmem:[%s0] sm:$0xf]
  %v27 = vld [vmem:[%s0 + $0x4] sm:$0xf]
  %v28 = vld [vmem:[%s0 + $0x8] sm:$0xf]
  %v29 = vld [vmem:[%s0 + $0xc] sm:$0xf]
  %v30 = vld [vmem:[%s0 + $0x10] sm:$0xf]
  %v31 = vld [vmem:[%s0 + $0x14] sm:$0xf]
  %v32 = vld [vmem:[%s0 + $0x18] sm:$0xf]
  %v33 = vld [vmem:[%s0 + $0x1c] sm:$0xf]
  %v34 = vunpack.c.l.bf16 %v26
  %v35 = vunpack.c.l.bf16 %v27
  %v36 = vunpack.c.l.bf16 %v28
  %v37 = vunpack.c.l.bf16 %v29
  %v38 = vunpack.c.l.bf16 %v30
  %v39 = vunpack.c.l.bf16 %v31
  %v40 = vunpack.c.l.bf16 %v32
  %v41 = vunpack.c.l.bf16 %v33
  %v43 = vperm.slane %v24, 0
  %v45 = vmul.f32 %v34, %v43
  %v46 = vmul.f32 %v35, %v43
  %v47 = vmul.f32 %v36, %v43
  %v48 = vmul.f32 %v37, %v43
  %v49 = vmul.f32 %v38, %v43
  %v50 = vmul.f32 %v39, %v43
  %v51 = vmul.f32 %v40, %v43
  %v52 = vmul.f32 %v41, %v43
  %v54 = vperm.slane %v25, 0
  %v56 = vadd.f32 %v45, %v54
  %v57 = vadd.f32 %v46, %v54
  %v58 = vadd.f32 %v47, %v54
  %v59 = vadd.f32 %v48, %v54
  %v60 = vadd.f32 %v49, %v54
  %v61 = vadd.f32 %v50, %v54
  %v62 = vadd.f32 %v51, %v54
  %v63 = vadd.f32 %v52, %v54
  %v64 = vmax.f32 %v56, 0.0
  %v65 = vmax.f32 %v57, 0.0
  %v66 = vmax.f32 %v58, 0.0
  %v67 = vmax.f32 %v59, 0.0
  %v68 = vmax.f32 %v60, 0.0
  %v69 = vmax.f32 %v61, 0.0
  %v70 = vmax.f32 %v62, 0.0
  %v71 = vmax.f32 %v63, 0.0
  %vm72 = vcmask 64512
  %73 = vst.msk [vmem:[#allocation2] sm:$0xff] %vm72, 0.0
  %74 = vst.msk [vmem:[#allocation2 + $0x8] sm:$0xff] %vm72, 0.0
  %vm75 = vcmask 57344
  %76 = vst.msk [vmem:[#allocation2 + $0x10] sm:$0x1] %vm75, 0.0
  %s77 = scalar_lea.vmem [#allocation2], 216
  %78 = vst.msk [vmem:[%s77] sm:$0xff] %vm72, 0.0
  %79 = vst.msk [vmem:[%s77 + $0x8] sm:$0xff] %vm72, 0.0
  %80 = vst.msk [vmem:[%s77 + $0x10] sm:$0x1] %vm75, 0.0
  %81 = vst.msk [vmem:[#allocation2] sm:$0xff] %vm72, 0.0
  %82 = vst.msk [vmem:[#allocation2 + $0x18] sm:$0xff] %vm72, 0.0
  %83 = vst.msk [vmem:[#allocation2 + $0x30] sm:$0xff] %vm72, 0.0
  %84 = vst.msk [vmem:[#allocation2 + $0x48] sm:$0xff] %vm72, 0.0
  %85 = vst.msk [vmem:[#allocation2 + $0x60] sm:$0xff] %vm72, 0.0
  %86 = vst.msk [vmem:[#allocation2 + $0x78] sm:$0xff] %vm72, 0.0
  %87 = vst.msk [vmem:[#allocation2 + $0x90] sm:$0xff] %vm72, 0.0
  %88 = vst.msk [vmem:[#allocation2 + $0xa8] sm:$0xff] %vm72, 0.0
  %89 = vst.msk [vmem:[#allocation2 + $0xc0] sm:$0xff] %vm72, 0.0
  %90 = vst.msk [vmem:[#allocation2 + $0xd8] sm:$0xff] %vm72, 0.0
  %91 = vst.msk [vmem:[#allocation2 + $0x10] sm:$0x1] %vm75, 0.0
  %92 = vst.msk [vmem:[#allocation2 + $0x28] sm:$0x1] %vm75, 0.0
  %93 = vst.msk [vmem:[#allocation2 + $0x40] sm:$0x1] %vm75, 0.0
  %94 = vst.msk [vmem:[#allocation2 + $0x58] sm:$0x1] %vm75, 0.0
  %95 = vst.msk [vmem:[#allocation2 + $0x70] sm:$0x1] %vm75, 0.0
  %96 = vst.msk [vmem:[#allocation2 + $0x88] sm:$0x1] %vm75, 0.0
  %97 = vst.msk [vmem:[#allocation2 + $0xa0] sm:$0x1] %vm75, 0.0
  %98 = vst.msk [vmem:[#allocation2 + $0xb8] sm:$0x1] %vm75, 0.0
  %99 = vst.msk [vmem:[#allocation2 + $0xd0] sm:$0x1] %vm75, 0.0
  %100 = vst.msk [vmem:[#allocation2 + $0xe8] sm:$0x1] %vm75, 0.0
  %s101 = scalar_lea.vmem [#allocation2], 24
  %102 = vst.msk [vmem:[%s101 + $0x8] sm:$0xff] %vm72, %v64
  %103 = vst.msk [vmem:[%s101 + $0x20] sm:$0xff] %vm72, %v65
  %104 = vst.msk [vmem:[%s101 + $0x38] sm:$0xff] %vm72, %v66
  %105 = vst.msk [vmem:[%s101 + $0x50] sm:$0xff] %vm72, %v67
  %106 = vst.msk [vmem:[%s101 + $0x68] sm:$0xff] %vm72, %v68
  %107 = vst.msk [vmem:[%s101 + $0x80] sm:$0xff] %vm72, %v69
  %108 = vst.msk [vmem:[%s101 + $0x98] sm:$0xff] %vm72, %v70
  %109 = vst.msk [vmem:[%s101 + $0xb0] sm:$0xff] %vm72, %v71
  %s110 = scalar_lea.vmem %s0, 32
  %v111 = vld [vmem:[%s110] sm:$0xf]
  %v112 = vld [vmem:[%s110 + $0x4] sm:$0xf]
  %v113 = vld [vmem:[%s110 + $0x8] sm:$0xf]
  %v114 = vld [vmem:[%s110 + $0xc] sm:$0xf]
  %v115 = vld [vmem:[%s110 + $0x10] sm:$0xf]
  %v116 = vld [vmem:[%s110 + $0x14] sm:$0xf]
  %v117 = vld [vmem:[%s110 + $0x18] sm:$0xf]
  %v118 = vld [vmem:[%s110 + $0x1c] sm:$0xf]
  %v119 = vunpack.c.l.bf16 %v111
  %v120 = vunpack.c.l.bf16 %v112
  %v121 = vunpack.c.l.bf16 %v113
  %v122 = vunpack.c.l.bf16 %v114
  %v123 = vunpack.c.l.bf16 %v115
  %v124 = vunpack.c.l.bf16 %v116
  %v125 = vunpack.c.l.bf16 %v117
  %v126 = vunpack.c.l.bf16 %v118
  %v127 = vmul.f32 %v119, %v43
  %v128 = vmul.f32 %v120, %v43
  %v129 = vmul.f32 %v121, %v43
  %v130 = vmul.f32 %v122, %v43
  %v131 = vmul.f32 %v123, %v43
  %v132 = vmul.f32 %v124, %v43
  %v133 = vmul.f32 %v125, %v43
  %v134 = vmul.f32 %v126, %v43
  %v135 = vadd.f32 %v127, %v54
  %v136 = vadd.f32 %v128, %v54
  %v137 = vadd.f32 %v129, %v54
  %v138 = vadd.f32 %v130, %v54
  %v139 = vadd.f32 %v131, %v54
  %v140 = vadd.f32 %v132, %v54
  %v141 = vadd.f32 %v133, %v54
  %v142 = vadd.f32 %v134, %v54
  %v143 = vmax.f32 %v135, 0.0
  %v144 = vmax.f32 %v136, 0.0
  %v145 = vmax.f32 %v137, 0.0
  %v146 = vmax.f32 %v138, 0.0
  %v147 = vmax.f32 %v139, 0.0
  %v148 = vmax.f32 %v140, 0.0
  %v149 = vmax.f32 %v141, 0.0
  %v150 = vmax.f32 %v142, 0.0
  %s151 = scalar_lea.vmem [#allocation2], 240
  %152 = vst.msk [vmem:[%s151] sm:$0xff] %vm72, 0.0
  %153 = vst.msk [vmem:[%s151 + $0x8] sm:$0xff] %vm72, 0.0
  %154 = vst.msk [vmem:[%s151 + $0x10] sm:$0x1] %vm75, 0.0
  %s155 = scalar_lea.vmem [#allocation2], 456
  %156 = vst.msk [vmem:[%s155] sm:$0xff] %vm72, 0.0
  %157 = vst.msk [vmem:[%s155 + $0x8] sm:$0xff] %vm72, 0.0
  %158 = vst.msk [vmem:[%s155 + $0x10] sm:$0x1] %vm75, 0.0
  %159 = vst.msk [vmem:[%s151] sm:$0xff] %vm72, 0.0
  %160 = vst.msk [vmem:[%s151 + $0x18] sm:$0xff] %vm72, 0.0
  %161 = vst.msk [vmem:[%s151 + $0x30] sm:$0xff] %vm72, 0.0
  %162 = vst.msk [vmem:[%s151 + $0x48] sm:$0xff] %vm72, 0.0
  %163 = vst.msk [vmem:[%s151 + $0x60] sm:$0xff] %vm72, 0.0
  %164 = vst.msk [vmem:[%s151 + $0x78] sm:$0xff] %vm72, 0.0
  %165 = vst.msk [vmem:[%s151 + $0x90] sm:$0xff] %vm72, 0.0
  %166 = vst.msk [vmem:[%s151 + $0xa8] sm:$0xff] %vm72, 0.0
  %167 = vst.msk [vmem:[%s151 + $0xc0] sm:$0xff] %vm72, 0.0
  %168 = vst.msk [vmem:[%s151 + $0xd8] sm:$0xff] %vm72, 0.0
  %169 = vst.msk [vmem:[%s151 + $0x10] sm:$0x1] %vm75, 0.0
  %170 = vst.msk [vmem:[%s151 + $0x28] sm:$0x1] %vm75, 0.0
  %171 = vst.msk [vmem:[%s151 + $0x40] sm:$0x1] %vm75, 0.0
  %172 = vst.msk [vmem:[%s151 + $0x58] sm:$0x1] %vm75, 0.0
  %173 = vst.msk [vmem:[%s151 + $0x70] sm:$0x1] %vm75, 0.0
  %174 = vst.msk [vmem:[%s151 + $0x88] sm:$0x1] %vm75, 0.0
  %175 = vst.msk [vmem:[%s151 + $0xa0] sm:$0x1] %vm75, 0.0
  %176 = vst.msk [vmem:[%s151 + $0xb8] sm:$0x1] %vm75, 0.0
  %177 = vst.msk [vmem:[%s151 + $0xd0] sm:$0x1] %vm75, 0.0
  %178 = vst.msk [vmem:[%s151 + $0xe8] sm:$0x1] %vm75, 0.0
  %s179 = scalar_lea.vmem [#allocation2], 264
  %180 = vst.msk [vmem:[%s179 + $0x8] sm:$0xff] %vm72, %v143
  %181 = vst.msk [vmem:[%s179 + $0x20] sm:$0xff] %vm72, %v144
  %182 = vst.msk [vmem:[%s179 + $0x38] sm:$0xff] %vm72, %v145
  %183 = vst.msk [vmem:[%s179 + $0x50] sm:$0xff] %vm72, %v146
  %184 = vst.msk [vmem:[%s179 + $0x68] sm:$0xff] %vm72, %v147
  %185 = vst.msk [vmem:[%s179 + $0x80] sm:$0xff] %vm72, %v148
  %186 = vst.msk [vmem:[%s179 + $0x98] sm:$0xff] %vm72, %v149
  %187 = vst.msk [vmem:[%s179 + $0xb0] sm:$0xff] %vm72, %v150
  %v188 = vld [vmem:[#allocation2 + $0x7] sm:$0xff]
  %v189 = vld [vmem:[#allocation2 + $0x1f] sm:$0xff]
  %v190 = vld [vmem:[#allocation2 + $0x37] sm:$0xff]
  %v191 = vld [vmem:[#allocation2 + $0x4f] sm:$0xff]
  %v192 = vld [vmem:[#allocation2 + $0x67] sm:$0xff]
  %v193 = vld [vmem:[#allocation2 + $0x7f] sm:$0xff]
  %v194 = vld [vmem:[#allocation2 + $0x97] sm:$0xff]
  %v195 = vld [vmem:[#allocation2 + $0xaf] sm:$0xff]
  %v196 = vpack.c.bf16 %v188, %v188
  %v197 = vpack.c.bf16 %v189, %v189
  %v198 = vpack.c.bf16 %v190, %v190
  %v199 = vpack.c.bf16 %v191, %v191
  %v200 = vpack.c.bf16 %v192, %v192
  %v201 = vpack.c.bf16 %v193, %v193
  %v202 = vpack.c.bf16 %v194, %v194
  %v203 = vpack.c.bf16 %v195, %v195
  %vm204 = vcmask 60416
  %205 = vst.msk [vmem:[#allocation3] sm:$0xf] %vm204, %v196
  %206 = vst.msk [vmem:[#allocation3 + $0x4] sm:$0xf] %vm204, %v197
  %207 = vst.msk [vmem:[#allocation3 + $0x8] sm:$0xf] %vm204, %v198
  %208 = vst.msk [vmem:[#allocation3 + $0xc] sm:$0xf] %vm204, %v199
  %209 = vst.msk [vmem:[#allocation3 + $0x10] sm:$0xf] %vm204, %v200
  %210 = vst.msk [vmem:[#allocation3 + $0x14] sm:$0xf] %vm204, %v201
  %211 = vst.msk [vmem:[#allocation3 + $0x18] sm:$0xf] %vm204, %v202
  %212 = vst.msk [vmem:[#allocation3 + $0x1c] sm:$0xf] %vm204, %v203
  %v213 = vld [vmem:[#allocation2 + $0x8] sm:$0xff]
  %v214 = vld [vmem:[#allocation2 + $0x20] sm:$0xff]
  %v215 = vld [vmem:[#allocation2 + $0x38] sm:$0xff]
  %v216 = vld [vmem:[#allocation2 + $0x50] sm:$0xff]
  %v217 = vld [vmem:[#allocation2 + $0x68] sm:$0xff]
  %v218 = vld [vmem:[#allocation2 + $0x80] sm:$0xff]
  %v219 = vld [vmem:[#allocation2 + $0x98] sm:$0xff]
  %v220 = vld [vmem:[#allocation2 + $0xb0] sm:$0xff]
  %v221 = vpack.c.bf16 %v213, %v213
  %v222 = vpack.c.bf16 %v214, %v214
  %v223 = vpack.c.bf16 %v215, %v215
  %v224 = vpack.c.bf16 %v216, %v216
  %v225 = vpack.c.bf16 %v217, %v217
  %v226 = vpack.c.bf16 %v218, %v218
  %v227 = vpack.c.bf16 %v219, %v219
  %v228 = vpack.c.bf16 %v220, %v220
  %237 = vrot.lane.b32.xlu0 %v221, 8
  %v238 = vpop.permute.xlu0 %237
  %239 = vrot.lane.b32.xlu0 %v222, 8
  %v240 = vpop.permute.xlu0 %239
  %241 = vrot.lane.b32.xlu0 %v223, 8
  %v242 = vpop.permute.xlu0 %241
  %243 = vrot.lane.b32.xlu0 %v224, 8
  %v244 = vpop.permute.xlu0 %243
  %245 = vrot.lane.b32.xlu0 %v225, 8
  %v246 = vpop.permute.xlu0 %245
  %247 = vrot.lane.b32.xlu0 %v226, 8
  %v248 = vpop.permute.xlu0 %247
  %249 = vrot.lane.b32.xlu0 %v227, 8
  %v250 = vpop.permute.xlu0 %249
  %251 = vrot.lane.b32.xlu0 %v228, 8
  %v252 = vpop.permute.xlu0 %251
  %vm261 = vcmask 126016
  %262 = vst.msk [vmem:[#allocation3] sm:$0xf] %vm261, %v238
  %263 = vst.msk [vmem:[#allocation3 + $0x4] sm:$0xf] %vm261, %v240
  %264 = vst.msk [vmem:[#allocation3 + $0x8] sm:$0xf] %vm261, %v242
  %265 = vst.msk [vmem:[#allocation3 + $0xc] sm:$0xf] %vm261, %v244
  %266 = vst.msk [vmem:[#allocation3 + $0x10] sm:$0xf] %vm261, %v246
  %267 = vst.msk [vmem:[#allocation3 + $0x14] sm:$0xf] %vm261, %v248
  %268 = vst.msk [vmem:[#allocation3 + $0x18] sm:$0xf] %vm261, %v250
  %269 = vst.msk [vmem:[#allocation3 + $0x1c] sm:$0xf] %vm261, %v252
  %v270 = vld [vmem:[#allocation2 + $0x9] sm:$0xff]
  %v271 = vld [vmem:[#allocation2 + $0x21] sm:$0xff]
  %v272 = vld [vmem:[#allocation2 + $0x39] sm:$0xff]
  %v273 = vld [vmem:[#allocation2 + $0x51] sm:$0xff]
  %v274 = vld [vmem:[#allocation2 + $0x69] sm:$0xff]
  %v275 = vld [vmem:[#allocation2 + $0x81] sm:$0xff]
  %v276 = vld [vmem:[#allocation2 + $0x99] sm:$0xff]
  %v277 = vld [vmem:[#allocation2 + $0xb1] sm:$0xff]
  %v278 = vpack.c.bf16 %v270, %v270
  %v279 = vpack.c.bf16 %v271, %v271
  %v280 = vpack.c.bf16 %v272, %v272
  %v281 = vpack.c.bf16 %v273, %v273
  %v282 = vpack.c.bf16 %v274, %v274
  %v283 = vpack.c.bf16 %v275, %v275
  %v284 = vpack.c.bf16 %v276, %v276
  %v285 = vpack.c.bf16 %v277, %v277
  %294 = vrot.lane.b32.xlu0 %v278, 16
  %v295 = vpop.permute.xlu0 %294
  %296 = vrot.lane.b32.xlu0 %v279, 16
  %v297 = vpop.permute.xlu0 %296
  %298 = vrot.lane.b32.xlu0 %v280, 16
  %v299 = vpop.permute.xlu0 %298
  %300 = vrot.lane.b32.xlu0 %v281, 16
  %v301 = vpop.permute.xlu0 %300
  %302 = vrot.lane.b32.xlu0 %v282, 16
  %v303 = vpop.permute.xlu0 %302
  %304 = vrot.lane.b32.xlu0 %v283, 16
  %v305 = vpop.permute.xlu0 %304
  %306 = vrot.lane.b32.xlu0 %v284, 16
  %v307 = vpop.permute.xlu0 %306
  %308 = vrot.lane.b32.xlu0 %v285, 16
  %v309 = vpop.permute.xlu0 %308
  %vm318 = vcmask 191616
  %319 = vst.msk [vmem:[#allocation3] sm:$0xf] %vm318, %v295
  %320 = vst.msk [vmem:[#allocation3 + $0x4] sm:$0xf] %vm318, %v297
  %321 = vst.msk [vmem:[#allocation3 + $0x8] sm:$0xf] %vm318, %v299
  %322 = vst.msk [vmem:[#allocation3 + $0xc] sm:$0xf] %vm318, %v301
  %323 = vst.msk [vmem:[#allocation3 + $0x10] sm:$0xf] %vm318, %v303
  %324 = vst.msk [vmem:[#allocation3 + $0x14] sm:$0xf] %vm318, %v305
  %325 = vst.msk [vmem:[#allocation3 + $0x18] sm:$0xf] %vm318, %v307
  %326 = vst.msk [vmem:[#allocation3 + $0x1c] sm:$0xf] %vm318, %v309
  %v327 = vld [vmem:[%s101 + $0x7] sm:$0xff]
  %v328 = vld [vmem:[%s101 + $0x1f] sm:$0xff]
  %v329 = vld [vmem:[%s101 + $0x37] sm:$0xff]
  %v330 = vld [vmem:[%s101 + $0x4f] sm:$0xff]
  %v331 = vld [vmem:[%s101 + $0x67] sm:$0xff]
  %v332 = vld [vmem:[%s101 + $0x7f] sm:$0xff]
  %v333 = vld [vmem:[%s101 + $0x97] sm:$0xff]
  %v334 = vld [vmem:[%s101 + $0xaf] sm:$0xff]
  %v335 = vpack.c.bf16 %v327, %v327
  %v336 = vpack.c.bf16 %v328, %v328
  %v337 = vpack.c.bf16 %v329, %v329
  %v338 = vpack.c.bf16 %v330, %v330
  %v339 = vpack.c.bf16 %v331, %v331
  %v340 = vpack.c.bf16 %v332, %v332
  %v341 = vpack.c.bf16 %v333, %v333
  %v342 = vpack.c.bf16 %v334, %v334
  %351 = vrot.lane.b32.xlu0 %v335, 24
  %v352 = vpop.permute.xlu0 %351
  %353 = vrot.lane.b32.xlu0 %v336, 24
  %v354 = vpop.permute.xlu0 %353
  %355 = vrot.lane.b32.xlu0 %v337, 24
  %v356 = vpop.permute.xlu0 %355
  %357 = vrot.lane.b32.xlu0 %v338, 24
  %v358 = vpop.permute.xlu0 %357
  %359 = vrot.lane.b32.xlu0 %v339, 24
  %v360 = vpop.permute.xlu0 %359
  %361 = vrot.lane.b32.xlu0 %v340, 24
  %v362 = vpop.permute.xlu0 %361
  %363 = vrot.lane.b32.xlu0 %v341, 24
  %v364 = vpop.permute.xlu0 %363
  %365 = vrot.lane.b32.xlu0 %v342, 24
  %v366 = vpop.permute.xlu0 %365
  %vm375 = vcmask 257216
  %376 = vst.msk [vmem:[#allocation3] sm:$0xf] %vm375, %v352
  %377 = vst.msk [vmem:[#allocation3 + $0x4] sm:$0xf] %vm375, %v354
  %378 = vst.msk [vmem:[#allocation3 + $0x8] sm:$0xf] %vm375, %v356
  %379 = vst.msk [vmem:[#allocation3 + $0xc] sm:$0xf] %vm375, %v358
  %380 = vst.msk [vmem:[#allocation3 + $0x10] sm:$0xf] %vm375, %v360
  %381 = vst.msk [vmem:[#allocation3 + $0x14] sm:$0xf] %vm375, %v362
  %382 = vst.msk [vmem:[#allocation3 + $0x18] sm:$0xf] %vm375, %v364
  %383 = vst.msk [vmem:[#allocation3 + $0x1c] sm:$0xf] %vm375, %v366
  %v384 = vld [vmem:[%s101 + $0x8] sm:$0xff]
  %v385 = vld [vmem:[%s101 + $0x20] sm:$0xff]
  %v386 = vld [vmem:[%s101 + $0x38] sm:$0xff]
  %v387 = vld [vmem:[%s101 + $0x50] sm:$0xff]
  %v388 = vld [vmem:[%s101 + $0x68] sm:$0xff]
  %v389 = vld [vmem:[%s101 + $0x80] sm:$0xff]
  %v390 = vld [vmem:[%s101 + $0x98] sm:$0xff]
  %v391 = vld [vmem:[%s101 + $0xb0] sm:$0xff]
  %v392 = vpack.c.bf16 %v384, %v384
  %v393 = vpack.c.bf16 %v385, %v385
  %v394 = vpack.c.bf16 %v386, %v386
  %v395 = vpack.c.bf16 %v387, %v387
  %v396 = vpack.c.bf16 %v388, %v388
  %v397 = vpack.c.bf16 %v389, %v389
  %v398 = vpack.c.bf16 %v390, %v390
  %v399 = vpack.c.bf16 %v391, %v391
  %408 = vrot.lane.b32.xlu0 %v392, 32
  %v409 = vpop.permute.xlu0 %408
  %410 = vrot.lane.b32.xlu0 %v393, 32
  %v411 = vpop.permute.xlu0 %410
  %412 = vrot.lane.b32.xlu0 %v394, 32
  %v413 = vpop.permute.xlu0 %412
  %414 = vrot.lane.b32.xlu0 %v395, 32
  %v415 = vpop.permute.xlu0 %414
  %416 = vrot.lane.b32.xlu0 %v396, 32
  %v417 = vpop.permute.xlu0 %416
  %418 = vrot.lane.b32.xlu0 %v397, 32
  %v419 = vpop.permute.xlu0 %418
  %420 = vrot.lane.b32.xlu0 %v398, 32
  %v421 = vpop.permute.xlu0 %420
  %422 = vrot.lane.b32.xlu0 %v399, 32
  %v423 = vpop.permute.xlu0 %422
  %vm432 = vcmask 322816
  %433 = vst.msk [vmem:[#allocation3] sm:$0xf] %vm432, %v409
  %434 = vst.msk [vmem:[#allocation3 + $0x4] sm:$0xf] %vm432, %v411
  %435 = vst.msk [vmem:[#allocation3 + $0x8] sm:$0xf] %vm432, %v413
  %436 = vst.msk [vmem:[#allocation3 + $0xc] sm:$0xf] %vm432, %v415
  %437 = vst.msk [vmem:[#allocation3 + $0x10] sm:$0xf] %vm432, %v417
  %438 = vst.msk [vmem:[#allocation3 + $0x14] sm:$0xf] %vm432, %v419
  %439 = vst.msk [vmem:[#allocation3 + $0x18] sm:$0xf] %vm432, %v421
  %440 = vst.msk [vmem:[#allocation3 + $0x1c] sm:$0xf] %vm432, %v423
  %v441 = vld [vmem:[%s101 + $0x9] sm:$0xff]
  %v442 = vld [vmem:[%s101 + $0x21] sm:$0xff]
  %v443 = vld [vmem:[%s101 + $0x39] sm:$0xff]
  %v444 = vld [vmem:[%s101 + $0x51] sm:$0xff]
  %v445 = vld [vmem:[%s101 + $0x69] sm:$0xff]
  %v446 = vld [vmem:[%s101 + $0x81] sm:$0xff]
  %v447 = vld [vmem:[%s101 + $0x99] sm:$0xff]
  %v448 = vld [vmem:[%s101 + $0xb1] sm:$0xff]
  %v449 = vpack.c.bf16 %v441, %v441
  %v450 = vpack.c.bf16 %v442, %v442
  %v451 = vpack.c.bf16 %v443, %v443
  %v452 = vpack.c.bf16 %v444, %v444
  %v453 = vpack.c.bf16 %v445, %v445
  %v454 = vpack.c.bf16 %v446, %v446
  %v455 = vpack.c.bf16 %v447, %v447
  %v456 = vpack.c.bf16 %v448, %v448
  %465 = vrot.lane.b32.xlu0 %v449, 40
  %v466 = vpop.permute.xlu0 %465
  %467 = vrot.lane.b32.xlu0 %v450, 40
  %v468 = vpop.permute.xlu0 %467
  %469 = vrot.lane.b32.xlu0 %v451, 40
  %v470 = vpop.permute.xlu0 %469
  %471 = vrot.lane.b32.xlu0 %v452, 40
  %v472 = vpop.permute.xlu0 %471
  %473 = vrot.lane.b32.xlu0 %v453, 40
  %v474 = vpop.permute.xlu0 %473
  %475 = vrot.lane.b32.xlu0 %v454, 40
  %v476 = vpop.permute.xlu0 %475
  %477 = vrot.lane.b32.xlu0 %v455, 40
  %v478 = vpop.permute.xlu0 %477
  %479 = vrot.lane.b32.xlu0 %v456, 40
  %v480 = vpop.permute.xlu0 %479
  %vm489 = vcmask 388416
  %490 = vst.msk [vmem:[#allocation3] sm:$0xf] %vm489, %v466
  %491 = vst.msk [vmem:[#allocation3 + $0x4] sm:$0xf] %vm489, %v468
  %492 = vst.msk [vmem:[#allocation3 + $0x8] sm:$0xf] %vm489, %v470
  %493 = vst.msk [vmem:[#allocation3 + $0xc] sm:$0xf] %vm489, %v472
  %494 = vst.msk [vmem:[#allocation3 + $0x10] sm:$0xf] %vm489, %v474
  %495 = vst.msk [vmem:[#allocation3 + $0x14] sm:$0xf] %vm489, %v476
  %496 = vst.msk [vmem:[#allocation3 + $0x18] sm:$0xf] %vm489, %v478
  %497 = vst.msk [vmem:[#allocation3 + $0x1c] sm:$0xf] %vm489, %v480
  %s498 = scalar_lea.vmem [#allocation2], 48
  %v499 = vld [vmem:[%s498 + $0x7] sm:$0xff]
  %v500 = vld [vmem:[%s498 + $0x1f] sm:$0xff]
  %v501 = vld [vmem:[%s498 + $0x37] sm:$0xff]
  %v502 = vld [vmem:[%s498 + $0x4f] sm:$0xff]
  %v503 = vld [vmem:[%s498 + $0x67] sm:$0xff]
  %v504 = vld [vmem:[%s498 + $0x7f] sm:$0xff]
  %v505 = vld [vmem:[%s498 + $0x97] sm:$0xff]
  %v506 = vld [vmem:[%s498 + $0xaf] sm:$0xff]
  %v507 = vpack.c.bf16 %v499, %v499
  %v508 = vpack.c.bf16 %v500, %v500
  %v509 = vpack.c.bf16 %v501, %v501
  %v510 = vpack.c.bf16 %v502, %v502
  %v511 = vpack.c.bf16 %v503, %v503
  %v512 = vpack.c.bf16 %v504, %v504
  %v513 = vpack.c.bf16 %v505, %v505
  %v514 = vpack.c.bf16 %v506, %v506
  %523 = vrot.lane.b32.xlu0 %v507, 48
  %v524 = vpop.permute.xlu0 %523
  %525 = vrot.lane.b32.xlu0 %v508, 48
  %v526 = vpop.permute.xlu0 %525
  %527 = vrot.lane.b32.xlu0 %v509, 48
  %v528 = vpop.permute.xlu0 %527
  %529 = vrot.lane.b32.xlu0 %v510, 48
  %v530 = vpop.permute.xlu0 %529
  %531 = vrot.lane.b32.xlu0 %v511, 48
  %v532 = vpop.permute.xlu0 %531
  %533 = vrot.lane.b32.xlu0 %v512, 48
  %v534 = vpop.permute.xlu0 %533
  %535 = vrot.lane.b32.xlu0 %v513, 48
  %v536 = vpop.permute.xlu0 %535
  %537 = vrot.lane.b32.xlu0 %v514, 48
  %v538 = vpop.permute.xlu0 %537
  %vm547 = vcmask 454016
  %548 = vst.msk [vmem:[#allocation3] sm:$0xf] %vm547, %v524
  %549 = vst.msk [vmem:[#allocation3 + $0x4] sm:$0xf] %vm547, %v526
  %550 = vst.msk [vmem:[#allocation3 + $0x8] sm:$0xf] %vm547, %v528
  %551 = vst.msk [vmem:[#allocation3 + $0xc] sm:$0xf] %vm547, %v530
  %552 = vst.msk [vmem:[#allocation3 + $0x10] sm:$0xf] %vm547, %v532
  %553 = vst.msk [vmem:[#allocation3 + $0x14] sm:$0xf] %vm547, %v534
  %554 = vst.msk [vmem:[#allocation3 + $0x18] sm:$0xf] %vm547, %v536
  %555 = vst.msk [vmem:[#allocation3 + $0x1c] sm:$0xf] %vm547, %v538
  %v556 = vld [vmem:[%s498 + $0x8] sm:$0xff]
  %v557 = vld [vmem:[%s498 + $0x20] sm:$0xff]
  %v558 = vld [vmem:[%s498 + $0x38] sm:$0xff]
  %v559 = vld [vmem:[%s498 + $0x50] sm:$0xff]
  %v560 = vld [vmem:[%s498 + $0x68] sm:$0xff]
  %v561 = vld [vmem:[%s498 + $0x80] sm:$0xff]
  %v562 = vld [vmem:[%s498 + $0x98] sm:$0xff]
  %v563 = vld [vmem:[%s498 + $0xb0] sm:$0xff]
  %v564 = vpack.c.bf16 %v556, %v556
  %v565 = vpack.c.bf16 %v557, %v557
  %v566 = vpack.c.bf16 %v558, %v558
  %v567 = vpack.c.bf16 %v559, %v559
  %v568 = vpack.c.bf16 %v560, %v560
  %v569 = vpack.c.bf16 %v561, %v561
  %v570 = vpack.c.bf16 %v562, %v562
  %v571 = vpack.c.bf16 %v563, %v563
  %580 = vrot.lane.b32.xlu0 %v564, 56
  %v581 = vpop.permute.xlu0 %580
  %582 = vrot.lane.b32.xlu0 %v565, 56
  %v583 = vpop.permute.xlu0 %582
  %584 = vrot.lane.b32.xlu0 %v566, 56
  %v585 = vpop.permute.xlu0 %584
  %586 = vrot.lane.b32.xlu0 %v567, 56
  %v587 = vpop.permute.xlu0 %586
  %588 = vrot.lane.b32.xlu0 %v568, 56
  %v589 = vpop.permute.xlu0 %588
  %590 = vrot.lane.b32.xlu0 %v569, 56
  %v591 = vpop.permute.xlu0 %590
  %592 = vrot.lane.b32.xlu0 %v570, 56
  %v593 = vpop.permute.xlu0 %592
  %594 = vrot.lane.b32.xlu0 %v571, 56
  %v595 = vpop.permute.xlu0 %594
  %vm604 = vcmask 519616
  %605 = vst.msk [vmem:[#allocation3] sm:$0xf] %vm604, %v581
  %606 = vst.msk [vmem:[#allocation3 + $0x4] sm:$0xf] %vm604, %v583
  %607 = vst.msk [vmem:[#allocation3 + $0x8] sm:$0xf] %vm604, %v585
  %608 = vst.msk [vmem:[#allocation3 + $0xc] sm:$0xf] %vm604, %v587
  %609 = vst.msk [vmem:[#allocation3 + $0x10] sm:$0xf] %vm604, %v589
  %610 = vst.msk [vmem:[#allocation3 + $0x14] sm:$0xf] %vm604, %v591
  %611 = vst.msk [vmem:[#allocation3 + $0x18] sm:$0xf] %vm604, %v593
  %612 = vst.msk [vmem:[#allocation3 + $0x1c] sm:$0xf] %vm604, %v595
  %v613 = vld [vmem:[%s498 + $0x9] sm:$0xff]
  %v614 = vld [vmem:[%s498 + $0x21] sm:$0xff]
  %v615 = vld [vmem:[%s498 + $0x39] sm:$0xff]
  %v616 = vld [vmem:[%s498 + $0x51] sm:$0xff]
  %v617 = vld [vmem:[%s498 + $0x69] sm:$0xff]
  %v618 = vld [vmem:[%s498 + $0x81] sm:$0xff]
  %v619 = vld [vmem:[%s498 + $0x99] sm:$0xff]
  %v620 = vld [vmem:[%s498 + $0xb1] sm:$0xff]
  %v621 = vpack.c.bf16 %v613, %v613
  %v622 = vpack.c.bf16 %v614, %v614
  %v623 = vpack.c.bf16 %v615, %v615
  %v624 = vpack.c.bf16 %v616, %v616
  %v625 = vpack.c.bf16 %v617, %v617
  %v626 = vpack.c.bf16 %v618, %v618
  %v627 = vpack.c.bf16 %v619, %v619
  %v628 = vpack.c.bf16 %v620, %v620
  %637 = vrot.lane.b32.xlu0 %v621, 64
  %v638 = vpop.permute.xlu0 %637
  %639 = vrot.lane.b32.xlu0 %v622, 64
  %v640 = vpop.permute.xlu0 %639
  %641 = vrot.lane.b32.xlu0 %v623, 64
  %v642 = vpop.permute.xlu0 %641
  %643 = vrot.lane.b32.xlu0 %v624, 64
  %v644 = vpop.permute.xlu0 %643
  %645 = vrot.lane.b32.xlu0 %v625, 64
  %v646 = vpop.permute.xlu0 %645
  %647 = vrot.lane.b32.xlu0 %v626, 64
  %v648 = vpop.permute.xlu0 %647
  %649 = vrot.lane.b32.xlu0 %v627, 64
  %v650 = vpop.permute.xlu0 %649
  %651 = vrot.lane.b32.xlu0 %v628, 64
  %v652 = vpop.permute.xlu0 %651
  %vm661 = vcmask 585216
  %662 = vst.msk [vmem:[#allocation3] sm:$0xf] %vm661, %v638
  %663 = vst.msk [vmem:[#allocation3 + $0x4] sm:$0xf] %vm661, %v640
  %664 = vst.msk [vmem:[#allocation3 + $0x8] sm:$0xf] %vm661, %v642
  %665 = vst.msk [vmem:[#allocation3 + $0xc] sm:$0xf] %vm661, %v644
  %666 = vst.msk [vmem:[#allocation3 + $0x10] sm:$0xf] %vm661, %v646
  %667 = vst.msk [vmem:[#allocation3 + $0x14] sm:$0xf] %vm661, %v648
  %668 = vst.msk [vmem:[#allocation3 + $0x18] sm:$0xf] %vm661, %v650
  %669 = vst.msk [vmem:[#allocation3 + $0x1c] sm:$0xf] %vm661, %v652
  %v670 = vld [vmem:[%s151 + $0x7] sm:$0xff]
  %v671 = vld [vmem:[%s151 + $0x1f] sm:$0xff]
  %v672 = vld [vmem:[%s151 + $0x37] sm:$0xff]
  %v673 = vld [vmem:[%s151 + $0x4f] sm:$0xff]
  %v674 = vld [vmem:[%s151 + $0x67] sm:$0xff]
  %v675 = vld [vmem:[%s151 + $0x7f] sm:$0xff]
  %v676 = vld [vmem:[%s151 + $0x97] sm:$0xff]
  %v677 = vld [vmem:[%s151 + $0xaf] sm:$0xff]
  %v678 = vpack.c.bf16 %v670, %v670
  %v679 = vpack.c.bf16 %v671, %v671
  %v680 = vpack.c.bf16 %v672, %v672
  %v681 = vpack.c.bf16 %v673, %v673
  %v682 = vpack.c.bf16 %v674, %v674
  %v683 = vpack.c.bf16 %v675, %v675
  %v684 = vpack.c.bf16 %v676, %v676
  %v685 = vpack.c.bf16 %v677, %v677
  %686 = vst.msk [vmem:[#allocation3 + $0x20] sm:$0xf] %vm204, %v678
  %687 = vst.msk [vmem:[#allocation3 + $0x24] sm:$0xf] %vm204, %v679
  %688 = vst.msk [vmem:[#allocation3 + $0x28] sm:$0xf] %vm204, %v680
  %689 = vst.msk [vmem:[#allocation3 + $0x2c] sm:$0xf] %vm204, %v681
  %690 = vst.msk [vmem:[#allocation3 + $0x30] sm:$0xf] %vm204, %v682
  %691 = vst.msk [vmem:[#allocation3 + $0x34] sm:$0xf] %vm204, %v683
  %692 = vst.msk [vmem:[#allocation3 + $0x38] sm:$0xf] %vm204, %v684
  %693 = vst.msk [vmem:[#allocation3 + $0x3c] sm:$0xf] %vm204, %v685
  %v694 = vld [vmem:[%s151 + $0x8] sm:$0xff]
  %v695 = vld [vmem:[%s151 + $0x20] sm:$0xff]
  %v696 = vld [vmem:[%s151 + $0x38] sm:$0xff]
  %v697 = vld [vmem:[%s151 + $0x50] sm:$0xff]
  %v698 = vld [vmem:[%s151 + $0x68] sm:$0xff]
  %v699 = vld [vmem:[%s151 + $0x80] sm:$0xff]
  %v700 = vld [vmem:[%s151 + $0x98] sm:$0xff]
  %v701 = vld [vmem:[%s151 + $0xb0] sm:$0xff]
  %v702 = vpack.c.bf16 %v694, %v694
  %v703 = vpack.c.bf16 %v695, %v695
  %v704 = vpack.c.bf16 %v696, %v696
  %v705 = vpack.c.bf16 %v697, %v697
  %v706 = vpack.c.bf16 %v698, %v698
  %v707 = vpack.c.bf16 %v699, %v699
  %v708 = vpack.c.bf16 %v700, %v700
  %v709 = vpack.c.bf16 %v701, %v701
  %718 = vrot.lane.b32.xlu0 %v702, 8
  %v719 = vpop.permute.xlu0 %718
  %720 = vrot.lane.b32.xlu0 %v703, 8
  %v721 = vpop.permute.xlu0 %720
  %722 = vrot.lane.b32.xlu0 %v704, 8
  %v723 = vpop.permute.xlu0 %722
  %724 = vrot.lane.b32.xlu0 %v705, 8
  %v725 = vpop.permute.xlu0 %724
  %726 = vrot.lane.b32.xlu0 %v706, 8
  %v727 = vpop.permute.xlu0 %726
  %728 = vrot.lane.b32.xlu0 %v707, 8
  %v729 = vpop.permute.xlu0 %728
  %730 = vrot.lane.b32.xlu0 %v708, 8
  %v731 = vpop.permute.xlu0 %730
  %732 = vrot.lane.b32.xlu0 %v709, 8
  %v733 = vpop.permute.xlu0 %732
  %742 = vst.msk [vmem:[#allocation3 + $0x20] sm:$0xf] %vm261, %v719
  %743 = vst.msk [vmem:[#allocation3 + $0x24] sm:$0xf] %vm261, %v721
  %744 = vst.msk [vmem:[#allocation3 + $0x28] sm:$0xf] %vm261, %v723
  %745 = vst.msk [vmem:[#allocation3 + $0x2c] sm:$0xf] %vm261, %v725
  %746 = vst.msk [vmem:[#allocation3 + $0x30] sm:$0xf] %vm261, %v727
  %747 = vst.msk [vmem:[#allocation3 + $0x34] sm:$0xf] %vm261, %v729
  %748 = vst.msk [vmem:[#allocation3 + $0x38] sm:$0xf] %vm261, %v731
  %749 = vst.msk [vmem:[#allocation3 + $0x3c] sm:$0xf] %vm261, %v733
  %v750 = vld [vmem:[%s151 + $0x9] sm:$0xff]
  %v751 = vld [vmem:[%s151 + $0x21] sm:$0xff]
  %v752 = vld [vmem:[%s151 + $0x39] sm:$0xff]
  %v753 = vld [vmem:[%s151 + $0x51] sm:$0xff]
  %v754 = vld [vmem:[%s151 + $0x69] sm:$0xff]
  %v755 = vld [vmem:[%s151 + $0x81] sm:$0xff]
  %v756 = vld [vmem:[%s151 + $0x99] sm:$0xff]
  %v757 = vld [vmem:[%s151 + $0xb1] sm:$0xff]
  %v758 = vpack.c.bf16 %v750, %v750
  %v759 = vpack.c.bf16 %v751, %v751
  %v760 = vpack.c.bf16 %v752, %v752
  %v761 = vpack.c.bf16 %v753, %v753
  %v762 = vpack.c.bf16 %v754, %v754
  %v763 = vpack.c.bf16 %v755, %v755
  %v764 = vpack.c.bf16 %v756, %v756
  %v765 = vpack.c.bf16 %v757, %v757
  %774 = vrot.lane.b32.xlu0 %v758, 16
  %v775 = vpop.permute.xlu0 %774
  %776 = vrot.lane.b32.xlu0 %v759, 16
  %v777 = vpop.permute.xlu0 %776
  %778 = vrot.lane.b32.xlu0 %v760, 16
  %v779 = vpop.permute.xlu0 %778
  %780 = vrot.lane.b32.xlu0 %v761, 16
  %v781 = vpop.permute.xlu0 %780
  %782 = vrot.lane.b32.xlu0 %v762, 16
  %v783 = vpop.permute.xlu0 %782
  %784 = vrot.lane.b32.xlu0 %v763, 16
  %v785 = vpop.permute.xlu0 %784
  %786 = vrot.lane.b32.xlu0 %v764, 16
  %v787 = vpop.permute.xlu0 %786
  %788 = vrot.lane.b32.xlu0 %v765, 16
  %v789 = vpop.permute.xlu0 %788
  %798 = vst.msk [vmem:[#allocation3 + $0x20] sm:$0xf] %vm318, %v775
  %799 = vst.msk [vmem:[#allocation3 + $0x24] sm:$0xf] %vm318, %v777
  %800 = vst.msk [vmem:[#allocation3 + $0x28] sm:$0xf] %vm318, %v779
  %801 = vst.msk [vmem:[#allocation3 + $0x2c] sm:$0xf] %vm318, %v781
  %802 = vst.msk [vmem:[#allocation3 + $0x30] sm:$0xf] %vm318, %v783
  %803 = vst.msk [vmem:[#allocation3 + $0x34] sm:$0xf] %vm318, %v785
  %804 = vst.msk [vmem:[#allocation3 + $0x38] sm:$0xf] %vm318, %v787
  %805 = vst.msk [vmem:[#allocation3 + $0x3c] sm:$0xf] %vm318, %v789
  %v806 = vld [vmem:[%s179 + $0x7] sm:$0xff]
  %v807 = vld [vmem:[%s179 + $0x1f] sm:$0xff]
  %v808 = vld [vmem:[%s179 + $0x37] sm:$0xff]
  %v809 = vld [vmem:[%s179 + $0x4f] sm:$0xff]
  %v810 = vld [vmem:[%s179 + $0x67] sm:$0xff]
  %v811 = vld [vmem:[%s179 + $0x7f] sm:$0xff]
  %v812 = vld [vmem:[%s179 + $0x97] sm:$0xff]
  %v813 = vld [vmem:[%s179 + $0xaf] sm:$0xff]
  %v814 = vpack.c.bf16 %v806, %v806
  %v815 = vpack.c.bf16 %v807, %v807
  %v816 = vpack.c.bf16 %v808, %v808
  %v817 = vpack.c.bf16 %v809, %v809
  %v818 = vpack.c.bf16 %v810, %v810
  %v819 = vpack.c.bf16 %v811, %v811
  %v820 = vpack.c.bf16 %v812, %v812
  %v821 = vpack.c.bf16 %v813, %v813
  %830 = vrot.lane.b32.xlu0 %v814, 24
  %v831 = vpop.permute.xlu0 %830
  %832 = vrot.lane.b32.xlu0 %v815, 24
  %v833 = vpop.permute.xlu0 %832
  %834 = vrot.lane.b32.xlu0 %v816, 24
  %v835 = vpop.permute.xlu0 %834
  %836 = vrot.lane.b32.xlu0 %v817, 24
  %v837 = vpop.permute.xlu0 %836
  %838 = vrot.lane.b32.xlu0 %v818, 24
  %v839 = vpop.permute.xlu0 %838
  %840 = vrot.lane.b32.xlu0 %v819, 24
  %v841 = vpop.permute.xlu0 %840
  %842 = vrot.lane.b32.xlu0 %v820, 24
  %v843 = vpop.permute.xlu0 %842
  %844 = vrot.lane.b32.xlu0 %v821, 24
  %v845 = vpop.permute.xlu0 %844
  %854 = vst.msk [vmem:[#allocation3 + $0x20] sm:$0xf] %vm375, %v831
  %855 = vst.msk [vmem:[#allocation3 + $0x24] sm:$0xf] %vm375, %v833
  %856 = vst.msk [vmem:[#allocation3 + $0x28] sm:$0xf] %vm375, %v835
  %857 = vst.msk [vmem:[#allocation3 + $0x2c] sm:$0xf] %vm375, %v837
  %858 = vst.msk [vmem:[#allocation3 + $0x30] sm:$0xf] %vm375, %v839
  %859 = vst.msk [vmem:[#allocation3 + $0x34] sm:$0xf] %vm375, %v841
  %860 = vst.msk [vmem:[#allocation3 + $0x38] sm:$0xf] %vm375, %v843
  %861 = vst.msk [vmem:[#allocation3 + $0x3c] sm:$0xf] %vm375, %v845
  %v862 = vld [vmem:[%s179 + $0x8] sm:$0xff]
  %v863 = vld [vmem:[%s179 + $0x20] sm:$0xff]
  %v864 = vld [vmem:[%s179 + $0x38] sm:$0xff]
  %v865 = vld [vmem:[%s179 + $0x50] sm:$0xff]
  %v866 = vld [vmem:[%s179 + $0x68] sm:$0xff]
  %v867 = vld [vmem:[%s179 + $0x80] sm:$0xff]
  %v868 = vld [vmem:[%s179 + $0x98] sm:$0xff]
  %v869 = vld [vmem:[%s179 + $0xb0] sm:$0xff]
  %v870 = vpack.c.bf16 %v862, %v862
  %v871 = vpack.c.bf16 %v863, %v863
  %v872 = vpack.c.bf16 %v864, %v864
  %v873 = vpack.c.bf16 %v865, %v865
  %v874 = vpack.c.bf16 %v866, %v866
  %v875 = vpack.c.bf16 %v867, %v867
  %v876 = vpack.c.bf16 %v868, %v868
  %v877 = vpack.c.bf16 %v869, %v869
  %886 = vrot.lane.b32.xlu0 %v870, 32
  %v887 = vpop.permute.xlu0 %886
  %888 = vrot.lane.b32.xlu0 %v871, 32
  %v889 = vpop.permute.xlu0 %888
  %890 = vrot.lane.b32.xlu0 %v872, 32
  %v891 = vpop.permute.xlu0 %890
  %892 = vrot.lane.b32.xlu0 %v873, 32
  %v893 = vpop.permute.xlu0 %892
  %894 = vrot.lane.b32.xlu0 %v874, 32
  %v895 = vpop.permute.xlu0 %894
  %896 = vrot.lane.b32.xlu0 %v875, 32
  %v897 = vpop.permute.xlu0 %896
  %898 = vrot.lane.b32.xlu0 %v876, 32
  %v899 = vpop.permute.xlu0 %898
  %900 = vrot.lane.b32.xlu0 %v877, 32
  %v901 = vpop.permute.xlu0 %900
  %910 = vst.msk [vmem:[#allocation3 + $0x20] sm:$0xf] %vm432, %v887
  %911 = vst.msk [vmem:[#allocation3 + $0x24] sm:$0xf] %vm432, %v889
  %912 = vst.msk [vmem:[#allocation3 + $0x28] sm:$0xf] %vm432, %v891
  %913 = vst.msk [vmem:[#allocation3 + $0x2c] sm:$0xf] %vm432, %v893
  %914 = vst.msk [vmem:[#allocation3 + $0x30] sm:$0xf] %vm432, %v895
  %915 = vst.msk [vmem:[#allocation3 + $0x34] sm:$0xf] %vm432, %v897
  %916 = vst.msk [vmem:[#allocation3 + $0x38] sm:$0xf] %vm432, %v899
  %917 = vst.msk [vmem:[#allocation3 + $0x3c] sm:$0xf] %vm432, %v901
  %v918 = vld [vmem:[%s179 + $0x9] sm:$0xff]
  %v919 = vld [vmem:[%s179 + $0x21] sm:$0xff]
  %v920 = vld [vmem:[%s179 + $0x39] sm:$0xff]
  %v921 = vld [vmem:[%s179 + $0x51] sm:$0xff]
  %v922 = vld [vmem:[%s179 + $0x69] sm:$0xff]
  %v923 = vld [vmem:[%s179 + $0x81] sm:$0xff]
  %v924 = vld [vmem:[%s179 + $0x99] sm:$0xff]
  %v925 = vld [vmem:[%s179 + $0xb1] sm:$0xff]
  %v926 = vpack.c.bf16 %v918, %v918
  %v927 = vpack.c.bf16 %v919, %v919
  %v928 = vpack.c.bf16 %v920, %v920
  %v929 = vpack.c.bf16 %v921, %v921
  %v930 = vpack.c.bf16 %v922, %v922
  %v931 = vpack.c.bf16 %v923, %v923
  %v932 = vpack.c.bf16 %v924, %v924
  %v933 = vpack.c.bf16 %v925, %v925
  %942 = vrot.lane.b32.xlu0 %v926, 40
  %v943 = vpop.permute.xlu0 %942
  %944 = vrot.lane.b32.xlu0 %v927, 40
  %v945 = vpop.permute.xlu0 %944
  %946 = vrot.lane.b32.xlu0 %v928, 40
  %v947 = vpop.permute.xlu0 %946
  %948 = vrot.lane.b32.xlu0 %v929, 40
  %v949 = vpop.permute.xlu0 %948
  %950 = vrot.lane.b32.xlu0 %v930, 40
  %v951 = vpop.permute.xlu0 %950
  %952 = vrot.lane.b32.xlu0 %v931, 40
  %v953 = vpop.permute.xlu0 %952
  %954 = vrot.lane.b32.xlu0 %v932, 40
  %v955 = vpop.permute.xlu0 %954
  %956 = vrot.lane.b32.xlu0 %v933, 40
  %v957 = vpop.permute.xlu0 %956
  %966 = vst.msk [vmem:[#allocation3 + $0x20] sm:$0xf] %vm489, %v943
  %967 = vst.msk [vmem:[#allocation3 + $0x24] sm:$0xf] %vm489, %v945
  %968 = vst.msk [vmem:[#allocation3 + $0x28] sm:$0xf] %vm489, %v947
  %969 = vst.msk [vmem:[#allocation3 + $0x2c] sm:$0xf] %vm489, %v949
  %970 = vst.msk [vmem:[#allocation3 + $0x30] sm:$0xf] %vm489, %v951
  %971 = vst.msk [vmem:[#allocation3 + $0x34] sm:$0xf] %vm489, %v953
  %972 = vst.msk [vmem:[#allocation3 + $0x38] sm:$0xf] %vm489, %v955
  %973 = vst.msk [vmem:[#allocation3 + $0x3c] sm:$0xf] %vm489, %v957
  %s974 = scalar_lea.vmem [#allocation2], 288
  %v975 = vld [vmem:[%s974 + $0x7] sm:$0xff]
  %v976 = vld [vmem:[%s974 + $0x1f] sm:$0xff]
  %v977 = vld [vmem:[%s974 + $0x37] sm:$0xff]
  %v978 = vld [vmem:[%s974 + $0x4f] sm:$0xff]
  %v979 = vld [vmem:[%s974 + $0x67] sm:$0xff]
  %v980 = vld [vmem:[%s974 + $0x7f] sm:$0xff]
  %v981 = vld [vmem:[%s974 + $0x97] sm:$0xff]
  %v982 = vld [vmem:[%s974 + $0xaf] sm:$0xff]
  %v983 = vpack.c.bf16 %v975, %v975
  %v984 = vpack.c.bf16 %v976, %v976
  %v985 = vpack.c.bf16 %v977, %v977
  %v986 = vpack.c.bf16 %v978, %v978
  %v987 = vpack.c.bf16 %v979, %v979
  %v988 = vpack.c.bf16 %v980, %v980
  %v989 = vpack.c.bf16 %v981, %v981
  %v990 = vpack.c.bf16 %v982, %v982
  %999 = vrot.lane.b32.xlu0 %v983, 48
  %v1000 = vpop.permute.xlu0 %999
  %1001 = vrot.lane.b32.xlu0 %v984, 48
  %v1002 = vpop.permute.xlu0 %1001
  %1003 = vrot.lane.b32.xlu0 %v985, 48
  %v1004 = vpop.permute.xlu0 %1003
  %1005 = vrot.lane.b32.xlu0 %v986, 48
  %v1006 = vpop.permute.xlu0 %1005
  %1007 = vrot.lane.b32.xlu0 %v987, 48
  %v1008 = vpop.permute.xlu0 %1007
  %1009 = vrot.lane.b32.xlu0 %v988, 48
  %v1010 = vpop.permute.xlu0 %1009
  %1011 = vrot.lane.b32.xlu0 %v989, 48
  %v1012 = vpop.permute.xlu0 %1011
  %1013 = vrot.lane.b32.xlu0 %v990, 48
  %v1014 = vpop.permute.xlu0 %1013
  %1023 = vst.msk [vmem:[#allocation3 + $0x20] sm:$0xf] %vm547, %v1000
  %1024 = vst.msk [vmem:[#allocation3 + $0x24] sm:$0xf] %vm547, %v1002
  %1025 = vst.msk [vmem:[#allocation3 + $0x28] sm:$0xf] %vm547, %v1004
  %1026 = vst.msk [vmem:[#allocation3 + $0x2c] sm:$0xf] %vm547, %v1006
  %1027 = vst.msk [vmem:[#allocation3 + $0x30] sm:$0xf] %vm547, %v1008
  %1028 = vst.msk [vmem:[#allocation3 + $0x34] sm:$0xf] %vm547, %v1010
  %1029 = vst.msk [vmem:[#allocation3 + $0x38] sm:$0xf] %vm547, %v1012
  %1030 = vst.msk [vmem:[#allocation3 + $0x3c] sm:$0xf] %vm547, %v1014
  %v1031 = vld [vmem:[%s974 + $0x8] sm:$0xff]
  %v1032 = vld [vmem:[%s974 + $0x20] sm:$0xff]
  %v1033 = vld [vmem:[%s974 + $0x38] sm:$0xff]
  %v1034 = vld [vmem:[%s974 + $0x50] sm:$0xff]
  %v1035 = vld [vmem:[%s974 + $0x68] sm:$0xff]
  %v1036 = vld [vmem:[%s974 + $0x80] sm:$0xff]
  %v1037 = vld [vmem:[%s974 + $0x98] sm:$0xff]
  %v1038 = vld [vmem:[%s974 + $0xb0] sm:$0xff]
  %v1039 = vpack.c.bf16 %v1031, %v1031
  %v1040 = vpack.c.bf16 %v1032, %v1032
  %v1041 = vpack.c.bf16 %v1033, %v1033
  %v1042 = vpack.c.bf16 %v1034, %v1034
  %v1043 = vpack.c.bf16 %v1035, %v1035
  %v1044 = vpack.c.bf16 %v1036, %v1036
  %v1045 = vpack.c.bf16 %v1037, %v1037
  %v1046 = vpack.c.bf16 %v1038, %v1038
  %1055 = vrot.lane.b32.xlu0 %v1039, 56
  %v1056 = vpop.permute.xlu0 %1055
  %1057 = vrot.lane.b32.xlu0 %v1040, 56
  %v1058 = vpop.permute.xlu0 %1057
  %1059 = vrot.lane.b32.xlu0 %v1041, 56
  %v1060 = vpop.permute.xlu0 %1059
  %1061 = vrot.lane.b32.xlu0 %v1042, 56
  %v1062 = vpop.permute.xlu0 %1061
  %1063 = vrot.lane.b32.xlu0 %v1043, 56
  %v1064 = vpop.permute.xlu0 %1063
  %1065 = vrot.lane.b32.xlu0 %v1044, 56
  %v1066 = vpop.permute.xlu0 %1065
  %1067 = vrot.lane.b32.xlu0 %v1045, 56
  %v1068 = vpop.permute.xlu0 %1067
  %1069 = vrot.lane.b32.xlu0 %v1046, 56
  %v1070 = vpop.permute.xlu0 %1069
  %1079 = vst.msk [vmem:[#allocation3 + $0x20] sm:$0xf] %vm604, %v1056
  %1080 = vst.msk [vmem:[#allocation3 + $0x24] sm:$0xf] %vm604, %v1058
  %1081 = vst.msk [vmem:[#allocation3 + $0x28] sm:$0xf] %vm604, %v1060
  %1082 = vst.msk [vmem:[#allocation3 + $0x2c] sm:$0xf] %vm604, %v1062
  %1083 = vst.msk [vmem:[#allocation3 + $0x30] sm:$0xf] %vm604, %v1064
  %1084 = vst.msk [vmem:[#allocation3 + $0x34] sm:$0xf] %vm604, %v1066
  %1085 = vst.msk [vmem:[#allocation3 + $0x38] sm:$0xf] %vm604, %v1068
  %1086 = vst.msk [vmem:[#allocation3 + $0x3c] sm:$0xf] %vm604, %v1070
  %v1087 = vld [vmem:[%s974 + $0x9] sm:$0xff]
  %v1088 = vld [vmem:[%s974 + $0x21] sm:$0xff]
  %v1089 = vld [vmem:[%s974 + $0x39] sm:$0xff]
  %v1090 = vld [vmem:[%s974 + $0x51] sm:$0xff]
  %v1091 = vld [vmem:[%s974 + $0x69] sm:$0xff]
  %v1092 = vld [vmem:[%s974 + $0x81] sm:$0xff]
  %v1093 = vld [vmem:[%s974 + $0x99] sm:$0xff]
  %v1094 = vld [vmem:[%s974 + $0xb1] sm:$0xff]
  %v1095 = vpack.c.bf16 %v1087, %v1087
  %v1096 = vpack.c.bf16 %v1088, %v1088
  %v1097 = vpack.c.bf16 %v1089, %v1089
  %v1098 = vpack.c.bf16 %v1090, %v1090
  %v1099 = vpack.c.bf16 %v1091, %v1091
  %v1100 = vpack.c.bf16 %v1092, %v1092
  %v1101 = vpack.c.bf16 %v1093, %v1093
  %v1102 = vpack.c.bf16 %v1094, %v1094
  %1111 = vrot.lane.b32.xlu0 %v1095, 64
  %v1112 = vpop.permute.xlu0 %1111
  %1113 = vrot.lane.b32.xlu0 %v1096, 64
  %v1114 = vpop.permute.xlu0 %1113
  %1115 = vrot.lane.b32.xlu0 %v1097, 64
  %v1116 = vpop.permute.xlu0 %1115
  %1117 = vrot.lane.b32.xlu0 %v1098, 64
  %v1118 = vpop.permute.xlu0 %1117
  %1119 = vrot.lane.b32.xlu0 %v1099, 64
  %v1120 = vpop.permute.xlu0 %1119
  %1121 = vrot.lane.b32.xlu0 %v1100, 64
  %v1122 = vpop.permute.xlu0 %1121
  %1123 = vrot.lane.b32.xlu0 %v1101, 64
  %v1124 = vpop.permute.xlu0 %1123
  %1125 = vrot.lane.b32.xlu0 %v1102, 64
  %v1126 = vpop.permute.xlu0 %1125
  %1135 = vst.msk [vmem:[#allocation3 + $0x20] sm:$0xf] %vm661, %v1112
  %1136 = vst.msk [vmem:[#allocation3 + $0x24] sm:$0xf] %vm661, %v1114
  %1137 = vst.msk [vmem:[#allocation3 + $0x28] sm:$0xf] %vm661, %v1116
  %1138 = vst.msk [vmem:[#allocation3 + $0x2c] sm:$0xf] %vm661, %v1118
  %1139 = vst.msk [vmem:[#allocation3 + $0x30] sm:$0xf] %vm661, %v1120
  %1140 = vst.msk [vmem:[#allocation3 + $0x34] sm:$0xf] %vm661, %v1122
  %1141 = vst.msk [vmem:[#allocation3 + $0x38] sm:$0xf] %vm661, %v1124
  %1142 = vst.msk [vmem:[#allocation3 + $0x3c] sm:$0xf] %vm661, %v1126
  %v1143 = vld [vmem:[#allocation3] sm:$0xf]
  %v1144 = vld [vmem:[#allocation3 + $0x4] sm:$0xf]
  %v1145 = vld [vmem:[#allocation3 + $0x8] sm:$0xf]
  %v1146 = vld [vmem:[#allocation3 + $0xc] sm:$0xf]
  %v1147 = vld [vmem:[#allocation3 + $0x10] sm:$0xf]
  %v1148 = vld [vmem:[#allocation3 + $0x14] sm:$0xf]
  %v1149 = vld [vmem:[#allocation3 + $0x18] sm:$0xf]
  %v1150 = vld [vmem:[#allocation3 + $0x1c] sm:$0xf]
  %v1151 = vld [vmem:[#allocation3 + $0x20] sm:$0xf]
  %v1152 = vld [vmem:[#allocation3 + $0x24] sm:$0xf]
  %v1153 = vld [vmem:[#allocation3 + $0x28] sm:$0xf]
  %v1154 = vld [vmem:[#allocation3 + $0x2c] sm:$0xf]
  %v1155 = vld [vmem:[#allocation3 + $0x30] sm:$0xf]
  %v1156 = vld [vmem:[#allocation3 + $0x34] sm:$0xf]
  %v1157 = vld [vmem:[#allocation3 + $0x38] sm:$0xf]
  %v1158 = vld [vmem:[#allocation3 + $0x3c] sm:$0xf]
  %v1159 = vld [vmem:[%s3] sm:$0xf]
  %v1160 = vld [vmem:[%s3 + $0x4] sm:$0xf]
  %v1161 = vld [vmem:[%s3 + $0x8] sm:$0xf]
  %v1162 = vld [vmem:[%s3 + $0xc] sm:$0xf]
  %v1163 = vld [vmem:[%s3 + $0x10] sm:$0xf]
  %v1164 = vld [vmem:[%s3 + $0x14] sm:$0xf]
  %v1165 = vld [vmem:[%s3 + $0x18] sm:$0xf]
  %v1166 = vld [vmem:[%s3 + $0x1c] sm:$0xf]
  %v1167 = vld [vmem:[%s3 + $0x20] sm:$0xf]
  %v1168 = vld [vmem:[%s4] sm:$0x1]
  %v1170 = vperm.slane %v1168, 0
  %v1188 = vunpack.c.l.b16 %v1143
  %v1189 = vunpack.c.l.b16 %v1144
  %v1190 = vunpack.c.l.b16 %v1145
  %v1191 = vunpack.c.l.b16 %v1146
  %v1192 = vunpack.c.l.b16 %v1147
  %v1193 = vunpack.c.l.b16 %v1148
  %v1194 = vunpack.c.l.b16 %v1149
  %v1195 = vunpack.c.l.b16 %v1150
  %v1196 = vunpack.c.l.b16 %v1151
  %v1197 = vunpack.c.l.b16 %v1152
  %v1198 = vunpack.c.l.b16 %v1153
  %v1199 = vunpack.c.l.b16 %v1154
  %v1200 = vunpack.c.l.b16 %v1155
  %v1201 = vunpack.c.l.b16 %v1156
  %v1202 = vunpack.c.l.b16 %v1157
  %v1203 = vunpack.c.l.b16 %v1158
  %v1204 = vpack.c.b16 %v1189, %v1188
  %v1205 = vpack.c.b16 %v1191, %v1190
  %v1206 = vpack.c.b16 %v1193, %v1192
  %v1207 = vpack.c.b16 %v1195, %v1194
  %v1208 = vpack.c.b16 %v1197, %v1196
  %v1209 = vpack.c.b16 %v1199, %v1198
  %v1210 = vpack.c.b16 %v1201, %v1200
  %v1211 = vpack.c.b16 %v1203, %v1202
  %v1221 = vunpack.c.l.b16 %v1159
  %v1222 = vunpack.c.l.b16 %v1160
  %v1223 = vunpack.c.l.b16 %v1161
  %v1224 = vunpack.c.l.b16 %v1162
  %v1225 = vunpack.c.l.b16 %v1163
  %v1226 = vunpack.c.l.b16 %v1164
  %v1227 = vunpack.c.l.b16 %v1165
  %v1228 = vunpack.c.l.b16 %v1166
  %v1229 = vunpack.c.l.b16 %v1167
  %v1230 = vpack.c.b16 %v1222, %v1221
  %v1231 = vpack.c.b16 %v1224, %v1223
  %v1232 = vpack.c.b16 %v1226, %v1225
  %v1233 = vpack.c.b16 %v1228, %v1227
  %v1234 = vpack.c.b16 %v1229, %v1229
  %vm1239 = vcmask 588800
  %v1241 = vsel %vm1239, %v1204, 0
  %v1244 = vsel %vm1239, %v1205, 0
  %v1247 = vsel %vm1239, %v1206, 0
  %v1250 = vsel %vm1239, %v1207, 0
  %v1253 = vsel %vm1239, %v1208, 0
  %v1256 = vsel %vm1239, %v1209, 0
  %v1259 = vsel %vm1239, %v1210, 0
  %v1262 = vsel %vm1239, %v1211, 0
  %vm1264 = vcmask 1043456
  %v1266 = vsel %vm1264, %v1234, 0
  %1268 = vmatpush.bf16.msra.mxu0 0
  %1269 = vmatpush.bf16.msra.mxu0 0
  %1270 = vmatpush.bf16.msra.mxu0 0
  %1271 = vmatpush.bf16.msra.mxu0 %v1266
  %1272 = vmatpush.bf16.msra.mxu0 %v1233
  %1273 = vmatpush.bf16.msra.mxu0 %v1232
  %1274 = vmatpush.bf16.msra.mxu0 %v1231
  %1275 = vmatpush.bf16.msra.mxu0 %v1230
  %1276 = vmatmul.bf16.gmra.mxu0 %v1241
  %v1277 = vpop.f32.mrf.mxu0
  %v1278 = vadd.f32 %v1170, %v1277
  %v1279 = vpop.f32.mrf.mxu0
  %v1280 = vadd.f32 %v1170, %v1279
  %1281 = vmatmul.bf16.gmra.mxu0 %v1244
  %v1282 = vpop.f32.mrf.mxu0
  %v1283 = vadd.f32 %v1170, %v1282
  %v1284 = vpop.f32.mrf.mxu0
  %v1285 = vadd.f32 %v1170, %v1284
  %1286 = vmatmul.bf16.gmra.mxu0 %v1247
  %v1287 = vpop.f32.mrf.mxu0
  %v1288 = vadd.f32 %v1170, %v1287
  %v1289 = vpop.f32.mrf.mxu0
  %v1290 = vadd.f32 %v1170, %v1289
  %1291 = vmatmul.bf16.gmra.mxu0 %v1250
  %v1292 = vpop.f32.mrf.mxu0
  %v1293 = vadd.f32 %v1170, %v1292
  %v1294 = vpop.f32.mrf.mxu0
  %v1295 = vadd.f32 %v1170, %v1294
  %1296 = vmatmul.bf16.gmra.mxu0 %v1253
  %v1297 = vpop.f32.mrf.mxu0
  %v1298 = vadd.f32 %v1170, %v1297
  %v1299 = vpop.f32.mrf.mxu0
  %v1300 = vadd.f32 %v1170, %v1299
  %1301 = vmatmul.bf16.gmra.mxu0 %v1256
  %v1302 = vpop.f32.mrf.mxu0
  %v1303 = vadd.f32 %v1170, %v1302
  %v1304 = vpop.f32.mrf.mxu0
  %v1305 = vadd.f32 %v1170, %v1304
  %1306 = vmatmul.bf16.gmra.mxu0 %v1259
  %v1307 = vpop.f32.mrf.mxu0
  %v1308 = vadd.f32 %v1170, %v1307
  %v1309 = vpop.f32.mrf.mxu0
  %v1310 = vadd.f32 %v1170, %v1309
  %1311 = vmatmul.bf16.gmra.mxu0 %v1262
  %v1312 = vpop.f32.mrf.mxu0
  %v1313 = vadd.f32 %v1170, %v1312
  %v1314 = vpop.f32.mrf.mxu0
  %v1315 = vadd.f32 %v1170, %v1314
  %1316 = vdwg.mxu0
  %v1317 = vpack.c.bf16 %v1278, %v1278
  %v1318 = vpack.c.bf16 %v1280, %v1280
  %v1319 = vpack.c.bf16 %v1283, %v1283
  %v1320 = vpack.c.bf16 %v1285, %v1285
  %v1321 = vpack.c.bf16 %v1288, %v1288
  %v1322 = vpack.c.bf16 %v1290, %v1290
  %v1323 = vpack.c.bf16 %v1293, %v1293
  %v1324 = vpack.c.bf16 %v1295, %v1295
  %1325 = vst.msk [vmem:[%s5] sm:$0xf] %vm204, %v1317
  %1326 = vst.msk [vmem:[%s5 + $0x4] sm:$0xf] %vm204, %v1318
  %1327 = vst.msk [vmem:[%s5 + $0x8] sm:$0xf] %vm204, %v1319
  %1328 = vst.msk [vmem:[%s5 + $0xc] sm:$0xf] %vm204, %v1320
  %1329 = vst.msk [vmem:[%s5 + $0x10] sm:$0xf] %vm204, %v1321
  %1330 = vst.msk [vmem:[%s5 + $0x14] sm:$0xf] %vm204, %v1322
  %1331 = vst.msk [vmem:[%s5 + $0x18] sm:$0xf] %vm204, %v1323
  %1332 = vst.msk [vmem:[%s5 + $0x1c] sm:$0xf] %vm204, %v1324
  %v1333 = vpack.c.bf16 %v1298, %v1298
  %v1334 = vpack.c.bf16 %v1300, %v1300
  %v1335 = vpack.c.bf16 %v1303, %v1303
  %v1336 = vpack.c.bf16 %v1305, %v1305
  %v1337 = vpack.c.bf16 %v1308, %v1308
  %v1338 = vpack.c.bf16 %v1310, %v1310
  %v1339 = vpack.c.bf16 %v1313, %v1313
  %v1340 = vpack.c.bf16 %v1315, %v1315
  %s1341 = scalar_lea.vmem %s5, 32
  %1342 = vst.msk [vmem:[%s1341] sm:$0xf] %vm204, %v1333
  %1343 = vst.msk [vmem:[%s1341 + $0x4] sm:$0xf] %vm204, %v1334
  %1344 = vst.msk [vmem:[%s1341 + $0x8] sm:$0xf] %vm204, %v1335
  %1345 = vst.msk [vmem:[%s1341 + $0xc] sm:$0xf] %vm204, %v1336
  %1346 = vst.msk [vmem:[%s1341 + $0x10] sm:$0xf] %vm204, %v1337
  %1347 = vst.msk [vmem:[%s1341 + $0x14] sm:$0xf] %vm204, %v1338
  %1348 = vst.msk [vmem:[%s1341 + $0x18] sm:$0xf] %vm204, %v1339
  %1349 = vst.msk [vmem:[%s1341 + $0x1c] sm:$0xf] %vm204, %v1340
  %v1350 = vsel %vm72, %v1278, 0.0
  %v1351 = vsel %vm72, %v1280, 0.0
  %v1352 = vadd.f32 %v1350, %v1351
  %v1353 = vsel %vm72, %v1283, 0.0
  %v1354 = vadd.f32 %v1352, %v1353
  %v1355 = vsel %vm72, %v1285, 0.0
  %v1356 = vadd.f32 %v1354, %v1355
  %v1357 = vsel %vm72, %v1288, 0.0
  %v1358 = vadd.f32 %v1356, %v1357
  %v1359 = vsel %vm72, %v1290, 0.0
  %v1360 = vadd.f32 %v1358, %v1359
  %v1361 = vsel %vm72, %v1293, 0.0
  %v1362 = vadd.f32 %v1360, %v1361
  %v1363 = vsel %vm72, %v1295, 0.0
  %v1364 = vadd.f32 %v1362, %v1363
  %v1365 = vsel %vm72, %v1298, 0.0
  %v1366 = vadd.f32 %v1364, %v1365
  %v1367 = vsel %vm72, %v1300, 0.0
  %v1368 = vadd.f32 %v1366, %v1367
  %v1369 = vsel %vm72, %v1303, 0.0
  %v1370 = vadd.f32 %v1368, %v1369
  %v1371 = vsel %vm72, %v1305, 0.0
  %v1372 = vadd.f32 %v1370, %v1371
  %v1373 = vsel %vm72, %v1308, 0.0
  %v1374 = vadd.f32 %v1372, %v1373
  %v1375 = vsel %vm72, %v1310, 0.0
  %v1376 = vadd.f32 %v1374, %v1375
  %v1377 = vsel %vm72, %v1313, 0.0
  %v1378 = vadd.f32 %v1376, %v1377
  %v1379 = vsel %vm72, %v1315, 0.0
  %v1380 = vadd.f32 %v1378, %v1379
  %v1381 = vrot.slane %v1380, 4
  %v1382 = vadd.f32 %v1380, %v1381
  %v1383 = vrot.slane %v1382, 2
  %v1384 = vadd.f32 %v1382, %v1383
  %v1385 = vrot.slane %v1384, 1
  %v1386 = vadd.f32 %v1384, %v1385
  %v1387 = vadd.f32 %v1386, 0.0
  %v1388 = vmul.f32 %v1278, %v1278
  %v1389 = vmul.f32 %v1280, %v1280
  %v1390 = vmul.f32 %v1283, %v1283
  %v1391 = vmul.f32 %v1285, %v1285
  %v1392 = vmul.f32 %v1288, %v1288
  %v1393 = vmul.f32 %v1290, %v1290
  %v1394 = vmul.f32 %v1293, %v1293
  %v1395 = vmul.f32 %v1295, %v1295
  %v1396 = vmul.f32 %v1298, %v1298
  %v1397 = vmul.f32 %v1300, %v1300
  %v1398 = vmul.f32 %v1303, %v1303
  %v1399 = vmul.f32 %v1305, %v1305
  %v1400 = vmul.f32 %v1308, %v1308
  %v1401 = vmul.f32 %v1310, %v1310
  %v1402 = vmul.f32 %v1313, %v1313
  %v1403 = vmul.f32 %v1315, %v1315
  %v1404 = vsel %vm72, %v1388, 0.0
  %v1405 = vsel %vm72, %v1389, 0.0
  %v1406 = vadd.f32 %v1404, %v1405
  %v1407 = vsel %vm72, %v1390, 0.0
  %v1408 = vadd.f32 %v1406, %v1407
  %v1409 = vsel %vm72, %v1391, 0.0
  %v1410 = vadd.f32 %v1408, %v1409
  %v1411 = vsel %vm72, %v1392, 0.0
  %v1412 = vadd.f32 %v1410, %v1411
  %v1413 = vsel %vm72, %v1393, 0.0
  %v1414 = vadd.f32 %v1412, %v1413
  %v1415 = vsel %vm72, %v1394, 0.0
  %v1416 = vadd.f32 %v1414, %v1415
  %v1417 = vsel %vm72, %v1395, 0.0
  %v1418 = vadd.f32 %v1416, %v1417
  %v1419 = vsel %vm72, %v1396, 0.0
  %v1420 = vadd.f32 %v1418, %v1419
  %v1421 = vsel %vm72, %v1397, 0.0
  %v1422 = vadd.f32 %v1420, %v1421
  %v1423 = vsel %vm72, %v1398, 0.0
  %v1424 = vadd.f32 %v1422, %v1423
  %v1425 = vsel %vm72, %v1399, 0.0
  %v1426 = vadd.f32 %v1424, %v1425
  %v1427 = vsel %vm72, %v1400, 0.0
  %v1428 = vadd.f32 %v1426, %v1427
  %v1429 = vsel %vm72, %v1401, 0.0
  %v1430 = vadd.f32 %v1428, %v1429
  %v1431 = vsel %vm72, %v1402, 0.0
  %v1432 = vadd.f32 %v1430, %v1431
  %v1433 = vsel %vm72, %v1403, 0.0
  %v1434 = vadd.f32 %v1432, %v1433
  %v1435 = vrot.slane %v1434, 4
  %v1436 = vadd.f32 %v1434, %v1435
  %v1437 = vrot.slane %v1436, 2
  %v1438 = vadd.f32 %v1436, %v1437
  %v1439 = vrot.slane %v1438, 1
  %v1440 = vadd.f32 %v1438, %v1439
  %v1441 = vadd.f32 %v1440, 0.0
  %1442 = vst.msk [vmem:[%s6] sm:$0x1] %vm75, %v1387
  %1443 = vst.msk [vmem:[%s7] sm:$0x1] %vm75, %v1441
  // Predicated region
  $region22: #{down_forward.3} parent=0 // pred_check
    _
  $region23: #{down_forward.3} parent=0 // pred_check_branch
    %1445 = sbr.rel (0) target = $region25
  $region24: #{down_forward.3} parent=0 // pred_region
    _
  $region25: #{down_forward.3} parent=0 // pred_fallthru
    _
  // Predicated region
  $region26: #{down_forward.3} parent=0 // pred_check
    _
  $region27: #{down_forward.3} parent=0 // pred_check_branch
    %1447 = sbr.rel (0) target = $region29
  $region28: #{down_forward.3} parent=0 // pred_region
    _
  $region29: #{down_forward.3} parent=0 // pred_fallthru
    _
  // Predicated region
  $region30: #{down_forward.3} parent=0 // pred_check
    _
  $region31: #{down_forward.3} parent=0 // pred_check_branch
    %1449 = sbr.rel (0) target = $region33
  $region32: #{down_forward.3} parent=0 // pred_region
    _
  $region33: #{down_forward.3} parent=0 // pred_fallthru
    _
  // Predicated region
  $region34: #{down_forward.3} parent=0 // pred_check
    _
  $region35: #{down_forward.3} parent=0 // pred_check_branch
    %1451 = sbr.rel (0) target = $region37
  $region36: #{down_forward.3} parent=0 // pred_region
    _
  $region37: #{down_forward.3} parent=0 // pred_fallthru
    _
  // Predicated region
  $region38: #{down_forward.3} parent=0 // pred_check
    _
  $region39: #{down_forward.3} parent=0 // pred_check_branch
    %1453 = sbr.rel (0) target = $region41
  $region40: #{down_forward.3} parent=0 // pred_region
    _
  $region41: #{down_forward.3} parent=0 // pred_fallthru
    _
  // Predicated region
  $region42: #{down_forward.3} parent=0 // pred_check
    _
  $region43: #{down_forward.3} parent=0 // pred_check_branch
    %1455 = sbr.rel (0) target = $region45
  $region44: #{down_forward.3} parent=0 // pred_region
    _
  $region45: #{down_forward.3} parent=0 // pred_fallthru
    _

</llo_original>
